<compile_context>
chip_gen: v6e
topology: v6e:2x2x1
jax: 0.10.0
libtpu: 0.0.40
codegen_flags: <defaults>
</compile_context>

<pallas_src>
import numpy as np
import jax
import jax.numpy as jnp
from jax.experimental import pallas as pl
from jax.experimental.pallas import tpu as pltpu

HIDDEN = 64
LANE = 128


def _adaptive_pool_matrix(in_size: int, out_size: int) -> np.ndarray:
    """Exact AdaptiveAvgPool1d averaging matrix (out_size, in_size)."""
    m = np.zeros((out_size, in_size), dtype=np.float32)
    for i in range(out_size):
        start = (i * in_size) // out_size
        end = -(-((i + 1) * in_size) // out_size)  # ceil
        m[i, start:end] = 1.0 / (end - start)
    return m


# ---------------------------------------------------------------------------
# Fused Pallas kernel: (pool+flatten folded) Linear -> ReLU -> Linear
# ---------------------------------------------------------------------------
def _exit_branch_kernel(x_ref, w1_ref, b1_ref, w2_ref, b2_ref, o_ref):
    # x: (B, C*H*W)   w1: (C*H*W, 128)   b1: (1, 128)
    # w2: (128, K_pad) b2: (1, K_pad)    o: (B, K_pad)
    x = x_ref[...]
    h = jnp.dot(x, w1_ref[...],
                preferred_element_type=jnp.float32,
                precision=jax.lax.Precision.HIGHEST)
    h = jnp.maximum(h + b1_ref[...], 0.0)            # ReLU
    o_ref[...] = (jnp.dot(h, w2_ref[...],
                          preferred_element_type=jnp.float32,
                          precision=jax.lax.Precision.HIGHEST)
                  + b2_ref[...])


# ---------------------------------------------------------------------------
# Wrapper
# ---------------------------------------------------------------------------
def exit_branch_forward(x, params):
    B, C, H, W = x.shape
    num_classes = params["num_classes"]
    k_pad = params["w2_p"].shape[1]

    # Flatten x to (B, C*H*W) -- pure layout glue (row-major, matches the
    # ordering used when building w_eff).
    x_flat = x.reshape(B, C * H * W)

    # Single pallas_call, single grid step; all operands fit in VMEM.
    out_pad = pl.pallas_call(
        _exit_branch_kernel,
        out_shape=jax.ShapeDtypeStruct((B, k_pad), jnp.float32),
    )(x_flat, params["w_eff_p"], params["b1_p"], params["w2_p"], params["b2_p"])

    # Strip lane padding (num_classes < 128).
    return out_pad[:, :num_classes]


def init_params(key, in_channels, num_classes, H, W):
    k1, k2 = jax.random.split(key)
    # PyTorch nn.Linear stores weight as (out, in); we keep (in, out) so the
    # kernel computes y = x @ W + b with identical semantics.
    w1 = 0.01 * jax.random.normal(k1, (in_channels * 50, HIDDEN), dtype=jnp.float32)
    b1 = jnp.zeros((HIDDEN,), dtype=jnp.float32)
    w2 = 0.01 * jax.random.normal(k2, (HIDDEN, num_classes), dtype=jnp.float32)
    b2 = jnp.zeros((num_classes,), dtype=jnp.float32)
    ph = jnp.asarray(_adaptive_pool_matrix(H, 2))    # (2, H)
    pw = jnp.asarray(_adaptive_pool_matrix(W, 25))   # (25, W)

    # --- Fold AdaptiveAvgPool2d((2,25)) + Flatten into the first Linear. ---
    # pooled[b,c,i,j] = sum_{h,w} Ph[i,h] Pw[j,w] x[b,c,h,w]
    # flat index m = c*50 + i*25 + j  (matches nn.Flatten on NCHW)
    # => h[b,k] = sum_{c,h,w} x[b,c,h,w] * W_eff[c*H*W + h*W + w, k]
    w1_r = w1.reshape(in_channels, 2, 25, HIDDEN)
    w_eff = jnp.einsum("ih,jw,cijk->chwk", ph, pw, w1_r,
                       precision=jax.lax.Precision.HIGHEST)
    w_eff = w_eff.reshape(in_channels * H * W, HIDDEN)

    # --- Lane-pad hidden (64 -> 128) and classes (num_classes -> mult of 128). ---
    k_pad = ((num_classes + LANE - 1) // LANE) * LANE
    w_eff_p = jnp.zeros((in_channels * H * W, LANE), jnp.float32)
    w_eff_p = w_eff_p.at[:, :HIDDEN].set(w_eff)
    b1_p = jnp.zeros((1, LANE), jnp.float32).at[0, :HIDDEN].set(b1)
    w2_p = jnp.zeros((LANE, k_pad), jnp.float32).at[:HIDDEN, :num_classes].set(w2)
    b2_p = jnp.zeros((1, k_pad), jnp.float32).at[0, :num_classes].set(b2)

    return {
        # padded, folded params consumed by the kernel
        "w_eff_p": w_eff_p, "b1_p": b1_p, "w2_p": w2_p, "b2_p": b2_p,
        "num_classes": num_classes,
        # unfolded params kept for the pure-JAX reference
        "w1": w1, "b1": b1, "w2": w2, "b2": b2, "ph": ph, "pw": pw,
    }


def _reference_forward(x, params):
    """Pure-JAX reference mirroring the PyTorch module exactly."""
    B, C, H, W = x.shape
    pooled = jnp.einsum("ih,bchw,jw->bcij", params["ph"], x, params["pw"],
                        precision=jax.lax.Precision.HIGHEST)
    flat = pooled.reshape(B, C * 50)
    h = jnp.maximum(jnp.dot(flat, params["w1"],
                            precision=jax.lax.Precision.HIGHEST) + params["b1"], 0.0)
    return jnp.dot(h, params["w2"],
                   precision=jax.lax.Precision.HIGHEST) + params["b2"]


if __name__ == "__main__":
    B, C, H, W = 2, 4, 6, 50          # small shapes; in_channels = C
    num_classes = 10

    key = jax.random.PRNGKey(0)
    kx, kp = jax.random.split(key)
    x = jax.random.normal(kx, (B, C, H, W), dtype=jnp.float32)
    params = init_params(kp, C, num_classes, H, W)

    out = exit_branch_forward(x, params)
    out = jax.block_until_ready(out)

    ref = _reference_forward(x, params)
    np.testing.assert_allclose(np.asarray(out), np.asarray(ref),
                               rtol=1e-3, atol=1e-4)
    assert out.shape == (B, num_classes)
    print("KERNEL_OK")
</pallas_src>

<mosaic_0001>
module attributes {stable_mosaic.version = 11 : i64} {
  func.func @_exit_branch_kernel(%arg0: memref<2x1200xf32, #tpu.memory_space<vmem>>, %arg1: memref<1200x128xf32, #tpu.memory_space<vmem>>, %arg2: memref<1x128xf32, #tpu.memory_space<vmem>>, %arg3: memref<128x128xf32, #tpu.memory_space<vmem>>, %arg4: memref<1x128xf32, #tpu.memory_space<vmem>>, %arg5: memref<2x128xf32, #tpu.memory_space<vmem>>) attributes {dimension_semantics = [], scalar_prefetch = 0 : i64, scratch_operands = 0 : i64, tpu.core_type = #tpu.core_type<tc>} {
    %c0 = arith.constant 0 : index
    %c0_0 = arith.constant 0 : index
    %0 = vector.load %arg0[%c0, %c0_0] : memref<2x1200xf32, #tpu.memory_space<vmem>>, vector<2x1200xf32>
    %c0_1 = arith.constant 0 : index
    %c0_2 = arith.constant 0 : index
    %1 = vector.load %arg1[%c0_1, %c0_2] : memref<1200x128xf32, #tpu.memory_space<vmem>>, vector<1200x128xf32>
    %cst = arith.constant dense<0.000000e+00> : vector<2x128xf32>
    %2 = tpu.matmul %0, %1, %cst {dimension_numbers = #tpu.dot_dimension_numbers<[1], [0], [0], [1], [0, 0, 1, 1], [], []>, precision = #tpu.contract_precision<fp32>} : vector<2x1200xf32>, vector<1200x128xf32>, vector<2x128xf32> -> vector<2x128xf32>
    %c0_3 = arith.constant 0 : index
    %c0_4 = arith.constant 0 : index
    %3 = vector.load %arg2[%c0_3, %c0_4] : memref<1x128xf32, #tpu.memory_space<vmem>>, vector<1x128xf32>
    %4 = vector.broadcast %3 : vector<1x128xf32> to vector<2x128xf32>
    %5 = arith.addf %2, %4 : vector<2x128xf32>
    %cst_5 = arith.constant 0.000000e+00 : f32
    %6 = vector.broadcast %cst_5 : f32 to vector<2x128xf32>
    %7 = arith.maximumf %5, %6 : vector<2x128xf32>
    %c0_6 = arith.constant 0 : index
    %c0_7 = arith.constant 0 : index
    %8 = vector.load %arg3[%c0_6, %c0_7] : memref<128x128xf32, #tpu.memory_space<vmem>>, vector<128x128xf32>
    %cst_8 = arith.constant dense<0.000000e+00> : vector<2x128xf32>
    %9 = tpu.matmul %7, %8, %cst_8 {dimension_numbers = #tpu.dot_dimension_numbers<[1], [0], [0], [1], [0, 0, 1, 1], [], []>, precision = #tpu.contract_precision<fp32>} : vector<2x128xf32>, vector<128x128xf32>, vector<2x128xf32> -> vector<2x128xf32>
    %c0_9 = arith.constant 0 : index
    %c0_10 = arith.constant 0 : index
    %10 = vector.load %arg4[%c0_9, %c0_10] : memref<1x128xf32, #tpu.memory_space<vmem>>, vector<1x128xf32>
    %11 = vector.broadcast %10 : vector<1x128xf32> to vector<2x128xf32>
    %12 = arith.addf %9, %11 : vector<2x128xf32>
    %c0_11 = arith.constant 0 : index
    %c0_12 = arith.constant 0 : index
    %13 = vector.load %arg5[%c0_11, %c0_12] : memref<2x128xf32, #tpu.memory_space<vmem>>, vector<2x128xf32>
    tpu.vector_store %arg5[%c0_11, %c0_12], %12 {strides = array<i32>} : memref<2x128xf32, #tpu.memory_space<vmem>>, vector<2x128xf32>,
    return
  }
}

</mosaic_0001>

<llo_original>
// kernel: tpu_custom_call.1
$region0: #{tpu_custom_call.1}
  #allocation0 [shape = 'u32[]', space=smem, size = 0x4, offset = 0x4, fixed_abs, tag = 'smem constant byte address 0x4 - core index']
  #allocation1 [shape = 'u32[144,128]{1,0:T(1,128)}', space=vmem, size = 0x12000, scoped, tag = 'internal scratch']
  %s0 = inlined_call_operand.hbm [shape: f32[2,1200], index: 0, kind: input, shape index: {}]
  %s1 = inlined_call_operand.hbm [shape: f32[1200,128], index: 1, kind: input, shape index: {}]
  %s2 = inlined_call_operand.vmem [shape: f32[1,128], index: 2, kind: input, shape index: {}]
  %s3 = inlined_call_operand.hbm [shape: f32[128,128], index: 3, kind: input, shape index: {}]
  %s4 = inlined_call_operand.vmem [shape: f32[1,128], index: 4, kind: input, shape index: {}]
  %s5 = inlined_call_operand.hbm [shape: f32[2,128], index: 5, kind: output, shape index: {}]
  %s6 = sld [smem:[#allocation0]]
  $region42: #{tpu_custom_call.1} parent=0
    _
  %s8 = ssub.s32 1, %s6
  %s9 = scalar_select 0, %s8, %s6
  $region1: #{tpu_custom_call.1} parent=0
    #allocation2 [shape = 'u8[10240]{0}', space=vmem, size = 0x2800, scoped, tag = 'input window, operand 0, single buffered']
    #allocation3 [shape = 's32[1]{0}', space=sflag, size = 0x4, scoped, tag = 'scoped memory for tpu_custom_call.1']
    #allocation4 [shape = 's32[1]{0}', space=sflag, size = 0x4, scoped, tag = 'scoped memory for tpu_custom_call.1']
    #allocation5 [shape = 'u8[614400]{0}', space=vmem, size = 0x96000, scoped, tag = 'input window, operand 1, single buffered']
    #allocation6 [shape = 's32[1]{0}', space=sflag, size = 0x4, scoped, tag = 'scoped memory for tpu_custom_call.1']
    #allocation7 [shape = 'u8[65536]{0}', space=vmem, size = 0x10000, scoped, tag = 'input window, operand 3, single buffered']
    #allocation8 [shape = 'u8[1024]{0}', space=vmem, size = 0x400, scoped, tag = 'output window, operand 0, single buffered']
    %10 = vsyncpa [#allocation3], 0
    %11 = vsyncpa [#allocation6], 0
    %12 = vsyncpa [#allocation4], 0
    // Predicated region
    $region2: #{tpu_custom_call.1} parent=1 // pred_check
      _
    $region3: #{tpu_custom_call.1} parent=1 // pred_check_branch
      %14 = sbr.rel (0) target = $region5
    $region4: #{tpu_custom_call.1} parent=1 // pred_region
      %s16 = ssub.s32 320, 320
      %17 = vsyncadd [#allocation3], %s16
      %s19 = sshll.u32 [#allocation2], 4
      %s20 = int_to_ptr.vmem [resolvable:$true] %s19
      %22 = dma.hbm_to_vmem [thread:$0]  %s0, 320, %s20, [#allocation3]
    $region5: #{tpu_custom_call.1} parent=1 // pred_fallthru
      _
    // Predicated region
    $region6: #{tpu_custom_call.1} parent=1 // pred_check
      _
    $region7: #{tpu_custom_call.1} parent=1 // pred_check_branch
      %24 = sbr.rel (0) target = $region9
    $region8: #{tpu_custom_call.1} parent=1 // pred_region
      %s26 = ssub.s32 19200, 19200
      %27 = vsyncadd [#allocation6], %s26
      %s28 = sshll.u32 [#allocation5], 4
      %s29 = int_to_ptr.vmem [resolvable:$true] %s28
      %34 = dma.hbm_to_vmem [thread:$0]  %s1, 19200, %s29, [#allocation6], 128, 128, 8
    $region9: #{tpu_custom_call.1} parent=1 // pred_fallthru
      _
    // Predicated region
    $region10: #{tpu_custom_call.1} parent=1 // pred_check
      _
    $region11: #{tpu_custom_call.1} parent=1 // pred_check_branch
      %36 = sbr.rel (0) target = $region13
    $region12: #{tpu_custom_call.1} parent=1 // pred_region
      _
    $region13: #{tpu_custom_call.1} parent=1 // pred_fallthru
      _
    // Predicated region
    $region14: #{tpu_custom_call.1} parent=1 // pred_check
      _
    $region15: #{tpu_custom_call.1} parent=1 // pred_check_branch
      %38 = sbr.rel (0) target = $region17
    $region16: #{tpu_custom_call.1} parent=1 // pred_region
      %s40 = ssub.s32 2048, 2048
      %41 = vsyncadd [#allocation6], %s40
      %s42 = sshll.u32 [#allocation7], 4
      %s43 = int_to_ptr.vmem [resolvable:$true] %s42
      %48 = dma.hbm_to_vmem [thread:$0]  %s3, 2048, %s43, [#allocation6], 128, 128, 8
    $region17: #{tpu_custom_call.1} parent=1 // pred_fallthru
      _
    // Predicated region
    $region18: #{tpu_custom_call.1} parent=1 // pred_check
      _
    $region19: #{tpu_custom_call.1} parent=1 // pred_check_branch
      %50 = sbr.rel (0) target = $region21
    $region20: #{tpu_custom_call.1} parent=1 // pred_region
      _
    $region21: #{tpu_custom_call.1} parent=1 // pred_fallthru
      _
    // Predicated region
    $region22: #{tpu_custom_call.1} parent=1 // pred_check
      _
    $region23: #{tpu_custom_call.1} parent=1 // pred_check_branch
      %52 = sbr.rel (0) target = $region25
    $region24: #{tpu_custom_call.1} parent=1 // pred_region
      %53 = dma.done [#allocation3], 320
    $region25: #{tpu_custom_call.1} parent=1 // pred_fallthru
      _
    // Predicated region
    $region26: #{tpu_custom_call.1} parent=1 // pred_check
      _
    $region27: #{tpu_custom_call.1} parent=1 // pred_check_branch
      %55 = sbr.rel (0) target = $region29
    $region28: #{tpu_custom_call.1} parent=1 // pred_region
      %56 = dma.done [#allocation6], 19200
    $region29: #{tpu_custom_call.1} parent=1 // pred_fallthru
      _
    // Predicated region
    $region30: #{tpu_custom_call.1} parent=1 // pred_check
      _
    $region31: #{tpu_custom_call.1} parent=1 // pred_check_branch
      %58 = sbr.rel (0) target = $region33
    $region32: #{tpu_custom_call.1} parent=1 // pred_region
      %59 = dma.done [#allocation6], 2048
    $region33: #{tpu_custom_call.1} parent=1 // pred_fallthru
      _
    %v60 = vld [vmem:[#allocation2] sm:$0xff]
    %v61 = vld [vmem:[#allocation2 + $0x8] sm:$0xff]
    %v62 = vld [vmem:[#allocation2 + $0x10] sm:$0xf]
    %v63 = vld [vmem:[#allocation5] sm:$0xff]
    %v64 = vld [vmem:[#allocation5 + $0x8] sm:$0xff]
    %v65 = vld [vmem:[#allocation5 + $0x10] sm:$0xff]
    %v66 = vld [vmem:[#allocation5 + $0x18] sm:$0xff]
    %v67 = vld [vmem:[#allocation5 + $0x20] sm:$0xff]
    %v68 = vld [vmem:[#allocation5 + $0x28] sm:$0xff]
    %v69 = vld [vmem:[#allocation5 + $0x30] sm:$0xff]
    %v70 = vld [vmem:[#allocation5 + $0x38] sm:$0xff]
    %v71 = vld [vmem:[#allocation5 + $0x40] sm:$0xff]
    %v72 = vld [vmem:[#allocation5 + $0x48] sm:$0xff]
    %v73 = vld [vmem:[#allocation5 + $0x50] sm:$0xff]
    %v74 = vld [vmem:[#allocation5 + $0x58] sm:$0xff]
    %v75 = vld [vmem:[#allocation5 + $0x60] sm:$0xff]
    %v76 = vld [vmem:[#allocation5 + $0x68] sm:$0xff]
    %v77 = vld [vmem:[#allocation5 + $0x70] sm:$0xff]
    %v78 = vld [vmem:[#allocation5 + $0x78] sm:$0xff]
    %v79 = vld [vmem:[#allocation5 + $0x80] sm:$0xff]
    %v80 = vld [vmem:[#allocation5 + $0x88] sm:$0xff]
    %v81 = vld [vmem:[#allocation5 + $0x90] sm:$0xff]
    %v82 = vld [vmem:[#allocation5 + $0x98] sm:$0xff]
    %v83 = vld [vmem:[#allocation5 + $0xa0] sm:$0xff]
    %v84 = vld [vmem:[#allocation5 + $0xa8] sm:$0xff]
    %v85 = vld [vmem:[#allocation5 + $0xb0] sm:$0xff]
    %v86 = vld [vmem:[#allocation5 + $0xb8] sm:$0xff]
    %v87 = vld [vmem:[#allocation5 + $0xc0] sm:$0xff]
    %v88 = vld [vmem:[#allocation5 + $0xc8] sm:$0xff]
    %v89 = vld [vmem:[#allocation5 + $0xd0] sm:$0xff]
    %v90 = vld [vmem:[#allocation5 + $0xd8] sm:$0xff]
    %v91 = vld [vmem:[#allocation5 + $0xe0] sm:$0xff]
    %v92 = vld [vmem:[#allocation5 + $0xe8] sm:$0xff]
    %v93 = vld [vmem:[#allocation5 + $0xf0] sm:$0xff]
    %v94 = vld [vmem:[#allocation5 + $0xf8] sm:$0xff]
    %v95 = vld [vmem:[#allocation5 + $0x100] sm:$0xff]
    %v96 = vld [vmem:[#allocation5 + $0x108] sm:$0xff]
    %v97 = vld [vmem:[#allocation5 + $0x110] sm:$0xff]
    %v98 = vld [vmem:[#allocation5 + $0x118] sm:$0xff]
    %v99 = vld [vmem:[#allocation5 + $0x120] sm:$0xff]
    %v100 = vld [vmem:[#allocation5 + $0x128] sm:$0xff]
    %v101 = vld [vmem:[#allocation5 + $0x130] sm:$0xff]
    %v102 = vld [vmem:[#allocation5 + $0x138] sm:$0xff]
    %v103 = vld [vmem:[#allocation5 + $0x140] sm:$0xff]
    %v104 = vld [vmem:[#allocation5 + $0x148] sm:$0xff]
    %v105 = vld [vmem:[#allocation5 + $0x150] sm:$0xff]
    %v106 = vld [vmem:[#allocation5 + $0x158] sm:$0xff]
    %v107 = vld [vmem:[#allocation5 + $0x160] sm:$0xff]
    %v108 = vld [vmem:[#allocation5 + $0x168] sm:$0xff]
    %v109 = vld [vmem:[#allocation5 + $0x170] sm:$0xff]
    %v110 = vld [vmem:[#allocation5 + $0x178] sm:$0xff]
    %v111 = vld [vmem:[#allocation5 + $0x180] sm:$0xff]
    %v112 = vld [vmem:[#allocation5 + $0x188] sm:$0xff]
    %v113 = vld [vmem:[#allocation5 + $0x190] sm:$0xff]
    %v114 = vld [vmem:[#allocation5 + $0x198] sm:$0xff]
    %v115 = vld [vmem:[#allocation5 + $0x1a0] sm:$0xff]
    %v116 = vld [vmem:[#allocation5 + $0x1a8] sm:$0xff]
    %v117 = vld [vmem:[#allocation5 + $0x1b0] sm:$0xff]
    %v118 = vld [vmem:[#allocation5 + $0x1b8] sm:$0xff]
    %v119 = vld [vmem:[#allocation5 + $0x1c0] sm:$0xff]
    %v120 = vld [vmem:[#allocation5 + $0x1c8] sm:$0xff]
    %v121 = vld [vmem:[#allocation5 + $0x1d0] sm:$0xff]
    %v122 = vld [vmem:[#allocation5 + $0x1d8] sm:$0xff]
    %v123 = vld [vmem:[#allocation5 + $0x1e0] sm:$0xff]
    %v124 = vld [vmem:[#allocation5 + $0x1e8] sm:$0xff]
    %v125 = vld [vmem:[#allocation5 + $0x1f0] sm:$0xff]
    %v126 = vld [vmem:[#allocation5 + $0x1f8] sm:$0xff]
    %v127 = vld [vmem:[#allocation5 + $0x200] sm:$0xff]
    %v128 = vld [vmem:[#allocation5 + $0x208] sm:$0xff]
    %v129 = vld [vmem:[#allocation5 + $0x210] sm:$0xff]
    %v130 = vld [vmem:[#allocation5 + $0x218] sm:$0xff]
    %v131 = vld [vmem:[#allocation5 + $0x220] sm:$0xff]
    %v132 = vld [vmem:[#allocation5 + $0x228] sm:$0xff]
    %v133 = vld [vmem:[#allocation5 + $0x230] sm:$0xff]
    %v134 = vld [vmem:[#allocation5 + $0x238] sm:$0xff]
    %v135 = vld [vmem:[#allocation5 + $0x240] sm:$0xff]
    %v136 = vld [vmem:[#allocation5 + $0x248] sm:$0xff]
    %v137 = vld [vmem:[#allocation5 + $0x250] sm:$0xff]
    %v138 = vld [vmem:[#allocation5 + $0x258] sm:$0xff]
    %v139 = vld [vmem:[#allocation5 + $0x260] sm:$0xff]
    %v140 = vld [vmem:[#allocation5 + $0x268] sm:$0xff]
    %v141 = vld [vmem:[#allocation5 + $0x270] sm:$0xff]
    %v142 = vld [vmem:[#allocation5 + $0x278] sm:$0xff]
    %v143 = vld [vmem:[#allocation5 + $0x280] sm:$0xff]
    %v144 = vld [vmem:[#allocation5 + $0x288] sm:$0xff]
    %v145 = vld [vmem:[#allocation5 + $0x290] sm:$0xff]
    %v146 = vld [vmem:[#allocation5 + $0x298] sm:$0xff]
    %v147 = vld [vmem:[#allocation5 + $0x2a0] sm:$0xff]
    %v148 = vld [vmem:[#allocation5 + $0x2a8] sm:$0xff]
    %v149 = vld [vmem:[#allocation5 + $0x2b0] sm:$0xff]
    %v150 = vld [vmem:[#allocation5 + $0x2b8] sm:$0xff]
    %v151 = vld [vmem:[#allocation5 + $0x2c0] sm:$0xff]
    %v152 = vld [vmem:[#allocation5 + $0x2c8] sm:$0xff]
    %v153 = vld [vmem:[#allocation5 + $0x2d0] sm:$0xff]
    %v154 = vld [vmem:[#allocation5 + $0x2d8] sm:$0xff]
    %v155 = vld [vmem:[#allocation5 + $0x2e0] sm:$0xff]
    %v156 = vld [vmem:[#allocation5 + $0x2e8] sm:$0xff]
    %v157 = vld [vmem:[#allocation5 + $0x2f0] sm:$0xff]
    %v158 = vld [vmem:[#allocation5 + $0x2f8] sm:$0xff]
    %v159 = vld [vmem:[#allocation5 + $0x300] sm:$0xff]
    %v160 = vld [vmem:[#allocation5 + $0x308] sm:$0xff]
    %v161 = vld [vmem:[#allocation5 + $0x310] sm:$0xff]
    %v162 = vld [vmem:[#allocation5 + $0x318] sm:$0xff]
    %v163 = vld [vmem:[#allocation5 + $0x320] sm:$0xff]
    %v164 = vld [vmem:[#allocation5 + $0x328] sm:$0xff]
    %v165 = vld [vmem:[#allocation5 + $0x330] sm:$0xff]
    %v166 = vld [vmem:[#allocation5 + $0x338] sm:$0xff]
    %v167 = vld [vmem:[#allocation5 + $0x340] sm:$0xff]
    %v168 = vld [vmem:[#allocation5 + $0x348] sm:$0xff]
    %v169 = vld [vmem:[#allocation5 + $0x350] sm:$0xff]
    %v170 = vld [vmem:[#allocation5 + $0x358] sm:$0xff]
    %v171 = vld [vmem:[#allocation5 + $0x360] sm:$0xff]
    %v172 = vld [vmem:[#allocation5 + $0x368] sm:$0xff]
    %v173 = vld [vmem:[#allocation5 + $0x370] sm:$0xff]
    %v174 = vld [vmem:[#allocation5 + $0x378] sm:$0xff]
    %v175 = vld [vmem:[#allocation5 + $0x380] sm:$0xff]
    %v176 = vld [vmem:[#allocation5 + $0x388] sm:$0xff]
    %v177 = vld [vmem:[#allocation5 + $0x390] sm:$0xff]
    %v178 = vld [vmem:[#allocation5 + $0x398] sm:$0xff]
    %v179 = vld [vmem:[#allocation5 + $0x3a0] sm:$0xff]
    %v180 = vld [vmem:[#allocation5 + $0x3a8] sm:$0xff]
    %v181 = vld [vmem:[#allocation5 + $0x3b0] sm:$0xff]
    %v182 = vld [vmem:[#allocation5 + $0x3b8] sm:$0xff]
    %v183 = vld [vmem:[#allocation5 + $0x3c0] sm:$0xff]
    %v184 = vld [vmem:[#allocation5 + $0x3c8] sm:$0xff]
    %v185 = vld [vmem:[#allocation5 + $0x3d0] sm:$0xff]
    %v186 = vld [vmem:[#allocation5 + $0x3d8] sm:$0xff]
    %v187 = vld [vmem:[#allocation5 + $0x3e0] sm:$0xff]
    %v188 = vld [vmem:[#allocation5 + $0x3e8] sm:$0xff]
    %v189 = vld [vmem:[#allocation5 + $0x3f0] sm:$0xff]
    %v190 = vld [vmem:[#allocation5 + $0x3f8] sm:$0xff]
    %v191 = vld [vmem:[#allocation5 + $0x400] sm:$0xff]
    %v192 = vld [vmem:[#allocation5 + $0x408] sm:$0xff]
    %v193 = vld [vmem:[#allocation5 + $0x410] sm:$0xff]
    %v194 = vld [vmem:[#allocation5 + $0x418] sm:$0xff]
    %v195 = vld [vmem:[#allocation5 + $0x420] sm:$0xff]
    %v196 = vld [vmem:[#allocation5 + $0x428] sm:$0xff]
    %v197 = vld [vmem:[#allocation5 + $0x430] sm:$0xff]
    %v198 = vld [vmem:[#allocation5 + $0x438] sm:$0xff]
    %v199 = vld [vmem:[#allocation5 + $0x440] sm:$0xff]
    %v200 = vld [vmem:[#allocation5 + $0x448] sm:$0xff]
    %v201 = vld [vmem:[#allocation5 + $0x450] sm:$0xff]
    %v202 = vld [vmem:[#allocation5 + $0x458] sm:$0xff]
    %v203 = vld [vmem:[#allocation5 + $0x460] sm:$0xff]
    %v204 = vld [vmem:[#allocation5 + $0x468] sm:$0xff]
    %v205 = vld [vmem:[#allocation5 + $0x470] sm:$0xff]
    %v206 = vld [vmem:[#allocation5 + $0x478] sm:$0xff]
    %v207 = vld [vmem:[#allocation5 + $0x480] sm:$0xff]
    %v208 = vld [vmem:[#allocation5 + $0x488] sm:$0xff]
    %v209 = vld [vmem:[#allocation5 + $0x490] sm:$0xff]
    %v210 = vld [vmem:[#allocation5 + $0x498] sm:$0xff]
    %v211 = vld [vmem:[#allocation5 + $0x4a0] sm:$0xff]
    %v212 = vld [vmem:[#allocation5 + $0x4a8] sm:$0xff]
    %v213 = vld [vmem:[%s2] sm:$0x1]
    %v215 = vlaneseq
    %v216 = vshrl.u32 %v215, 7
    %v217 = vsub.s32 0, %v216
    %v218 = vrot.slane %v213, %v217
    %v223 = vcombine.high %v60, %v60
    %v225 = vunpack.c.l.s4 1983009808
    %v226 = vunpack.c.0.s8 %v225
    %v227 = vlaneseq
    %v228 = vshrl.u32 %v227, 7
    %v229 = vsub.s32 %v226, %v228
    %v230 = vrot.slane %v60, %v229
    %v232 = vunpack.c.l.s4 1983009808
    %v233 = vunpack.c.0.s8 %v232
    %v234 = vlaneseq
    %v235 = vshrl.u32 %v234, 7
    %v236 = vsub.s32 %v233, %v235
    %v237 = vrot.slane %v223, %v236
    %v238 = vcombine.high %v230, %v230
    %v239 = vcombine.high %v237, %v237
    %v240 = vcombine.high %v61, %v61
    %v242 = vunpack.c.l.s4 1983009808
    %v243 = vunpack.c.0.s8 %v242
    %v244 = vlaneseq
    %v245 = vshrl.u32 %v244, 7
    %v246 = vsub.s32 %v243, %v245
    %v247 = vrot.slane %v61, %v246
    %v249 = vunpack.c.l.s4 1983009808
    %v250 = vunpack.c.0.s8 %v249
    %v251 = vlaneseq
    %v252 = vshrl.u32 %v251, 7
    %v253 = vsub.s32 %v250, %v252
    %v254 = vrot.slane %v240, %v253
    %v255 = vcombine.high %v247, %v247
    %v256 = vcombine.high %v254, %v254
    %v258 = vunpack.c.l.s4 1983009808
    %v259 = vunpack.c.0.s8 %v258
    %v260 = vlaneseq
    %v261 = vshrl.u32 %v260, 7
    %v262 = vsub.s32 %v259, %v261
    %v263 = vrot.slane %v62, %v262
    %v264 = vcombine.high %v263, %v263
    %vm274 = vcmask 392192
    %v275 = vsel %vm274, %v264, 0
    %277 = vmatprep.subr.mxu0 0.0
    %v278 = vand.u32 %v78, 4294901760
    %279 = vmatpush1.msra.mxu0 %v278
    %280 = vmatprep.subr.mxu0 0.0
    %v281 = vand.u32 %v77, 4294901760
    %282 = vmatpush1.msra.mxu0 %v281
    %283 = vmatprep.subr.mxu0 0.0
    %v284 = vand.u32 %v76, 4294901760
    %285 = vmatpush1.msra.mxu0 %v284
    %286 = vmatprep.subr.mxu0 0.0
    %v287 = vand.u32 %v75, 4294901760
    %288 = vmatpush1.msra.mxu0 %v287
    %289 = vmatprep.subr.mxu0 0.0
    %v290 = vand.u32 %v74, 4294901760
    %291 = vmatpush1.msra.mxu0 %v290
    %292 = vmatprep.subr.mxu0 0.0
    %v293 = vand.u32 %v73, 4294901760
    %294 = vmatpush1.msra.mxu0 %v293
    %295 = vmatprep.subr.mxu0 0.0
    %v296 = vand.u32 %v72, 4294901760
    %297 = vmatpush1.msra.mxu0 %v296
    %298 = vmatprep.subr.mxu0 0.0
    %v299 = vand.u32 %v71, 4294901760
    %300 = vmatpush1.msra.mxu0 %v299
    %301 = vmatprep.subr.mxu0 0.0
    %v302 = vand.u32 %v70, 4294901760
    %303 = vmatpush1.msra.mxu0 %v302
    %304 = vmatprep.subr.mxu0 0.0
    %v305 = vand.u32 %v69, 4294901760
    %306 = vmatpush1.msra.mxu0 %v305
    %307 = vmatprep.subr.mxu0 0.0
    %v308 = vand.u32 %v68, 4294901760
    %309 = vmatpush1.msra.mxu0 %v308
    %310 = vmatprep.subr.mxu0 0.0
    %v311 = vand.u32 %v67, 4294901760
    %312 = vmatpush1.msra.mxu0 %v311
    %313 = vmatprep.subr.mxu0 0.0
    %v314 = vand.u32 %v66, 4294901760
    %315 = vmatpush1.msra.mxu0 %v314
    %316 = vmatprep.subr.mxu0 0.0
    %v317 = vand.u32 %v65, 4294901760
    %318 = vmatpush1.msra.mxu0 %v317
    %319 = vmatprep.subr.mxu0 0.0
    %v320 = vand.u32 %v64, 4294901760
    %321 = vmatpush1.msra.mxu0 %v320
    %322 = vmatprep.subr.mxu0 0.0
    %v323 = vand.u32 %v63, 4294901760
    %324 = vmatpush1.msra.mxu0 %v323
    %325 = vmatprep.subr.mxu0 0.0
    %v326 = vand.u32 %v94, 4294901760
    %327 = vmatpush2.msra.mxu0 %v326
    %328 = vmatprep.subr.mxu0 0.0
    %v329 = vand.u32 %v93, 4294901760
    %330 = vmatpush2.msra.mxu0 %v329
    %331 = vmatprep.subr.mxu0 0.0
    %v332 = vand.u32 %v92, 4294901760
    %333 = vmatpush2.msra.mxu0 %v332
    %334 = vmatprep.subr.mxu0 0.0
    %v335 = vand.u32 %v91, 4294901760
    %336 = vmatpush2.msra.mxu0 %v335
    %337 = vmatprep.subr.mxu0 0.0
    %v338 = vand.u32 %v90, 4294901760
    %339 = vmatpush2.msra.mxu0 %v338
    %340 = vmatprep.subr.mxu0 0.0
    %v341 = vand.u32 %v89, 4294901760
    %342 = vmatpush2.msra.mxu0 %v341
    %343 = vmatprep.subr.mxu0 0.0
    %v344 = vand.u32 %v88, 4294901760
    %345 = vmatpush2.msra.mxu0 %v344
    %346 = vmatprep.subr.mxu0 0.0
    %v347 = vand.u32 %v87, 4294901760
    %348 = vmatpush2.msra.mxu0 %v347
    %349 = vmatprep.subr.mxu0 0.0
    %v350 = vand.u32 %v86, 4294901760
    %351 = vmatpush2.msra.mxu0 %v350
    %352 = vmatprep.subr.mxu0 0.0
    %v353 = vand.u32 %v85, 4294901760
    %354 = vmatpush2.msra.mxu0 %v353
    %355 = vmatprep.subr.mxu0 0.0
    %v356 = vand.u32 %v84, 4294901760
    %357 = vmatpush2.msra.mxu0 %v356
    %358 = vmatprep.subr.mxu0 0.0
    %v359 = vand.u32 %v83, 4294901760
    %360 = vmatpush2.msra.mxu0 %v359
    %361 = vmatprep.subr.mxu0 0.0
    %v362 = vand.u32 %v82, 4294901760
    %363 = vmatpush2.msra.mxu0 %v362
    %364 = vmatprep.subr.mxu0 0.0
    %v365 = vand.u32 %v81, 4294901760
    %366 = vmatpush2.msra.mxu0 %v365
    %367 = vmatprep.subr.mxu0 0.0
    %v368 = vand.u32 %v80, 4294901760
    %369 = vmatpush2.msra.mxu0 %v368
    %370 = vmatprep.subr.mxu0 0.0
    %v371 = vand.u32 %v79, 4294901760
    %372 = vmatpush2.msra.mxu0 %v371
    %v373 = vand.u32 %v238, 4294901760
    %v374 = vsub.f32 %v238, %v373
    %v375 = vand.u32 %v374, 4294901760
    %v376 = vsub.f32 %v374, %v375
    %v377 = vand.u32 %v376, 4294901760
    %378 = vmatprep.mubr.f32.mxu0 %v377
    %v379 = vand.u32 %v230, 4294901760
    %v380 = vsub.f32 %v230, %v379
    %v381 = vand.u32 %v380, 4294901760
    %v382 = vsub.f32 %v380, %v381
    %v383 = vand.u32 %v382, 4294901760
    %384 = vmatmul.mubr.f32.gmra.mxu0 %v383
    %v385 = vpop.f32.mrf.mxu0
    %v386 = vadd.f32 %v218, %v385
    %v387 = vpop.f32.mrf.mxu0
    %388 = vdwg.mxu0
    %389 = vmatprep.subr.mxu0 0.0
    %v390 = vand.u32 %v78, 4294901760
    %v391 = vsub.f32 %v78, %v390
    %v392 = vand.u32 %v391, 4294901760
    %v393 = vsub.f32 %v391, %v392
    %v394 = vand.u32 %v393, 4294901760
    %395 = vmatpush1.msra.mxu0 %v394
    %396 = vmatprep.subr.mxu0 0.0
    %v397 = vand.u32 %v77, 4294901760
    %v398 = vsub.f32 %v77, %v397
    %v399 = vand.u32 %v398, 4294901760
    %v400 = vsub.f32 %v398, %v399
    %v401 = vand.u32 %v400, 4294901760
    %402 = vmatpush1.msra.mxu0 %v401
    %403 = vmatprep.subr.mxu0 0.0
    %v404 = vand.u32 %v76, 4294901760
    %v405 = vsub.f32 %v76, %v404
    %v406 = vand.u32 %v405, 4294901760
    %v407 = vsub.f32 %v405, %v406
    %v408 = vand.u32 %v407, 4294901760
    %409 = vmatpush1.msra.mxu0 %v408
    %410 = vmatprep.subr.mxu0 0.0
    %v411 = vand.u32 %v75, 4294901760
    %v412 = vsub.f32 %v75, %v411
    %v413 = vand.u32 %v412, 4294901760
    %v414 = vsub.f32 %v412, %v413
    %v415 = vand.u32 %v414, 4294901760
    %416 = vmatpush1.msra.mxu0 %v415
    %417 = vmatprep.subr.mxu0 0.0
    %v418 = vand.u32 %v74, 4294901760
    %v419 = vsub.f32 %v74, %v418
    %v420 = vand.u32 %v419, 4294901760
    %v421 = vsub.f32 %v419, %v420
    %v422 = vand.u32 %v421, 4294901760
    %423 = vmatpush1.msra.mxu0 %v422
    %424 = vmatprep.subr.mxu0 0.0
    %v425 = vand.u32 %v73, 4294901760
    %v426 = vsub.f32 %v73, %v425
    %v427 = vand.u32 %v426, 4294901760
    %v428 = vsub.f32 %v426, %v427
    %v429 = vand.u32 %v428, 4294901760
    %430 = vmatpush1.msra.mxu0 %v429
    %431 = vmatprep.subr.mxu0 0.0
    %v432 = vand.u32 %v72, 4294901760
    %v433 = vsub.f32 %v72, %v432
    %v434 = vand.u32 %v433, 4294901760
    %v435 = vsub.f32 %v433, %v434
    %v436 = vand.u32 %v435, 4294901760
    %437 = vmatpush1.msra.mxu0 %v436
    %438 = vmatprep.subr.mxu0 0.0
    %v439 = vand.u32 %v71, 4294901760
    %v440 = vsub.f32 %v71, %v439
    %v441 = vand.u32 %v440, 4294901760
    %v442 = vsub.f32 %v440, %v441
    %v443 = vand.u32 %v442, 4294901760
    %444 = vmatpush1.msra.mxu0 %v443
    %445 = vmatprep.subr.mxu0 0.0
    %v446 = vand.u32 %v70, 4294901760
    %v447 = vsub.f32 %v70, %v446
    %v448 = vand.u32 %v447, 4294901760
    %v449 = vsub.f32 %v447, %v448
    %v450 = vand.u32 %v449, 4294901760
    %451 = vmatpush1.msra.mxu0 %v450
    %452 = vmatprep.subr.mxu0 0.0
    %v453 = vand.u32 %v69, 4294901760
    %v454 = vsub.f32 %v69, %v453
    %v455 = vand.u32 %v454, 4294901760
    %v456 = vsub.f32 %v454, %v455
    %v457 = vand.u32 %v456, 4294901760
    %458 = vmatpush1.msra.mxu0 %v457
    %459 = vmatprep.subr.mxu0 0.0
    %v460 = vand.u32 %v68, 4294901760
    %v461 = vsub.f32 %v68, %v460
    %v462 = vand.u32 %v461, 4294901760
    %v463 = vsub.f32 %v461, %v462
    %v464 = vand.u32 %v463, 4294901760
    %465 = vmatpush1.msra.mxu0 %v464
    %466 = vmatprep.subr.mxu0 0.0
    %v467 = vand.u32 %v67, 4294901760
    %v468 = vsub.f32 %v67, %v467
    %v469 = vand.u32 %v468, 4294901760
    %v470 = vsub.f32 %v468, %v469
    %v471 = vand.u32 %v470, 4294901760
    %472 = vmatpush1.msra.mxu0 %v471
    %473 = vmatprep.subr.mxu0 0.0
    %v474 = vand.u32 %v66, 4294901760
    %v475 = vsub.f32 %v66, %v474
    %v476 = vand.u32 %v475, 4294901760
    %v477 = vsub.f32 %v475, %v476
    %v478 = vand.u32 %v477, 4294901760
    %479 = vmatpush1.msra.mxu0 %v478
    %480 = vmatprep.subr.mxu0 0.0
    %v481 = vand.u32 %v65, 4294901760
    %v482 = vsub.f32 %v65, %v481
    %v483 = vand.u32 %v482, 4294901760
    %v484 = vsub.f32 %v482, %v483
    %v485 = vand.u32 %v484, 4294901760
    %486 = vmatpush1.msra.mxu0 %v485
    %487 = vmatprep.subr.mxu0 0.0
    %v488 = vand.u32 %v64, 4294901760
    %v489 = vsub.f32 %v64, %v488
    %v490 = vand.u32 %v489, 4294901760
    %v491 = vsub.f32 %v489, %v490
    %v492 = vand.u32 %v491, 4294901760
    %493 = vmatpush1.msra.mxu0 %v492
    %494 = vmatprep.subr.mxu0 0.0
    %v495 = vand.u32 %v63, 4294901760
    %v496 = vsub.f32 %v63, %v495
    %v497 = vand.u32 %v496, 4294901760
    %v498 = vsub.f32 %v496, %v497
    %v499 = vand.u32 %v498, 4294901760
    %500 = vmatpush1.msra.mxu0 %v499
    %501 = vmatprep.subr.mxu0 0.0
    %v502 = vand.u32 %v94, 4294901760
    %v503 = vsub.f32 %v94, %v502
    %v504 = vand.u32 %v503, 4294901760
    %v505 = vsub.f32 %v503, %v504
    %v506 = vand.u32 %v505, 4294901760
    %507 = vmatpush2.msra.mxu0 %v506
    %508 = vmatprep.subr.mxu0 0.0
    %v509 = vand.u32 %v93, 4294901760
    %v510 = vsub.f32 %v93, %v509
    %v511 = vand.u32 %v510, 4294901760
    %v512 = vsub.f32 %v510, %v511
    %v513 = vand.u32 %v512, 4294901760
    %514 = vmatpush2.msra.mxu0 %v513
    %515 = vmatprep.subr.mxu0 0.0
    %v516 = vand.u32 %v92, 4294901760
    %v517 = vsub.f32 %v92, %v516
    %v518 = vand.u32 %v517, 4294901760
    %v519 = vsub.f32 %v517, %v518
    %v520 = vand.u32 %v519, 4294901760
    %521 = vmatpush2.msra.mxu0 %v520
    %522 = vmatprep.subr.mxu0 0.0
    %v523 = vand.u32 %v91, 4294901760
    %v524 = vsub.f32 %v91, %v523
    %v525 = vand.u32 %v524, 4294901760
    %v526 = vsub.f32 %v524, %v525
    %v527 = vand.u32 %v526, 4294901760
    %528 = vmatpush2.msra.mxu0 %v527
    %529 = vmatprep.subr.mxu0 0.0
    %v530 = vand.u32 %v90, 4294901760
    %v531 = vsub.f32 %v90, %v530
    %v532 = vand.u32 %v531, 4294901760
    %v533 = vsub.f32 %v531, %v532
    %v534 = vand.u32 %v533, 4294901760
    %535 = vmatpush2.msra.mxu0 %v534
    %536 = vmatprep.subr.mxu0 0.0
    %v537 = vand.u32 %v89, 4294901760
    %v538 = vsub.f32 %v89, %v537
    %v539 = vand.u32 %v538, 4294901760
    %v540 = vsub.f32 %v538, %v539
    %v541 = vand.u32 %v540, 4294901760
    %542 = vmatpush2.msra.mxu0 %v541
    %543 = vmatprep.subr.mxu0 0.0
    %v544 = vand.u32 %v88, 4294901760
    %v545 = vsub.f32 %v88, %v544
    %v546 = vand.u32 %v545, 4294901760
    %v547 = vsub.f32 %v545, %v546
    %v548 = vand.u32 %v547, 4294901760
    %549 = vmatpush2.msra.mxu0 %v548
    %550 = vmatprep.subr.mxu0 0.0
    %v551 = vand.u32 %v87, 4294901760
    %v552 = vsub.f32 %v87, %v551
    %v553 = vand.u32 %v552, 4294901760
    %v554 = vsub.f32 %v552, %v553
    %v555 = vand.u32 %v554, 4294901760
    %556 = vmatpush2.msra.mxu0 %v555
    %557 = vmatprep.subr.mxu0 0.0
    %v558 = vand.u32 %v86, 4294901760
    %v559 = vsub.f32 %v86, %v558
    %v560 = vand.u32 %v559, 4294901760
    %v561 = vsub.f32 %v559, %v560
    %v562 = vand.u32 %v561, 4294901760
    %563 = vmatpush2.msra.mxu0 %v562
    %564 = vmatprep.subr.mxu0 0.0
    %v565 = vand.u32 %v85, 4294901760
    %v566 = vsub.f32 %v85, %v565
    %v567 = vand.u32 %v566, 4294901760
    %v568 = vsub.f32 %v566, %v567
    %v569 = vand.u32 %v568, 4294901760
    %570 = vmatpush2.msra.mxu0 %v569
    %571 = vmatprep.subr.mxu0 0.0
    %v572 = vand.u32 %v84, 4294901760
    %v573 = vsub.f32 %v84, %v572
    %v574 = vand.u32 %v573, 4294901760
    %v575 = vsub.f32 %v573, %v574
    %v576 = vand.u32 %v575, 4294901760
    %577 = vmatpush2.msra.mxu0 %v576
    %578 = vmatprep.subr.mxu0 0.0
    %v579 = vand.u32 %v83, 4294901760
    %v580 = vsub.f32 %v83, %v579
    %v581 = vand.u32 %v580, 4294901760
    %v582 = vsub.f32 %v580, %v581
    %v583 = vand.u32 %v582, 4294901760
    %584 = vmatpush2.msra.mxu0 %v583
    %585 = vmatprep.subr.mxu0 0.0
    %v586 = vand.u32 %v82, 4294901760
    %v587 = vsub.f32 %v82, %v586
    %v588 = vand.u32 %v587, 4294901760
    %v589 = vsub.f32 %v587, %v588
    %v590 = vand.u32 %v589, 4294901760
    %591 = vmatpush2.msra.mxu0 %v590
    %592 = vmatprep.subr.mxu0 0.0
    %v593 = vand.u32 %v81, 4294901760
    %v594 = vsub.f32 %v81, %v593
    %v595 = vand.u32 %v594, 4294901760
    %v596 = vsub.f32 %v594, %v595
    %v597 = vand.u32 %v596, 4294901760
    %598 = vmatpush2.msra.mxu0 %v597
    %599 = vmatprep.subr.mxu0 0.0
    %v600 = vand.u32 %v80, 4294901760
    %v601 = vsub.f32 %v80, %v600
    %v602 = vand.u32 %v601, 4294901760
    %v603 = vsub.f32 %v601, %v602
    %v604 = vand.u32 %v603, 4294901760
    %605 = vmatpush2.msra.mxu0 %v604
    %606 = vmatprep.subr.mxu0 0.0
    %v607 = vand.u32 %v79, 4294901760
    %v608 = vsub.f32 %v79, %v607
    %v609 = vand.u32 %v608, 4294901760
    %v610 = vsub.f32 %v608, %v609
    %v611 = vand.u32 %v610, 4294901760
    %612 = vmatpush2.msra.mxu0 %v611
    %v613 = vand.u32 %v238, 4294901760
    %614 = vmatprep.mubr.f32.mxu0 %v613
    %v615 = vand.u32 %v230, 4294901760
    %616 = vmatmul.mubr.f32.gmra.mxu0 %v615
    %v617 = vpop.f32.mrf.mxu0
    %v618 = vadd.f32 %v386, %v617
    %v619 = vpop.f32.mrf.mxu0
    %620 = vdwg.mxu0
    %621 = vmatprep.subr.mxu0 0.0
    %v622 = vand.u32 %v78, 4294901760
    %v623 = vsub.f32 %v78, %v622
    %624 = vmatpush1.msra.mxu0 %v623
    %625 = vmatprep.subr.mxu0 0.0
    %v626 = vand.u32 %v77, 4294901760
    %v627 = vsub.f32 %v77, %v626
    %628 = vmatpush1.msra.mxu0 %v627
    %629 = vmatprep.subr.mxu0 0.0
    %v630 = vand.u32 %v76, 4294901760
    %v631 = vsub.f32 %v76, %v630
    %632 = vmatpush1.msra.mxu0 %v631
    %633 = vmatprep.subr.mxu0 0.0
    %v634 = vand.u32 %v75, 4294901760
    %v635 = vsub.f32 %v75, %v634
    %636 = vmatpush1.msra.mxu0 %v635
    %637 = vmatprep.subr.mxu0 0.0
    %v638 = vand.u32 %v74, 4294901760
    %v639 = vsub.f32 %v74, %v638
    %640 = vmatpush1.msra.mxu0 %v639
    %641 = vmatprep.subr.mxu0 0.0
    %v642 = vand.u32 %v73, 4294901760
    %v643 = vsub.f32 %v73, %v642
    %644 = vmatpush1.msra.mxu0 %v643
    %645 = vmatprep.subr.mxu0 0.0
    %v646 = vand.u32 %v72, 4294901760
    %v647 = vsub.f32 %v72, %v646
    %648 = vmatpush1.msra.mxu0 %v647
    %649 = vmatprep.subr.mxu0 0.0
    %v650 = vand.u32 %v71, 4294901760
    %v651 = vsub.f32 %v71, %v650
    %652 = vmatpush1.msra.mxu0 %v651
    %653 = vmatprep.subr.mxu0 0.0
    %v654 = vand.u32 %v70, 4294901760
    %v655 = vsub.f32 %v70, %v654
    %656 = vmatpush1.msra.mxu0 %v655
    %657 = vmatprep.subr.mxu0 0.0
    %v658 = vand.u32 %v69, 4294901760
    %v659 = vsub.f32 %v69, %v658
    %660 = vmatpush1.msra.mxu0 %v659
    %661 = vmatprep.subr.mxu0 0.0
    %v662 = vand.u32 %v68, 4294901760
    %v663 = vsub.f32 %v68, %v662
    %664 = vmatpush1.msra.mxu0 %v663
    %665 = vmatprep.subr.mxu0 0.0
    %v666 = vand.u32 %v67, 4294901760
    %v667 = vsub.f32 %v67, %v666
    %668 = vmatpush1.msra.mxu0 %v667
    %669 = vmatprep.subr.mxu0 0.0
    %v670 = vand.u32 %v66, 4294901760
    %v671 = vsub.f32 %v66, %v670
    %672 = vmatpush1.msra.mxu0 %v671
    %673 = vmatprep.subr.mxu0 0.0
    %v674 = vand.u32 %v65, 4294901760
    %v675 = vsub.f32 %v65, %v674
    %676 = vmatpush1.msra.mxu0 %v675
    %677 = vmatprep.subr.mxu0 0.0
    %v678 = vand.u32 %v64, 4294901760
    %v679 = vsub.f32 %v64, %v678
    %680 = vmatpush1.msra.mxu0 %v679
    %681 = vmatprep.subr.mxu0 0.0
    %v682 = vand.u32 %v63, 4294901760
    %v683 = vsub.f32 %v63, %v682
    %684 = vmatpush1.msra.mxu0 %v683
    %685 = vmatprep.subr.mxu0 0.0
    %v686 = vand.u32 %v94, 4294901760
    %v687 = vsub.f32 %v94, %v686
    %688 = vmatpush2.msra.mxu0 %v687
    %689 = vmatprep.subr.mxu0 0.0
    %v690 = vand.u32 %v93, 4294901760
    %v691 = vsub.f32 %v93, %v690
    %692 = vmatpush2.msra.mxu0 %v691
    %693 = vmatprep.subr.mxu0 0.0
    %v694 = vand.u32 %v92, 4294901760
    %v695 = vsub.f32 %v92, %v694
    %696 = vmatpush2.msra.mxu0 %v695
    %697 = vmatprep.subr.mxu0 0.0
    %v698 = vand.u32 %v91, 4294901760
    %v699 = vsub.f32 %v91, %v698
    %700 = vmatpush2.msra.mxu0 %v699
    %701 = vmatprep.subr.mxu0 0.0
    %v702 = vand.u32 %v90, 4294901760
    %v703 = vsub.f32 %v90, %v702
    %704 = vmatpush2.msra.mxu0 %v703
    %705 = vmatprep.subr.mxu0 0.0
    %v706 = vand.u32 %v89, 4294901760
    %v707 = vsub.f32 %v89, %v706
    %708 = vmatpush2.msra.mxu0 %v707
    %709 = vmatprep.subr.mxu0 0.0
    %v710 = vand.u32 %v88, 4294901760
    %v711 = vsub.f32 %v88, %v710
    %712 = vmatpush2.msra.mxu0 %v711
    %713 = vmatprep.subr.mxu0 0.0
    %v714 = vand.u32 %v87, 4294901760
    %v715 = vsub.f32 %v87, %v714
    %716 = vmatpush2.msra.mxu0 %v715
    %717 = vmatprep.subr.mxu0 0.0
    %v718 = vand.u32 %v86, 4294901760
    %v719 = vsub.f32 %v86, %v718
    %720 = vmatpush2.msra.mxu0 %v719
    %721 = vmatprep.subr.mxu0 0.0
    %v722 = vand.u32 %v85, 4294901760
    %v723 = vsub.f32 %v85, %v722
    %724 = vmatpush2.msra.mxu0 %v723
    %725 = vmatprep.subr.mxu0 0.0
    %v726 = vand.u32 %v84, 4294901760
    %v727 = vsub.f32 %v84, %v726
    %728 = vmatpush2.msra.mxu0 %v727
    %729 = vmatprep.subr.mxu0 0.0
    %v730 = vand.u32 %v83, 4294901760
    %v731 = vsub.f32 %v83, %v730
    %732 = vmatpush2.msra.mxu0 %v731
    %733 = vmatprep.subr.mxu0 0.0
    %v734 = vand.u32 %v82, 4294901760
    %v735 = vsub.f32 %v82, %v734
    %736 = vmatpush2.msra.mxu0 %v735
    %737 = vmatprep.subr.mxu0 0.0
    %v738 = vand.u32 %v81, 4294901760
    %v739 = vsub.f32 %v81, %v738
    %740 = vmatpush2.msra.mxu0 %v739
    %741 = vmatprep.subr.mxu0 0.0
    %v742 = vand.u32 %v80, 4294901760
    %v743 = vsub.f32 %v80, %v742
    %744 = vmatpush2.msra.mxu0 %v743
    %745 = vmatprep.subr.mxu0 0.0
    %v746 = vand.u32 %v79, 4294901760
    %v747 = vsub.f32 %v79, %v746
    %748 = vmatpush2.msra.mxu0 %v747
    %v749 = vand.u32 %v238, 4294901760
    %v750 = vsub.f32 %v238, %v749
    %751 = vmatprep.mubr.f32.mxu0 %v750
    %v752 = vand.u32 %v230, 4294901760
    %v753 = vsub.f32 %v230, %v752
    %754 = vmatmul.mubr.f32.gmra.mxu0 %v753
    %v755 = vpop.f32.mrf.mxu0
    %v756 = vadd.f32 %v618, %v755
    %v757 = vpop.f32.mrf.mxu0
    %758 = vdwg.mxu0
    %759 = vmatprep.subr.mxu0 0.0
    %v760 = vand.u32 %v78, 4294901760
    %761 = vmatpush1.msra.mxu0 %v760
    %762 = vmatprep.subr.mxu0 0.0
    %v763 = vand.u32 %v77, 4294901760
    %764 = vmatpush1.msra.mxu0 %v763
    %765 = vmatprep.subr.mxu0 0.0
    %v766 = vand.u32 %v76, 4294901760
    %767 = vmatpush1.msra.mxu0 %v766
    %768 = vmatprep.subr.mxu0 0.0
    %v769 = vand.u32 %v75, 4294901760
    %770 = vmatpush1.msra.mxu0 %v769
    %771 = vmatprep.subr.mxu0 0.0
    %v772 = vand.u32 %v74, 4294901760
    %773 = vmatpush1.msra.mxu0 %v772
    %774 = vmatprep.subr.mxu0 0.0
    %v775 = vand.u32 %v73, 4294901760
    %776 = vmatpush1.msra.mxu0 %v775
    %777 = vmatprep.subr.mxu0 0.0
    %v778 = vand.u32 %v72, 4294901760
    %779 = vmatpush1.msra.mxu0 %v778
    %780 = vmatprep.subr.mxu0 0.0
    %v781 = vand.u32 %v71, 4294901760
    %782 = vmatpush1.msra.mxu0 %v781
    %783 = vmatprep.subr.mxu0 0.0
    %v784 = vand.u32 %v70, 4294901760
    %785 = vmatpush1.msra.mxu0 %v784
    %786 = vmatprep.subr.mxu0 0.0
    %v787 = vand.u32 %v69, 4294901760
    %788 = vmatpush1.msra.mxu0 %v787
    %789 = vmatprep.subr.mxu0 0.0
    %v790 = vand.u32 %v68, 4294901760
    %791 = vmatpush1.msra.mxu0 %v790
    %792 = vmatprep.subr.mxu0 0.0
    %v793 = vand.u32 %v67, 4294901760
    %794 = vmatpush1.msra.mxu0 %v793
    %795 = vmatprep.subr.mxu0 0.0
    %v796 = vand.u32 %v66, 4294901760
    %797 = vmatpush1.msra.mxu0 %v796
    %798 = vmatprep.subr.mxu0 0.0
    %v799 = vand.u32 %v65, 4294901760
    %800 = vmatpush1.msra.mxu0 %v799
    %801 = vmatprep.subr.mxu0 0.0
    %v802 = vand.u32 %v64, 4294901760
    %803 = vmatpush1.msra.mxu0 %v802
    %804 = vmatprep.subr.mxu0 0.0
    %v805 = vand.u32 %v63, 4294901760
    %806 = vmatpush1.msra.mxu0 %v805
    %807 = vmatprep.subr.mxu0 0.0
    %v808 = vand.u32 %v94, 4294901760
    %809 = vmatpush2.msra.mxu0 %v808
    %810 = vmatprep.subr.mxu0 0.0
    %v811 = vand.u32 %v93, 4294901760
    %812 = vmatpush2.msra.mxu0 %v811
    %813 = vmatprep.subr.mxu0 0.0
    %v814 = vand.u32 %v92, 4294901760
    %815 = vmatpush2.msra.mxu0 %v814
    %816 = vmatprep.subr.mxu0 0.0
    %v817 = vand.u32 %v91, 4294901760
    %818 = vmatpush2.msra.mxu0 %v817
    %819 = vmatprep.subr.mxu0 0.0
    %v820 = vand.u32 %v90, 4294901760
    %821 = vmatpush2.msra.mxu0 %v820
    %822 = vmatprep.subr.mxu0 0.0
    %v823 = vand.u32 %v89, 4294901760
    %824 = vmatpush2.msra.mxu0 %v823
    %825 = vmatprep.subr.mxu0 0.0
    %v826 = vand.u32 %v88, 4294901760
    %827 = vmatpush2.msra.mxu0 %v826
    %828 = vmatprep.subr.mxu0 0.0
    %v829 = vand.u32 %v87, 4294901760
    %830 = vmatpush2.msra.mxu0 %v829
    %831 = vmatprep.subr.mxu0 0.0
    %v832 = vand.u32 %v86, 4294901760
    %833 = vmatpush2.msra.mxu0 %v832
    %834 = vmatprep.subr.mxu0 0.0
    %v835 = vand.u32 %v85, 4294901760
    %836 = vmatpush2.msra.mxu0 %v835
    %837 = vmatprep.subr.mxu0 0.0
    %v838 = vand.u32 %v84, 4294901760
    %839 = vmatpush2.msra.mxu0 %v838
    %840 = vmatprep.subr.mxu0 0.0
    %v841 = vand.u32 %v83, 4294901760
    %842 = vmatpush2.msra.mxu0 %v841
    %843 = vmatprep.subr.mxu0 0.0
    %v844 = vand.u32 %v82, 4294901760
    %845 = vmatpush2.msra.mxu0 %v844
    %846 = vmatprep.subr.mxu0 0.0
    %v847 = vand.u32 %v81, 4294901760
    %848 = vmatpush2.msra.mxu0 %v847
    %849 = vmatprep.subr.mxu0 0.0
    %v850 = vand.u32 %v80, 4294901760
    %851 = vmatpush2.msra.mxu0 %v850
    %852 = vmatprep.subr.mxu0 0.0
    %v853 = vand.u32 %v79, 4294901760
    %854 = vmatpush2.msra.mxu0 %v853
    %v855 = vand.u32 %v238, 4294901760
    %v856 = vsub.f32 %v238, %v855
    %v857 = vand.u32 %v856, 4294901760
    %858 = vmatprep.mubr.f32.mxu0 %v857
    %v859 = vand.u32 %v230, 4294901760
    %v860 = vsub.f32 %v230, %v859
    %v861 = vand.u32 %v860, 4294901760
    %862 = vmatmul.mubr.f32.gmra.mxu0 %v861
    %v863 = vpop.f32.mrf.mxu0
    %v864 = vadd.f32 %v756, %v863
    %v865 = vpop.f32.mrf.mxu0
    %866 = vdwg.mxu0
    %867 = vmatprep.subr.mxu0 0.0
    %v868 = vand.u32 %v78, 4294901760
    %v869 = vsub.f32 %v78, %v868
    %v870 = vand.u32 %v869, 4294901760
    %871 = vmatpush1.msra.mxu0 %v870
    %872 = vmatprep.subr.mxu0 0.0
    %v873 = vand.u32 %v77, 4294901760
    %v874 = vsub.f32 %v77, %v873
    %v875 = vand.u32 %v874, 4294901760
    %876 = vmatpush1.msra.mxu0 %v875
    %877 = vmatprep.subr.mxu0 0.0
    %v878 = vand.u32 %v76, 4294901760
    %v879 = vsub.f32 %v76, %v878
    %v880 = vand.u32 %v879, 4294901760
    %881 = vmatpush1.msra.mxu0 %v880
    %882 = vmatprep.subr.mxu0 0.0
    %v883 = vand.u32 %v75, 4294901760
    %v884 = vsub.f32 %v75, %v883
    %v885 = vand.u32 %v884, 4294901760
    %886 = vmatpush1.msra.mxu0 %v885
    %887 = vmatprep.subr.mxu0 0.0
    %v888 = vand.u32 %v74, 4294901760
    %v889 = vsub.f32 %v74, %v888
    %v890 = vand.u32 %v889, 4294901760
    %891 = vmatpush1.msra.mxu0 %v890
    %892 = vmatprep.subr.mxu0 0.0
    %v893 = vand.u32 %v73, 4294901760
    %v894 = vsub.f32 %v73, %v893
    %v895 = vand.u32 %v894, 4294901760
    %896 = vmatpush1.msra.mxu0 %v895
    %897 = vmatprep.subr.mxu0 0.0
    %v898 = vand.u32 %v72, 4294901760
    %v899 = vsub.f32 %v72, %v898
    %v900 = vand.u32 %v899, 4294901760
    %901 = vmatpush1.msra.mxu0 %v900
    %902 = vmatprep.subr.mxu0 0.0
    %v903 = vand.u32 %v71, 4294901760
    %v904 = vsub.f32 %v71, %v903
    %v905 = vand.u32 %v904, 4294901760
    %906 = vmatpush1.msra.mxu0 %v905
    %907 = vmatprep.subr.mxu0 0.0
    %v908 = vand.u32 %v70, 4294901760
    %v909 = vsub.f32 %v70, %v908
    %v910 = vand.u32 %v909, 4294901760
    %911 = vmatpush1.msra.mxu0 %v910
    %912 = vmatprep.subr.mxu0 0.0
    %v913 = vand.u32 %v69, 4294901760
    %v914 = vsub.f32 %v69, %v913
    %v915 = vand.u32 %v914, 4294901760
    %916 = vmatpush1.msra.mxu0 %v915
    %917 = vmatprep.subr.mxu0 0.0
    %v918 = vand.u32 %v68, 4294901760
    %v919 = vsub.f32 %v68, %v918
    %v920 = vand.u32 %v919, 4294901760
    %921 = vmatpush1.msra.mxu0 %v920
    %922 = vmatprep.subr.mxu0 0.0
    %v923 = vand.u32 %v67, 4294901760
    %v924 = vsub.f32 %v67, %v923
    %v925 = vand.u32 %v924, 4294901760
    %926 = vmatpush1.msra.mxu0 %v925
    %927 = vmatprep.subr.mxu0 0.0
    %v928 = vand.u32 %v66, 4294901760
    %v929 = vsub.f32 %v66, %v928
    %v930 = vand.u32 %v929, 4294901760
    %931 = vmatpush1.msra.mxu0 %v930
    %932 = vmatprep.subr.mxu0 0.0
    %v933 = vand.u32 %v65, 4294901760
    %v934 = vsub.f32 %v65, %v933
    %v935 = vand.u32 %v934, 4294901760
    %936 = vmatpush1.msra.mxu0 %v935
    %937 = vmatprep.subr.mxu0 0.0
    %v938 = vand.u32 %v64, 4294901760
    %v939 = vsub.f32 %v64, %v938
    %v940 = vand.u32 %v939, 4294901760
    %941 = vmatpush1.msra.mxu0 %v940
    %942 = vmatprep.subr.mxu0 0.0
    %v943 = vand.u32 %v63, 4294901760
    %v944 = vsub.f32 %v63, %v943
    %v945 = vand.u32 %v944, 4294901760
    %946 = vmatpush1.msra.mxu0 %v945
    %947 = vmatprep.subr.mxu0 0.0
    %v948 = vand.u32 %v94, 4294901760
    %v949 = vsub.f32 %v94, %v948
    %v950 = vand.u32 %v949, 4294901760
    %951 = vmatpush2.msra.mxu0 %v950
    %952 = vmatprep.subr.mxu0 0.0
    %v953 = vand.u32 %v93, 4294901760
    %v954 = vsub.f32 %v93, %v953
    %v955 = vand.u32 %v954, 4294901760
    %956 = vmatpush2.msra.mxu0 %v955
    %957 = vmatprep.subr.mxu0 0.0
    %v958 = vand.u32 %v92, 4294901760
    %v959 = vsub.f32 %v92, %v958
    %v960 = vand.u32 %v959, 4294901760
    %961 = vmatpush2.msra.mxu0 %v960
    %962 = vmatprep.subr.mxu0 0.0
    %v963 = vand.u32 %v91, 4294901760
    %v964 = vsub.f32 %v91, %v963
    %v965 = vand.u32 %v964, 4294901760
    %966 = vmatpush2.msra.mxu0 %v965
    %967 = vmatprep.subr.mxu0 0.0
    %v968 = vand.u32 %v90, 4294901760
    %v969 = vsub.f32 %v90, %v968
    %v970 = vand.u32 %v969, 4294901760
    %971 = vmatpush2.msra.mxu0 %v970
    %972 = vmatprep.subr.mxu0 0.0
    %v973 = vand.u32 %v89, 4294901760
    %v974 = vsub.f32 %v89, %v973
    %v975 = vand.u32 %v974, 4294901760
    %976 = vmatpush2.msra.mxu0 %v975
    %977 = vmatprep.subr.mxu0 0.0
    %v978 = vand.u32 %v88, 4294901760
    %v979 = vsub.f32 %v88, %v978
    %v980 = vand.u32 %v979, 4294901760
    %981 = vmatpush2.msra.mxu0 %v980
    %982 = vmatprep.subr.mxu0 0.0
    %v983 = vand.u32 %v87, 4294901760
    %v984 = vsub.f32 %v87, %v983
    %v985 = vand.u32 %v984, 4294901760
    %986 = vmatpush2.msra.mxu0 %v985
    %987 = vmatprep.subr.mxu0 0.0
    %v988 = vand.u32 %v86, 4294901760
    %v989 = vsub.f32 %v86, %v988
    %v990 = vand.u32 %v989, 4294901760
    %991 = vmatpush2.msra.mxu0 %v990
    %992 = vmatprep.subr.mxu0 0.0
    %v993 = vand.u32 %v85, 4294901760
    %v994 = vsub.f32 %v85, %v993
    %v995 = vand.u32 %v994, 4294901760
    %996 = vmatpush2.msra.mxu0 %v995
    %997 = vmatprep.subr.mxu0 0.0
    %v998 = vand.u32 %v84, 4294901760
    %v999 = vsub.f32 %v84, %v998
    %v1000 = vand.u32 %v999, 4294901760
    %1001 = vmatpush2.msra.mxu0 %v1000
    %1002 = vmatprep.subr.mxu0 0.0
    %v1003 = vand.u32 %v83, 4294901760
    %v1004 = vsub.f32 %v83, %v1003
    %v1005 = vand.u32 %v1004, 4294901760
    %1006 = vmatpush2.msra.mxu0 %v1005
    %1007 = vmatprep.subr.mxu0 0.0
    %v1008 = vand.u32 %v82, 4294901760
    %v1009 = vsub.f32 %v82, %v1008
    %v1010 = vand.u32 %v1009, 4294901760
    %1011 = vmatpush2.msra.mxu0 %v1010
    %1012 = vmatprep.subr.mxu0 0.0
    %v1013 = vand.u32 %v81, 4294901760
    %v1014 = vsub.f32 %v81, %v1013
    %v1015 = vand.u32 %v1014, 4294901760
    %1016 = vmatpush2.msra.mxu0 %v1015
    %1017 = vmatprep.subr.mxu0 0.0
    %v1018 = vand.u32 %v80, 4294901760
    %v1019 = vsub.f32 %v80, %v1018
    %v1020 = vand.u32 %v1019, 4294901760
    %1021 = vmatpush2.msra.mxu0 %v1020
    %1022 = vmatprep.subr.mxu0 0.0
    %v1023 = vand.u32 %v79, 4294901760
    %v1024 = vsub.f32 %v79, %v1023
    %v1025 = vand.u32 %v1024, 4294901760
    %1026 = vmatpush2.msra.mxu0 %v1025
    %v1027 = vand.u32 %v238, 4294901760
    %1028 = vmatprep.mubr.f32.mxu0 %v1027
    %v1029 = vand.u32 %v230, 4294901760
    %1030 = vmatmul.mubr.f32.gmra.mxu0 %v1029
    %v1031 = vpop.f32.mrf.mxu0
    %v1032 = vadd.f32 %v864, %v1031
    %v1033 = vpop.f32.mrf.mxu0
    %1034 = vdwg.mxu0
    %1035 = vmatprep.subr.mxu0 0.0
    %v1036 = vand.u32 %v78, 4294901760
    %1037 = vmatpush1.msra.mxu0 %v1036
    %1038 = vmatprep.subr.mxu0 0.0
    %v1039 = vand.u32 %v77, 4294901760
    %1040 = vmatpush1.msra.mxu0 %v1039
    %1041 = vmatprep.subr.mxu0 0.0
    %v1042 = vand.u32 %v76, 4294901760
    %1043 = vmatpush1.msra.mxu0 %v1042
    %1044 = vmatprep.subr.mxu0 0.0
    %v1045 = vand.u32 %v75, 4294901760
    %1046 = vmatpush1.msra.mxu0 %v1045
    %1047 = vmatprep.subr.mxu0 0.0
    %v1048 = vand.u32 %v74, 4294901760
    %1049 = vmatpush1.msra.mxu0 %v1048
    %1050 = vmatprep.subr.mxu0 0.0
    %v1051 = vand.u32 %v73, 4294901760
    %1052 = vmatpush1.msra.mxu0 %v1051
    %1053 = vmatprep.subr.mxu0 0.0
    %v1054 = vand.u32 %v72, 4294901760
    %1055 = vmatpush1.msra.mxu0 %v1054
    %1056 = vmatprep.subr.mxu0 0.0
    %v1057 = vand.u32 %v71, 4294901760
    %1058 = vmatpush1.msra.mxu0 %v1057
    %1059 = vmatprep.subr.mxu0 0.0
    %v1060 = vand.u32 %v70, 4294901760
    %1061 = vmatpush1.msra.mxu0 %v1060
    %1062 = vmatprep.subr.mxu0 0.0
    %v1063 = vand.u32 %v69, 4294901760
    %1064 = vmatpush1.msra.mxu0 %v1063
    %1065 = vmatprep.subr.mxu0 0.0
    %v1066 = vand.u32 %v68, 4294901760
    %1067 = vmatpush1.msra.mxu0 %v1066
    %1068 = vmatprep.subr.mxu0 0.0
    %v1069 = vand.u32 %v67, 4294901760
    %1070 = vmatpush1.msra.mxu0 %v1069
    %1071 = vmatprep.subr.mxu0 0.0
    %v1072 = vand.u32 %v66, 4294901760
    %1073 = vmatpush1.msra.mxu0 %v1072
    %1074 = vmatprep.subr.mxu0 0.0
    %v1075 = vand.u32 %v65, 4294901760
    %1076 = vmatpush1.msra.mxu0 %v1075
    %1077 = vmatprep.subr.mxu0 0.0
    %v1078 = vand.u32 %v64, 4294901760
    %1079 = vmatpush1.msra.mxu0 %v1078
    %1080 = vmatprep.subr.mxu0 0.0
    %v1081 = vand.u32 %v63, 4294901760
    %1082 = vmatpush1.msra.mxu0 %v1081
    %1083 = vmatprep.subr.mxu0 0.0
    %v1084 = vand.u32 %v94, 4294901760
    %1085 = vmatpush2.msra.mxu0 %v1084
    %1086 = vmatprep.subr.mxu0 0.0
    %v1087 = vand.u32 %v93, 4294901760
    %1088 = vmatpush2.msra.mxu0 %v1087
    %1089 = vmatprep.subr.mxu0 0.0
    %v1090 = vand.u32 %v92, 4294901760
    %1091 = vmatpush2.msra.mxu0 %v1090
    %1092 = vmatprep.subr.mxu0 0.0
    %v1093 = vand.u32 %v91, 4294901760
    %1094 = vmatpush2.msra.mxu0 %v1093
    %1095 = vmatprep.subr.mxu0 0.0
    %v1096 = vand.u32 %v90, 4294901760
    %1097 = vmatpush2.msra.mxu0 %v1096
    %1098 = vmatprep.subr.mxu0 0.0
    %v1099 = vand.u32 %v89, 4294901760
    %1100 = vmatpush2.msra.mxu0 %v1099
    %1101 = vmatprep.subr.mxu0 0.0
    %v1102 = vand.u32 %v88, 4294901760
    %1103 = vmatpush2.msra.mxu0 %v1102
    %1104 = vmatprep.subr.mxu0 0.0
    %v1105 = vand.u32 %v87, 4294901760
    %1106 = vmatpush2.msra.mxu0 %v1105
    %1107 = vmatprep.subr.mxu0 0.0
    %v1108 = vand.u32 %v86, 4294901760
    %1109 = vmatpush2.msra.mxu0 %v1108
    %1110 = vmatprep.subr.mxu0 0.0
    %v1111 = vand.u32 %v85, 4294901760
    %1112 = vmatpush2.msra.mxu0 %v1111
    %1113 = vmatprep.subr.mxu0 0.0
    %v1114 = vand.u32 %v84, 4294901760
    %1115 = vmatpush2.msra.mxu0 %v1114
    %1116 = vmatprep.subr.mxu0 0.0
    %v1117 = vand.u32 %v83, 4294901760
    %1118 = vmatpush2.msra.mxu0 %v1117
    %1119 = vmatprep.subr.mxu0 0.0
    %v1120 = vand.u32 %v82, 4294901760
    %1121 = vmatpush2.msra.mxu0 %v1120
    %1122 = vmatprep.subr.mxu0 0.0
    %v1123 = vand.u32 %v81, 4294901760
    %1124 = vmatpush2.msra.mxu0 %v1123
    %1125 = vmatprep.subr.mxu0 0.0
    %v1126 = vand.u32 %v80, 4294901760
    %1127 = vmatpush2.msra.mxu0 %v1126
    %1128 = vmatprep.subr.mxu0 0.0
    %v1129 = vand.u32 %v79, 4294901760
    %1130 = vmatpush2.msra.mxu0 %v1129
    %v1131 = vand.u32 %v238, 4294901760
    %1132 = vmatprep.mubr.f32.mxu0 %v1131
    %v1133 = vand.u32 %v230, 4294901760
    %1134 = vmatmul.mubr.f32.gmra.mxu0 %v1133
    %v1135 = vpop.f32.mrf.mxu0
    %v1136 = vadd.f32 %v1032, %v1135
    %v1137 = vpop.f32.mrf.mxu0
    %1138 = vdwg.mxu0
    %1139 = vmatprep.subr.mxu0 0.0
    %v1140 = vand.u32 %v110, 4294901760
    %1141 = vmatpush1.msra.mxu0 %v1140
    %1142 = vmatprep.subr.mxu0 0.0
    %v1143 = vand.u32 %v109, 4294901760
    %1144 = vmatpush1.msra.mxu0 %v1143
    %1145 = vmatprep.subr.mxu0 0.0
    %v1146 = vand.u32 %v108, 4294901760
    %1147 = vmatpush1.msra.mxu0 %v1146
    %1148 = vmatprep.subr.mxu0 0.0
    %v1149 = vand.u32 %v107, 4294901760
    %1150 = vmatpush1.msra.mxu0 %v1149
    %1151 = vmatprep.subr.mxu0 0.0
    %v1152 = vand.u32 %v106, 4294901760
    %1153 = vmatpush1.msra.mxu0 %v1152
    %1154 = vmatprep.subr.mxu0 0.0
    %v1155 = vand.u32 %v105, 4294901760
    %1156 = vmatpush1.msra.mxu0 %v1155
    %1157 = vmatprep.subr.mxu0 0.0
    %v1158 = vand.u32 %v104, 4294901760
    %1159 = vmatpush1.msra.mxu0 %v1158
    %1160 = vmatprep.subr.mxu0 0.0
    %v1161 = vand.u32 %v103, 4294901760
    %1162 = vmatpush1.msra.mxu0 %v1161
    %1163 = vmatprep.subr.mxu0 0.0
    %v1164 = vand.u32 %v102, 4294901760
    %1165 = vmatpush1.msra.mxu0 %v1164
    %1166 = vmatprep.subr.mxu0 0.0
    %v1167 = vand.u32 %v101, 4294901760
    %1168 = vmatpush1.msra.mxu0 %v1167
    %1169 = vmatprep.subr.mxu0 0.0
    %v1170 = vand.u32 %v100, 4294901760
    %1171 = vmatpush1.msra.mxu0 %v1170
    %1172 = vmatprep.subr.mxu0 0.0
    %v1173 = vand.u32 %v99, 4294901760
    %1174 = vmatpush1.msra.mxu0 %v1173
    %1175 = vmatprep.subr.mxu0 0.0
    %v1176 = vand.u32 %v98, 4294901760
    %1177 = vmatpush1.msra.mxu0 %v1176
    %1178 = vmatprep.subr.mxu0 0.0
    %v1179 = vand.u32 %v97, 4294901760
    %1180 = vmatpush1.msra.mxu0 %v1179
    %1181 = vmatprep.subr.mxu0 0.0
    %v1182 = vand.u32 %v96, 4294901760
    %1183 = vmatpush1.msra.mxu0 %v1182
    %1184 = vmatprep.subr.mxu0 0.0
    %v1185 = vand.u32 %v95, 4294901760
    %1186 = vmatpush1.msra.mxu0 %v1185
    %1187 = vmatprep.subr.mxu0 0.0
    %v1188 = vand.u32 %v126, 4294901760
    %1189 = vmatpush2.msra.mxu0 %v1188
    %1190 = vmatprep.subr.mxu0 0.0
    %v1191 = vand.u32 %v125, 4294901760
    %1192 = vmatpush2.msra.mxu0 %v1191
    %1193 = vmatprep.subr.mxu0 0.0
    %v1194 = vand.u32 %v124, 4294901760
    %1195 = vmatpush2.msra.mxu0 %v1194
    %1196 = vmatprep.subr.mxu0 0.0
    %v1197 = vand.u32 %v123, 4294901760
    %1198 = vmatpush2.msra.mxu0 %v1197
    %1199 = vmatprep.subr.mxu0 0.0
    %v1200 = vand.u32 %v122, 4294901760
    %1201 = vmatpush2.msra.mxu0 %v1200
    %1202 = vmatprep.subr.mxu0 0.0
    %v1203 = vand.u32 %v121, 4294901760
    %1204 = vmatpush2.msra.mxu0 %v1203
    %1205 = vmatprep.subr.mxu0 0.0
    %v1206 = vand.u32 %v120, 4294901760
    %1207 = vmatpush2.msra.mxu0 %v1206
    %1208 = vmatprep.subr.mxu0 0.0
    %v1209 = vand.u32 %v119, 4294901760
    %1210 = vmatpush2.msra.mxu0 %v1209
    %1211 = vmatprep.subr.mxu0 0.0
    %v1212 = vand.u32 %v118, 4294901760
    %1213 = vmatpush2.msra.mxu0 %v1212
    %1214 = vmatprep.subr.mxu0 0.0
    %v1215 = vand.u32 %v117, 4294901760
    %1216 = vmatpush2.msra.mxu0 %v1215
    %1217 = vmatprep.subr.mxu0 0.0
    %v1218 = vand.u32 %v116, 4294901760
    %1219 = vmatpush2.msra.mxu0 %v1218
    %1220 = vmatprep.subr.mxu0 0.0
    %v1221 = vand.u32 %v115, 4294901760
    %1222 = vmatpush2.msra.mxu0 %v1221
    %1223 = vmatprep.subr.mxu0 0.0
    %v1224 = vand.u32 %v114, 4294901760
    %1225 = vmatpush2.msra.mxu0 %v1224
    %1226 = vmatprep.subr.mxu0 0.0
    %v1227 = vand.u32 %v113, 4294901760
    %1228 = vmatpush2.msra.mxu0 %v1227
    %1229 = vmatprep.subr.mxu0 0.0
    %v1230 = vand.u32 %v112, 4294901760
    %1231 = vmatpush2.msra.mxu0 %v1230
    %1232 = vmatprep.subr.mxu0 0.0
    %v1233 = vand.u32 %v111, 4294901760
    %1234 = vmatpush2.msra.mxu0 %v1233
    %v1235 = vand.u32 %v239, 4294901760
    %v1236 = vsub.f32 %v239, %v1235
    %v1237 = vand.u32 %v1236, 4294901760
    %v1238 = vsub.f32 %v1236, %v1237
    %v1239 = vand.u32 %v1238, 4294901760
    %1240 = vmatprep.mubr.f32.mxu0 %v1239
    %v1241 = vand.u32 %v237, 4294901760
    %v1242 = vsub.f32 %v237, %v1241
    %v1243 = vand.u32 %v1242, 4294901760
    %v1244 = vsub.f32 %v1242, %v1243
    %v1245 = vand.u32 %v1244, 4294901760
    %1246 = vmatmul.mubr.f32.gmra.mxu0 %v1245
    %v1247 = vpop.f32.mrf.mxu0
    %v1248 = vadd.f32 %v1136, %v1247
    %v1249 = vpop.f32.mrf.mxu0
    %1250 = vdwg.mxu0
    %1251 = vmatprep.subr.mxu0 0.0
    %v1252 = vand.u32 %v110, 4294901760
    %v1253 = vsub.f32 %v110, %v1252
    %v1254 = vand.u32 %v1253, 4294901760
    %v1255 = vsub.f32 %v1253, %v1254
    %v1256 = vand.u32 %v1255, 4294901760
    %1257 = vmatpush1.msra.mxu0 %v1256
    %1258 = vmatprep.subr.mxu0 0.0
    %v1259 = vand.u32 %v109, 4294901760
    %v1260 = vsub.f32 %v109, %v1259
    %v1261 = vand.u32 %v1260, 4294901760
    %v1262 = vsub.f32 %v1260, %v1261
    %v1263 = vand.u32 %v1262, 4294901760
    %1264 = vmatpush1.msra.mxu0 %v1263
    %1265 = vmatprep.subr.mxu0 0.0
    %v1266 = vand.u32 %v108, 4294901760
    %v1267 = vsub.f32 %v108, %v1266
    %v1268 = vand.u32 %v1267, 4294901760
    %v1269 = vsub.f32 %v1267, %v1268
    %v1270 = vand.u32 %v1269, 4294901760
    %1271 = vmatpush1.msra.mxu0 %v1270
    %1272 = vmatprep.subr.mxu0 0.0
    %v1273 = vand.u32 %v107, 4294901760
    %v1274 = vsub.f32 %v107, %v1273
    %v1275 = vand.u32 %v1274, 4294901760
    %v1276 = vsub.f32 %v1274, %v1275
    %v1277 = vand.u32 %v1276, 4294901760
    %1278 = vmatpush1.msra.mxu0 %v1277
    %1279 = vmatprep.subr.mxu0 0.0
    %v1280 = vand.u32 %v106, 4294901760
    %v1281 = vsub.f32 %v106, %v1280
    %v1282 = vand.u32 %v1281, 4294901760
    %v1283 = vsub.f32 %v1281, %v1282
    %v1284 = vand.u32 %v1283, 4294901760
    %1285 = vmatpush1.msra.mxu0 %v1284
    %1286 = vmatprep.subr.mxu0 0.0
    %v1287 = vand.u32 %v105, 4294901760
    %v1288 = vsub.f32 %v105, %v1287
    %v1289 = vand.u32 %v1288, 4294901760
    %v1290 = vsub.f32 %v1288, %v1289
    %v1291 = vand.u32 %v1290, 4294901760
    %1292 = vmatpush1.msra.mxu0 %v1291
    %1293 = vmatprep.subr.mxu0 0.0
    %v1294 = vand.u32 %v104, 4294901760
    %v1295 = vsub.f32 %v104, %v1294
    %v1296 = vand.u32 %v1295, 4294901760
    %v1297 = vsub.f32 %v1295, %v1296
    %v1298 = vand.u32 %v1297, 4294901760
    %1299 = vmatpush1.msra.mxu0 %v1298
    %1300 = vmatprep.subr.mxu0 0.0
    %v1301 = vand.u32 %v103, 4294901760
    %v1302 = vsub.f32 %v103, %v1301
    %v1303 = vand.u32 %v1302, 4294901760
    %v1304 = vsub.f32 %v1302, %v1303
    %v1305 = vand.u32 %v1304, 4294901760
    %1306 = vmatpush1.msra.mxu0 %v1305
    %1307 = vmatprep.subr.mxu0 0.0
    %v1308 = vand.u32 %v102, 4294901760
    %v1309 = vsub.f32 %v102, %v1308
    %v1310 = vand.u32 %v1309, 4294901760
    %v1311 = vsub.f32 %v1309, %v1310
    %v1312 = vand.u32 %v1311, 4294901760
    %1313 = vmatpush1.msra.mxu0 %v1312
    %1314 = vmatprep.subr.mxu0 0.0
    %v1315 = vand.u32 %v101, 4294901760
    %v1316 = vsub.f32 %v101, %v1315
    %v1317 = vand.u32 %v1316, 4294901760
    %v1318 = vsub.f32 %v1316, %v1317
    %v1319 = vand.u32 %v1318, 4294901760
    %1320 = vmatpush1.msra.mxu0 %v1319
    %1321 = vmatprep.subr.mxu0 0.0
    %v1322 = vand.u32 %v100, 4294901760
    %v1323 = vsub.f32 %v100, %v1322
    %v1324 = vand.u32 %v1323, 4294901760
    %v1325 = vsub.f32 %v1323, %v1324
    %v1326 = vand.u32 %v1325, 4294901760
    %1327 = vmatpush1.msra.mxu0 %v1326
    %1328 = vmatprep.subr.mxu0 0.0
    %v1329 = vand.u32 %v99, 4294901760
    %v1330 = vsub.f32 %v99, %v1329
    %v1331 = vand.u32 %v1330, 4294901760
    %v1332 = vsub.f32 %v1330, %v1331
    %v1333 = vand.u32 %v1332, 4294901760
    %1334 = vmatpush1.msra.mxu0 %v1333
    %1335 = vmatprep.subr.mxu0 0.0
    %v1336 = vand.u32 %v98, 4294901760
    %v1337 = vsub.f32 %v98, %v1336
    %v1338 = vand.u32 %v1337, 4294901760
    %v1339 = vsub.f32 %v1337, %v1338
    %v1340 = vand.u32 %v1339, 4294901760
    %1341 = vmatpush1.msra.mxu0 %v1340
    %1342 = vmatprep.subr.mxu0 0.0
    %v1343 = vand.u32 %v97, 4294901760
    %v1344 = vsub.f32 %v97, %v1343
    %v1345 = vand.u32 %v1344, 4294901760
    %v1346 = vsub.f32 %v1344, %v1345
    %v1347 = vand.u32 %v1346, 4294901760
    %1348 = vmatpush1.msra.mxu0 %v1347
    %1349 = vmatprep.subr.mxu0 0.0
    %v1350 = vand.u32 %v96, 4294901760
    %v1351 = vsub.f32 %v96, %v1350
    %v1352 = vand.u32 %v1351, 4294901760
    %v1353 = vsub.f32 %v1351, %v1352
    %v1354 = vand.u32 %v1353, 4294901760
    %1355 = vmatpush1.msra.mxu0 %v1354
    %1356 = vmatprep.subr.mxu0 0.0
    %v1357 = vand.u32 %v95, 4294901760
    %v1358 = vsub.f32 %v95, %v1357
    %v1359 = vand.u32 %v1358, 4294901760
    %v1360 = vsub.f32 %v1358, %v1359
    %v1361 = vand.u32 %v1360, 4294901760
    %1362 = vmatpush1.msra.mxu0 %v1361
    %1363 = vmatprep.subr.mxu0 0.0
    %v1364 = vand.u32 %v126, 4294901760
    %v1365 = vsub.f32 %v126, %v1364
    %v1366 = vand.u32 %v1365, 4294901760
    %v1367 = vsub.f32 %v1365, %v1366
    %v1368 = vand.u32 %v1367, 4294901760
    %1369 = vmatpush2.msra.mxu0 %v1368
    %1370 = vmatprep.subr.mxu0 0.0
    %v1371 = vand.u32 %v125, 4294901760
    %v1372 = vsub.f32 %v125, %v1371
    %v1373 = vand.u32 %v1372, 4294901760
    %v1374 = vsub.f32 %v1372, %v1373
    %v1375 = vand.u32 %v1374, 4294901760
    %1376 = vmatpush2.msra.mxu0 %v1375
    %1377 = vmatprep.subr.mxu0 0.0
    %v1378 = vand.u32 %v124, 4294901760
    %v1379 = vsub.f32 %v124, %v1378
    %v1380 = vand.u32 %v1379, 4294901760
    %v1381 = vsub.f32 %v1379, %v1380
    %v1382 = vand.u32 %v1381, 4294901760
    %1383 = vmatpush2.msra.mxu0 %v1382
    %1384 = vmatprep.subr.mxu0 0.0
    %v1385 = vand.u32 %v123, 4294901760
    %v1386 = vsub.f32 %v123, %v1385
    %v1387 = vand.u32 %v1386, 4294901760
    %v1388 = vsub.f32 %v1386, %v1387
    %v1389 = vand.u32 %v1388, 4294901760
    %1390 = vmatpush2.msra.mxu0 %v1389
    %1391 = vmatprep.subr.mxu0 0.0
    %v1392 = vand.u32 %v122, 4294901760
    %v1393 = vsub.f32 %v122, %v1392
    %v1394 = vand.u32 %v1393, 4294901760
    %v1395 = vsub.f32 %v1393, %v1394
    %v1396 = vand.u32 %v1395, 4294901760
    %1397 = vmatpush2.msra.mxu0 %v1396
    %1398 = vmatprep.subr.mxu0 0.0
    %v1399 = vand.u32 %v121, 4294901760
    %v1400 = vsub.f32 %v121, %v1399
    %v1401 = vand.u32 %v1400, 4294901760
    %v1402 = vsub.f32 %v1400, %v1401
    %v1403 = vand.u32 %v1402, 4294901760
    %1404 = vmatpush2.msra.mxu0 %v1403
    %1405 = vmatprep.subr.mxu0 0.0
    %v1406 = vand.u32 %v120, 4294901760
    %v1407 = vsub.f32 %v120, %v1406
    %v1408 = vand.u32 %v1407, 4294901760
    %v1409 = vsub.f32 %v1407, %v1408
    %v1410 = vand.u32 %v1409, 4294901760
    %1411 = vmatpush2.msra.mxu0 %v1410
    %1412 = vmatprep.subr.mxu0 0.0
    %v1413 = vand.u32 %v119, 4294901760
    %v1414 = vsub.f32 %v119, %v1413
    %v1415 = vand.u32 %v1414, 4294901760
    %v1416 = vsub.f32 %v1414, %v1415
    %v1417 = vand.u32 %v1416, 4294901760
    %1418 = vmatpush2.msra.mxu0 %v1417
    %1419 = vmatprep.subr.mxu0 0.0
    %v1420 = vand.u32 %v118, 4294901760
    %v1421 = vsub.f32 %v118, %v1420
    %v1422 = vand.u32 %v1421, 4294901760
    %v1423 = vsub.f32 %v1421, %v1422
    %v1424 = vand.u32 %v1423, 4294901760
    %1425 = vmatpush2.msra.mxu0 %v1424
    %1426 = vmatprep.subr.mxu0 0.0
    %v1427 = vand.u32 %v117, 4294901760
    %v1428 = vsub.f32 %v117, %v1427
    %v1429 = vand.u32 %v1428, 4294901760
    %v1430 = vsub.f32 %v1428, %v1429
    %v1431 = vand.u32 %v1430, 4294901760
    %1432 = vmatpush2.msra.mxu0 %v1431
    %1433 = vmatprep.subr.mxu0 0.0
    %v1434 = vand.u32 %v116, 4294901760
    %v1435 = vsub.f32 %v116, %v1434
    %v1436 = vand.u32 %v1435, 4294901760
    %v1437 = vsub.f32 %v1435, %v1436
    %v1438 = vand.u32 %v1437, 4294901760
    %1439 = vmatpush2.msra.mxu0 %v1438
    %1440 = vmatprep.subr.mxu0 0.0
    %v1441 = vand.u32 %v115, 4294901760
    %v1442 = vsub.f32 %v115, %v1441
    %v1443 = vand.u32 %v1442, 4294901760
    %v1444 = vsub.f32 %v1442, %v1443
    %v1445 = vand.u32 %v1444, 4294901760
    %1446 = vmatpush2.msra.mxu0 %v1445
    %1447 = vmatprep.subr.mxu0 0.0
    %v1448 = vand.u32 %v114, 4294901760
    %v1449 = vsub.f32 %v114, %v1448
    %v1450 = vand.u32 %v1449, 4294901760
    %v1451 = vsub.f32 %v1449, %v1450
    %v1452 = vand.u32 %v1451, 4294901760
    %1453 = vmatpush2.msra.mxu0 %v1452
    %1454 = vmatprep.subr.mxu0 0.0
    %v1455 = vand.u32 %v113, 4294901760
    %v1456 = vsub.f32 %v113, %v1455
    %v1457 = vand.u32 %v1456, 4294901760
    %v1458 = vsub.f32 %v1456, %v1457
    %v1459 = vand.u32 %v1458, 4294901760
    %1460 = vmatpush2.msra.mxu0 %v1459
    %1461 = vmatprep.subr.mxu0 0.0
    %v1462 = vand.u32 %v112, 4294901760
    %v1463 = vsub.f32 %v112, %v1462
    %v1464 = vand.u32 %v1463, 4294901760
    %v1465 = vsub.f32 %v1463, %v1464
    %v1466 = vand.u32 %v1465, 4294901760
    %1467 = vmatpush2.msra.mxu0 %v1466
    %1468 = vmatprep.subr.mxu0 0.0
    %v1469 = vand.u32 %v111, 4294901760
    %v1470 = vsub.f32 %v111, %v1469
    %v1471 = vand.u32 %v1470, 4294901760
    %v1472 = vsub.f32 %v1470, %v1471
    %v1473 = vand.u32 %v1472, 4294901760
    %1474 = vmatpush2.msra.mxu0 %v1473
    %v1475 = vand.u32 %v239, 4294901760
    %1476 = vmatprep.mubr.f32.mxu0 %v1475
    %v1477 = vand.u32 %v237, 4294901760
    %1478 = vmatmul.mubr.f32.gmra.mxu0 %v1477
    %v1479 = vpop.f32.mrf.mxu0
    %v1480 = vadd.f32 %v1248, %v1479
    %v1481 = vpop.f32.mrf.mxu0
    %1482 = vdwg.mxu0
    %1483 = vmatprep.subr.mxu0 0.0
    %v1484 = vand.u32 %v110, 4294901760
    %v1485 = vsub.f32 %v110, %v1484
    %1486 = vmatpush1.msra.mxu0 %v1485
    %1487 = vmatprep.subr.mxu0 0.0
    %v1488 = vand.u32 %v109, 4294901760
    %v1489 = vsub.f32 %v109, %v1488
    %1490 = vmatpush1.msra.mxu0 %v1489
    %1491 = vmatprep.subr.mxu0 0.0
    %v1492 = vand.u32 %v108, 4294901760
    %v1493 = vsub.f32 %v108, %v1492
    %1494 = vmatpush1.msra.mxu0 %v1493
    %1495 = vmatprep.subr.mxu0 0.0
    %v1496 = vand.u32 %v107, 4294901760
    %v1497 = vsub.f32 %v107, %v1496
    %1498 = vmatpush1.msra.mxu0 %v1497
    %1499 = vmatprep.subr.mxu0 0.0
    %v1500 = vand.u32 %v106, 4294901760
    %v1501 = vsub.f32 %v106, %v1500
    %1502 = vmatpush1.msra.mxu0 %v1501
    %1503 = vmatprep.subr.mxu0 0.0
    %v1504 = vand.u32 %v105, 4294901760
    %v1505 = vsub.f32 %v105, %v1504
    %1506 = vmatpush1.msra.mxu0 %v1505
    %1507 = vmatprep.subr.mxu0 0.0
    %v1508 = vand.u32 %v104, 4294901760
    %v1509 = vsub.f32 %v104, %v1508
    %1510 = vmatpush1.msra.mxu0 %v1509
    %1511 = vmatprep.subr.mxu0 0.0
    %v1512 = vand.u32 %v103, 4294901760
    %v1513 = vsub.f32 %v103, %v1512
    %1514 = vmatpush1.msra.mxu0 %v1513
    %1515 = vmatprep.subr.mxu0 0.0
    %v1516 = vand.u32 %v102, 4294901760
    %v1517 = vsub.f32 %v102, %v1516
    %1518 = vmatpush1.msra.mxu0 %v1517
    %1519 = vmatprep.subr.mxu0 0.0
    %v1520 = vand.u32 %v101, 4294901760
    %v1521 = vsub.f32 %v101, %v1520
    %1522 = vmatpush1.msra.mxu0 %v1521
    %1523 = vmatprep.subr.mxu0 0.0
    %v1524 = vand.u32 %v100, 4294901760
    %v1525 = vsub.f32 %v100, %v1524
    %1526 = vmatpush1.msra.mxu0 %v1525
    %1527 = vmatprep.subr.mxu0 0.0
    %v1528 = vand.u32 %v99, 4294901760
    %v1529 = vsub.f32 %v99, %v1528
    %1530 = vmatpush1.msra.mxu0 %v1529
    %1531 = vmatprep.subr.mxu0 0.0
    %v1532 = vand.u32 %v98, 4294901760
    %v1533 = vsub.f32 %v98, %v1532
    %1534 = vmatpush1.msra.mxu0 %v1533
    %1535 = vmatprep.subr.mxu0 0.0
    %v1536 = vand.u32 %v97, 4294901760
    %v1537 = vsub.f32 %v97, %v1536
    %1538 = vmatpush1.msra.mxu0 %v1537
    %1539 = vmatprep.subr.mxu0 0.0
    %v1540 = vand.u32 %v96, 4294901760
    %v1541 = vsub.f32 %v96, %v1540
    %1542 = vmatpush1.msra.mxu0 %v1541
    %1543 = vmatprep.subr.mxu0 0.0
    %v1544 = vand.u32 %v95, 4294901760
    %v1545 = vsub.f32 %v95, %v1544
    %1546 = vmatpush1.msra.mxu0 %v1545
    %1547 = vmatprep.subr.mxu0 0.0
    %v1548 = vand.u32 %v126, 4294901760
    %v1549 = vsub.f32 %v126, %v1548
    %1550 = vmatpush2.msra.mxu0 %v1549
    %1551 = vmatprep.subr.mxu0 0.0
    %v1552 = vand.u32 %v125, 4294901760
    %v1553 = vsub.f32 %v125, %v1552
    %1554 = vmatpush2.msra.mxu0 %v1553
    %1555 = vmatprep.subr.mxu0 0.0
    %v1556 = vand.u32 %v124, 4294901760
    %v1557 = vsub.f32 %v124, %v1556
    %1558 = vmatpush2.msra.mxu0 %v1557
    %1559 = vmatprep.subr.mxu0 0.0
    %v1560 = vand.u32 %v123, 4294901760
    %v1561 = vsub.f32 %v123, %v1560
    %1562 = vmatpush2.msra.mxu0 %v1561
    %1563 = vmatprep.subr.mxu0 0.0
    %v1564 = vand.u32 %v122, 4294901760
    %v1565 = vsub.f32 %v122, %v1564
    %1566 = vmatpush2.msra.mxu0 %v1565
    %1567 = vmatprep.subr.mxu0 0.0
    %v1568 = vand.u32 %v121, 4294901760
    %v1569 = vsub.f32 %v121, %v1568
    %1570 = vmatpush2.msra.mxu0 %v1569
    %1571 = vmatprep.subr.mxu0 0.0
    %v1572 = vand.u32 %v120, 4294901760
    %v1573 = vsub.f32 %v120, %v1572
    %1574 = vmatpush2.msra.mxu0 %v1573
    %1575 = vmatprep.subr.mxu0 0.0
    %v1576 = vand.u32 %v119, 4294901760
    %v1577 = vsub.f32 %v119, %v1576
    %1578 = vmatpush2.msra.mxu0 %v1577
    %1579 = vmatprep.subr.mxu0 0.0
    %v1580 = vand.u32 %v118, 4294901760
    %v1581 = vsub.f32 %v118, %v1580
    %1582 = vmatpush2.msra.mxu0 %v1581
    %1583 = vmatprep.subr.mxu0 0.0
    %v1584 = vand.u32 %v117, 4294901760
    %v1585 = vsub.f32 %v117, %v1584
    %1586 = vmatpush2.msra.mxu0 %v1585
    %1587 = vmatprep.subr.mxu0 0.0
    %v1588 = vand.u32 %v116, 4294901760
    %v1589 = vsub.f32 %v116, %v1588
    %1590 = vmatpush2.msra.mxu0 %v1589
    %1591 = vmatprep.subr.mxu0 0.0
    %v1592 = vand.u32 %v115, 4294901760
    %v1593 = vsub.f32 %v115, %v1592
    %1594 = vmatpush2.msra.mxu0 %v1593
    %1595 = vmatprep.subr.mxu0 0.0
    %v1596 = vand.u32 %v114, 4294901760
    %v1597 = vsub.f32 %v114, %v1596
    %1598 = vmatpush2.msra.mxu0 %v1597
    %1599 = vmatprep.subr.mxu0 0.0
    %v1600 = vand.u32 %v113, 4294901760
    %v1601 = vsub.f32 %v113, %v1600
    %1602 = vmatpush2.msra.mxu0 %v1601
    %1603 = vmatprep.subr.mxu0 0.0
    %v1604 = vand.u32 %v112, 4294901760
    %v1605 = vsub.f32 %v112, %v1604
    %1606 = vmatpush2.msra.mxu0 %v1605
    %1607 = vmatprep.subr.mxu0 0.0
    %v1608 = vand.u32 %v111, 4294901760
    %v1609 = vsub.f32 %v111, %v1608
    %1610 = vmatpush2.msra.mxu0 %v1609
    %v1611 = vand.u32 %v239, 4294901760
    %v1612 = vsub.f32 %v239, %v1611
    %1613 = vmatprep.mubr.f32.mxu0 %v1612
    %v1614 = vand.u32 %v237, 4294901760
    %v1615 = vsub.f32 %v237, %v1614
    %1616 = vmatmul.mubr.f32.gmra.mxu0 %v1615
    %v1617 = vpop.f32.mrf.mxu0
    %v1618 = vadd.f32 %v1480, %v1617
    %v1619 = vpop.f32.mrf.mxu0
    %1620 = vdwg.mxu0
    %1621 = vmatprep.subr.mxu0 0.0
    %v1622 = vand.u32 %v110, 4294901760
    %1623 = vmatpush1.msra.mxu0 %v1622
    %1624 = vmatprep.subr.mxu0 0.0
    %v1625 = vand.u32 %v109, 4294901760
    %1626 = vmatpush1.msra.mxu0 %v1625
    %1627 = vmatprep.subr.mxu0 0.0
    %v1628 = vand.u32 %v108, 4294901760
    %1629 = vmatpush1.msra.mxu0 %v1628
    %1630 = vmatprep.subr.mxu0 0.0
    %v1631 = vand.u32 %v107, 4294901760
    %1632 = vmatpush1.msra.mxu0 %v1631
    %1633 = vmatprep.subr.mxu0 0.0
    %v1634 = vand.u32 %v106, 4294901760
    %1635 = vmatpush1.msra.mxu0 %v1634
    %1636 = vmatprep.subr.mxu0 0.0
    %v1637 = vand.u32 %v105, 4294901760
    %1638 = vmatpush1.msra.mxu0 %v1637
    %1639 = vmatprep.subr.mxu0 0.0
    %v1640 = vand.u32 %v104, 4294901760
    %1641 = vmatpush1.msra.mxu0 %v1640
    %1642 = vmatprep.subr.mxu0 0.0
    %v1643 = vand.u32 %v103, 4294901760
    %1644 = vmatpush1.msra.mxu0 %v1643
    %1645 = vmatprep.subr.mxu0 0.0
    %v1646 = vand.u32 %v102, 4294901760
    %1647 = vmatpush1.msra.mxu0 %v1646
    %1648 = vmatprep.subr.mxu0 0.0
    %v1649 = vand.u32 %v101, 4294901760
    %1650 = vmatpush1.msra.mxu0 %v1649
    %1651 = vmatprep.subr.mxu0 0.0
    %v1652 = vand.u32 %v100, 4294901760
    %1653 = vmatpush1.msra.mxu0 %v1652
    %1654 = vmatprep.subr.mxu0 0.0
    %v1655 = vand.u32 %v99, 4294901760
    %1656 = vmatpush1.msra.mxu0 %v1655
    %1657 = vmatprep.subr.mxu0 0.0
    %v1658 = vand.u32 %v98, 4294901760
    %1659 = vmatpush1.msra.mxu0 %v1658
    %1660 = vmatprep.subr.mxu0 0.0
    %v1661 = vand.u32 %v97, 4294901760
    %1662 = vmatpush1.msra.mxu0 %v1661
    %1663 = vmatprep.subr.mxu0 0.0
    %v1664 = vand.u32 %v96, 4294901760
    %1665 = vmatpush1.msra.mxu0 %v1664
    %1666 = vmatprep.subr.mxu0 0.0
    %v1667 = vand.u32 %v95, 4294901760
    %1668 = vmatpush1.msra.mxu0 %v1667
    %1669 = vmatprep.subr.mxu0 0.0
    %v1670 = vand.u32 %v126, 4294901760
    %1671 = vmatpush2.msra.mxu0 %v1670
    %1672 = vmatprep.subr.mxu0 0.0
    %v1673 = vand.u32 %v125, 4294901760
    %1674 = vmatpush2.msra.mxu0 %v1673
    %1675 = vmatprep.subr.mxu0 0.0
    %v1676 = vand.u32 %v124, 4294901760
    %1677 = vmatpush2.msra.mxu0 %v1676
    %1678 = vmatprep.subr.mxu0 0.0
    %v1679 = vand.u32 %v123, 4294901760
    %1680 = vmatpush2.msra.mxu0 %v1679
    %1681 = vmatprep.subr.mxu0 0.0
    %v1682 = vand.u32 %v122, 4294901760
    %1683 = vmatpush2.msra.mxu0 %v1682
    %1684 = vmatprep.subr.mxu0 0.0
    %v1685 = vand.u32 %v121, 4294901760
    %1686 = vmatpush2.msra.mxu0 %v1685
    %1687 = vmatprep.subr.mxu0 0.0
    %v1688 = vand.u32 %v120, 4294901760
    %1689 = vmatpush2.msra.mxu0 %v1688
    %1690 = vmatprep.subr.mxu0 0.0
    %v1691 = vand.u32 %v119, 4294901760
    %1692 = vmatpush2.msra.mxu0 %v1691
    %1693 = vmatprep.subr.mxu0 0.0
    %v1694 = vand.u32 %v118, 4294901760
    %1695 = vmatpush2.msra.mxu0 %v1694
    %1696 = vmatprep.subr.mxu0 0.0
    %v1697 = vand.u32 %v117, 4294901760
    %1698 = vmatpush2.msra.mxu0 %v1697
    %1699 = vmatprep.subr.mxu0 0.0
    %v1700 = vand.u32 %v116, 4294901760
    %1701 = vmatpush2.msra.mxu0 %v1700
    %1702 = vmatprep.subr.mxu0 0.0
    %v1703 = vand.u32 %v115, 4294901760
    %1704 = vmatpush2.msra.mxu0 %v1703
    %1705 = vmatprep.subr.mxu0 0.0
    %v1706 = vand.u32 %v114, 4294901760
    %1707 = vmatpush2.msra.mxu0 %v1706
    %1708 = vmatprep.subr.mxu0 0.0
    %v1709 = vand.u32 %v113, 4294901760
    %1710 = vmatpush2.msra.mxu0 %v1709
    %1711 = vmatprep.subr.mxu0 0.0
    %v1712 = vand.u32 %v112, 4294901760
    %1713 = vmatpush2.msra.mxu0 %v1712
    %1714 = vmatprep.subr.mxu0 0.0
    %v1715 = vand.u32 %v111, 4294901760
    %1716 = vmatpush2.msra.mxu0 %v1715
    %v1717 = vand.u32 %v239, 4294901760
    %v1718 = vsub.f32 %v239, %v1717
    %v1719 = vand.u32 %v1718, 4294901760
    %1720 = vmatprep.mubr.f32.mxu0 %v1719
    %v1721 = vand.u32 %v237, 4294901760
    %v1722 = vsub.f32 %v237, %v1721
    %v1723 = vand.u32 %v1722, 4294901760
    %1724 = vmatmul.mubr.f32.gmra.mxu0 %v1723
    %v1725 = vpop.f32.mrf.mxu0
    %v1726 = vadd.f32 %v1618, %v1725
    %v1727 = vpop.f32.mrf.mxu0
    %1728 = vdwg.mxu0
    %1729 = vmatprep.subr.mxu0 0.0
    %v1730 = vand.u32 %v110, 4294901760
    %v1731 = vsub.f32 %v110, %v1730
    %v1732 = vand.u32 %v1731, 4294901760
    %1733 = vmatpush1.msra.mxu0 %v1732
    %1734 = vmatprep.subr.mxu0 0.0
    %v1735 = vand.u32 %v109, 4294901760
    %v1736 = vsub.f32 %v109, %v1735
    %v1737 = vand.u32 %v1736, 4294901760
    %1738 = vmatpush1.msra.mxu0 %v1737
    %1739 = vmatprep.subr.mxu0 0.0
    %v1740 = vand.u32 %v108, 4294901760
    %v1741 = vsub.f32 %v108, %v1740
    %v1742 = vand.u32 %v1741, 4294901760
    %1743 = vmatpush1.msra.mxu0 %v1742
    %1744 = vmatprep.subr.mxu0 0.0
    %v1745 = vand.u32 %v107, 4294901760
    %v1746 = vsub.f32 %v107, %v1745
    %v1747 = vand.u32 %v1746, 4294901760
    %1748 = vmatpush1.msra.mxu0 %v1747
    %1749 = vmatprep.subr.mxu0 0.0
    %v1750 = vand.u32 %v106, 4294901760
    %v1751 = vsub.f32 %v106, %v1750
    %v1752 = vand.u32 %v1751, 4294901760
    %1753 = vmatpush1.msra.mxu0 %v1752
    %1754 = vmatprep.subr.mxu0 0.0
    %v1755 = vand.u32 %v105, 4294901760
    %v1756 = vsub.f32 %v105, %v1755
    %v1757 = vand.u32 %v1756, 4294901760
    %1758 = vmatpush1.msra.mxu0 %v1757
    %1759 = vmatprep.subr.mxu0 0.0
    %v1760 = vand.u32 %v104, 4294901760
    %v1761 = vsub.f32 %v104, %v1760
    %v1762 = vand.u32 %v1761, 4294901760
    %1763 = vmatpush1.msra.mxu0 %v1762
    %1764 = vmatprep.subr.mxu0 0.0
    %v1765 = vand.u32 %v103, 4294901760
    %v1766 = vsub.f32 %v103, %v1765
    %v1767 = vand.u32 %v1766, 4294901760
    %1768 = vmatpush1.msra.mxu0 %v1767
    %1769 = vmatprep.subr.mxu0 0.0
    %v1770 = vand.u32 %v102, 4294901760
    %v1771 = vsub.f32 %v102, %v1770
    %v1772 = vand.u32 %v1771, 4294901760
    %1773 = vmatpush1.msra.mxu0 %v1772
    %1774 = vmatprep.subr.mxu0 0.0
    %v1775 = vand.u32 %v101, 4294901760
    %v1776 = vsub.f32 %v101, %v1775
    %v1777 = vand.u32 %v1776, 4294901760
    %1778 = vmatpush1.msra.mxu0 %v1777
    %1779 = vmatprep.subr.mxu0 0.0
    %v1780 = vand.u32 %v100, 4294901760
    %v1781 = vsub.f32 %v100, %v1780
    %v1782 = vand.u32 %v1781, 4294901760
    %1783 = vmatpush1.msra.mxu0 %v1782
    %1784 = vmatprep.subr.mxu0 0.0
    %v1785 = vand.u32 %v99, 4294901760
    %v1786 = vsub.f32 %v99, %v1785
    %v1787 = vand.u32 %v1786, 4294901760
    %1788 = vmatpush1.msra.mxu0 %v1787
    %1789 = vmatprep.subr.mxu0 0.0
    %v1790 = vand.u32 %v98, 4294901760
    %v1791 = vsub.f32 %v98, %v1790
    %v1792 = vand.u32 %v1791, 4294901760
    %1793 = vmatpush1.msra.mxu0 %v1792
    %1794 = vmatprep.subr.mxu0 0.0
    %v1795 = vand.u32 %v97, 4294901760
    %v1796 = vsub.f32 %v97, %v1795
    %v1797 = vand.u32 %v1796, 4294901760
    %1798 = vmatpush1.msra.mxu0 %v1797
    %1799 = vmatprep.subr.mxu0 0.0
    %v1800 = vand.u32 %v96, 4294901760
    %v1801 = vsub.f32 %v96, %v1800
    %v1802 = vand.u32 %v1801, 4294901760
    %1803 = vmatpush1.msra.mxu0 %v1802
    %1804 = vmatprep.subr.mxu0 0.0
    %v1805 = vand.u32 %v95, 4294901760
    %v1806 = vsub.f32 %v95, %v1805
    %v1807 = vand.u32 %v1806, 4294901760
    %1808 = vmatpush1.msra.mxu0 %v1807
    %1809 = vmatprep.subr.mxu0 0.0
    %v1810 = vand.u32 %v126, 4294901760
    %v1811 = vsub.f32 %v126, %v1810
    %v1812 = vand.u32 %v1811, 4294901760
    %1813 = vmatpush2.msra.mxu0 %v1812
    %1814 = vmatprep.subr.mxu0 0.0
    %v1815 = vand.u32 %v125, 4294901760
    %v1816 = vsub.f32 %v125, %v1815
    %v1817 = vand.u32 %v1816, 4294901760
    %1818 = vmatpush2.msra.mxu0 %v1817
    %1819 = vmatprep.subr.mxu0 0.0
    %v1820 = vand.u32 %v124, 4294901760
    %v1821 = vsub.f32 %v124, %v1820
    %v1822 = vand.u32 %v1821, 4294901760
    %1823 = vmatpush2.msra.mxu0 %v1822
    %1824 = vmatprep.subr.mxu0 0.0
    %v1825 = vand.u32 %v123, 4294901760
    %v1826 = vsub.f32 %v123, %v1825
    %v1827 = vand.u32 %v1826, 4294901760
    %1828 = vmatpush2.msra.mxu0 %v1827
    %1829 = vmatprep.subr.mxu0 0.0
    %v1830 = vand.u32 %v122, 4294901760
    %v1831 = vsub.f32 %v122, %v1830
    %v1832 = vand.u32 %v1831, 4294901760
    %1833 = vmatpush2.msra.mxu0 %v1832
    %1834 = vmatprep.subr.mxu0 0.0
    %v1835 = vand.u32 %v121, 4294901760
    %v1836 = vsub.f32 %v121, %v1835
    %v1837 = vand.u32 %v1836, 4294901760
    %1838 = vmatpush2.msra.mxu0 %v1837
    %1839 = vmatprep.subr.mxu0 0.0
    %v1840 = vand.u32 %v120, 4294901760
    %v1841 = vsub.f32 %v120, %v1840
    %v1842 = vand.u32 %v1841, 4294901760
    %1843 = vmatpush2.msra.mxu0 %v1842
    %1844 = vmatprep.subr.mxu0 0.0
    %v1845 = vand.u32 %v119, 4294901760
    %v1846 = vsub.f32 %v119, %v1845
    %v1847 = vand.u32 %v1846, 4294901760
    %1848 = vmatpush2.msra.mxu0 %v1847
    %1849 = vmatprep.subr.mxu0 0.0
    %v1850 = vand.u32 %v118, 4294901760
    %v1851 = vsub.f32 %v118, %v1850
    %v1852 = vand.u32 %v1851, 4294901760
    %1853 = vmatpush2.msra.mxu0 %v1852
    %1854 = vmatprep.subr.mxu0 0.0
    %v1855 = vand.u32 %v117, 4294901760
    %v1856 = vsub.f32 %v117, %v1855
    %v1857 = vand.u32 %v1856, 4294901760
    %1858 = vmatpush2.msra.mxu0 %v1857
    %1859 = vmatprep.subr.mxu0 0.0
    %v1860 = vand.u32 %v116, 4294901760
    %v1861 = vsub.f32 %v116, %v1860
    %v1862 = vand.u32 %v1861, 4294901760
    %1863 = vmatpush2.msra.mxu0 %v1862
    %1864 = vmatprep.subr.mxu0 0.0
    %v1865 = vand.u32 %v115, 4294901760
    %v1866 = vsub.f32 %v115, %v1865
    %v1867 = vand.u32 %v1866, 4294901760
    %1868 = vmatpush2.msra.mxu0 %v1867
    %1869 = vmatprep.subr.mxu0 0.0
    %v1870 = vand.u32 %v114, 4294901760
    %v1871 = vsub.f32 %v114, %v1870
    %v1872 = vand.u32 %v1871, 4294901760
    %1873 = vmatpush2.msra.mxu0 %v1872
    %1874 = vmatprep.subr.mxu0 0.0
    %v1875 = vand.u32 %v113, 4294901760
    %v1876 = vsub.f32 %v113, %v1875
    %v1877 = vand.u32 %v1876, 4294901760
    %1878 = vmatpush2.msra.mxu0 %v1877
    %1879 = vmatprep.subr.mxu0 0.0
    %v1880 = vand.u32 %v112, 4294901760
    %v1881 = vsub.f32 %v112, %v1880
    %v1882 = vand.u32 %v1881, 4294901760
    %1883 = vmatpush2.msra.mxu0 %v1882
    %1884 = vmatprep.subr.mxu0 0.0
    %v1885 = vand.u32 %v111, 4294901760
    %v1886 = vsub.f32 %v111, %v1885
    %v1887 = vand.u32 %v1886, 4294901760
    %1888 = vmatpush2.msra.mxu0 %v1887
    %v1889 = vand.u32 %v239, 4294901760
    %1890 = vmatprep.mubr.f32.mxu0 %v1889
    %v1891 = vand.u32 %v237, 4294901760
    %1892 = vmatmul.mubr.f32.gmra.mxu0 %v1891
    %v1893 = vpop.f32.mrf.mxu0
    %v1894 = vadd.f32 %v1726, %v1893
    %v1895 = vpop.f32.mrf.mxu0
    %1896 = vdwg.mxu0
    %1897 = vmatprep.subr.mxu0 0.0
    %v1898 = vand.u32 %v110, 4294901760
    %1899 = vmatpush1.msra.mxu0 %v1898
    %1900 = vmatprep.subr.mxu0 0.0
    %v1901 = vand.u32 %v109, 4294901760
    %1902 = vmatpush1.msra.mxu0 %v1901
    %1903 = vmatprep.subr.mxu0 0.0
    %v1904 = vand.u32 %v108, 4294901760
    %1905 = vmatpush1.msra.mxu0 %v1904
    %1906 = vmatprep.subr.mxu0 0.0
    %v1907 = vand.u32 %v107, 4294901760
    %1908 = vmatpush1.msra.mxu0 %v1907
    %1909 = vmatprep.subr.mxu0 0.0
    %v1910 = vand.u32 %v106, 4294901760
    %1911 = vmatpush1.msra.mxu0 %v1910
    %1912 = vmatprep.subr.mxu0 0.0
    %v1913 = vand.u32 %v105, 4294901760
    %1914 = vmatpush1.msra.mxu0 %v1913
    %1915 = vmatprep.subr.mxu0 0.0
    %v1916 = vand.u32 %v104, 4294901760
    %1917 = vmatpush1.msra.mxu0 %v1916
    %1918 = vmatprep.subr.mxu0 0.0
    %v1919 = vand.u32 %v103, 4294901760
    %1920 = vmatpush1.msra.mxu0 %v1919
    %1921 = vmatprep.subr.mxu0 0.0
    %v1922 = vand.u32 %v102, 4294901760
    %1923 = vmatpush1.msra.mxu0 %v1922
    %1924 = vmatprep.subr.mxu0 0.0
    %v1925 = vand.u32 %v101, 4294901760
    %1926 = vmatpush1.msra.mxu0 %v1925
    %1927 = vmatprep.subr.mxu0 0.0
    %v1928 = vand.u32 %v100, 4294901760
    %1929 = vmatpush1.msra.mxu0 %v1928
    %1930 = vmatprep.subr.mxu0 0.0
    %v1931 = vand.u32 %v99, 4294901760
    %1932 = vmatpush1.msra.mxu0 %v1931
    %1933 = vmatprep.subr.mxu0 0.0
    %v1934 = vand.u32 %v98, 4294901760
    %1935 = vmatpush1.msra.mxu0 %v1934
    %1936 = vmatprep.subr.mxu0 0.0
    %v1937 = vand.u32 %v97, 4294901760
    %1938 = vmatpush1.msra.mxu0 %v1937
    %1939 = vmatprep.subr.mxu0 0.0
    %v1940 = vand.u32 %v96, 4294901760
    %1941 = vmatpush1.msra.mxu0 %v1940
    %1942 = vmatprep.subr.mxu0 0.0
    %v1943 = vand.u32 %v95, 4294901760
    %1944 = vmatpush1.msra.mxu0 %v1943
    %1945 = vmatprep.subr.mxu0 0.0
    %v1946 = vand.u32 %v126, 4294901760
    %1947 = vmatpush2.msra.mxu0 %v1946
    %1948 = vmatprep.subr.mxu0 0.0
    %v1949 = vand.u32 %v125, 4294901760
    %1950 = vmatpush2.msra.mxu0 %v1949
    %1951 = vmatprep.subr.mxu0 0.0
    %v1952 = vand.u32 %v124, 4294901760
    %1953 = vmatpush2.msra.mxu0 %v1952
    %1954 = vmatprep.subr.mxu0 0.0
    %v1955 = vand.u32 %v123, 4294901760
    %1956 = vmatpush2.msra.mxu0 %v1955
    %1957 = vmatprep.subr.mxu0 0.0
    %v1958 = vand.u32 %v122, 4294901760
    %1959 = vmatpush2.msra.mxu0 %v1958
    %1960 = vmatprep.subr.mxu0 0.0
    %v1961 = vand.u32 %v121, 4294901760
    %1962 = vmatpush2.msra.mxu0 %v1961
    %1963 = vmatprep.subr.mxu0 0.0
    %v1964 = vand.u32 %v120, 4294901760
    %1965 = vmatpush2.msra.mxu0 %v1964
    %1966 = vmatprep.subr.mxu0 0.0
    %v1967 = vand.u32 %v119, 4294901760
    %1968 = vmatpush2.msra.mxu0 %v1967
    %1969 = vmatprep.subr.mxu0 0.0
    %v1970 = vand.u32 %v118, 4294901760
    %1971 = vmatpush2.msra.mxu0 %v1970
    %1972 = vmatprep.subr.mxu0 0.0
    %v1973 = vand.u32 %v117, 4294901760
    %1974 = vmatpush2.msra.mxu0 %v1973
    %1975 = vmatprep.subr.mxu0 0.0
    %v1976 = vand.u32 %v116, 4294901760
    %1977 = vmatpush2.msra.mxu0 %v1976
    %1978 = vmatprep.subr.mxu0 0.0
    %v1979 = vand.u32 %v115, 4294901760
    %1980 = vmatpush2.msra.mxu0 %v1979
    %1981 = vmatprep.subr.mxu0 0.0
    %v1982 = vand.u32 %v114, 4294901760
    %1983 = vmatpush2.msra.mxu0 %v1982
    %1984 = vmatprep.subr.mxu0 0.0
    %v1985 = vand.u32 %v113, 4294901760
    %1986 = vmatpush2.msra.mxu0 %v1985
    %1987 = vmatprep.subr.mxu0 0.0
    %v1988 = vand.u32 %v112, 4294901760
    %1989 = vmatpush2.msra.mxu0 %v1988
    %1990 = vmatprep.subr.mxu0 0.0
    %v1991 = vand.u32 %v111, 4294901760
    %1992 = vmatpush2.msra.mxu0 %v1991
    %v1993 = vand.u32 %v239, 4294901760
    %1994 = vmatprep.mubr.f32.mxu0 %v1993
    %v1995 = vand.u32 %v237, 4294901760
    %1996 = vmatmul.mubr.f32.gmra.mxu0 %v1995
    %v1997 = vpop.f32.mrf.mxu0
    %v1998 = vadd.f32 %v1894, %v1997
    %v1999 = vpop.f32.mrf.mxu0
    %2000 = vdwg.mxu0
    %2001 = vmatprep.subr.mxu0 0.0
    %v2002 = vand.u32 %v142, 4294901760
    %2003 = vmatpush1.msra.mxu0 %v2002
    %2004 = vmatprep.subr.mxu0 0.0
    %v2005 = vand.u32 %v141, 4294901760
    %2006 = vmatpush1.msra.mxu0 %v2005
    %2007 = vmatprep.subr.mxu0 0.0
    %v2008 = vand.u32 %v140, 4294901760
    %2009 = vmatpush1.msra.mxu0 %v2008
    %2010 = vmatprep.subr.mxu0 0.0
    %v2011 = vand.u32 %v139, 4294901760
    %2012 = vmatpush1.msra.mxu0 %v2011
    %2013 = vmatprep.subr.mxu0 0.0
    %v2014 = vand.u32 %v138, 4294901760
    %2015 = vmatpush1.msra.mxu0 %v2014
    %2016 = vmatprep.subr.mxu0 0.0
    %v2017 = vand.u32 %v137, 4294901760
    %2018 = vmatpush1.msra.mxu0 %v2017
    %2019 = vmatprep.subr.mxu0 0.0
    %v2020 = vand.u32 %v136, 4294901760
    %2021 = vmatpush1.msra.mxu0 %v2020
    %2022 = vmatprep.subr.mxu0 0.0
    %v2023 = vand.u32 %v135, 4294901760
    %2024 = vmatpush1.msra.mxu0 %v2023
    %2025 = vmatprep.subr.mxu0 0.0
    %v2026 = vand.u32 %v134, 4294901760
    %2027 = vmatpush1.msra.mxu0 %v2026
    %2028 = vmatprep.subr.mxu0 0.0
    %v2029 = vand.u32 %v133, 4294901760
    %2030 = vmatpush1.msra.mxu0 %v2029
    %2031 = vmatprep.subr.mxu0 0.0
    %v2032 = vand.u32 %v132, 4294901760
    %2033 = vmatpush1.msra.mxu0 %v2032
    %2034 = vmatprep.subr.mxu0 0.0
    %v2035 = vand.u32 %v131, 4294901760
    %2036 = vmatpush1.msra.mxu0 %v2035
    %2037 = vmatprep.subr.mxu0 0.0
    %v2038 = vand.u32 %v130, 4294901760
    %2039 = vmatpush1.msra.mxu0 %v2038
    %2040 = vmatprep.subr.mxu0 0.0
    %v2041 = vand.u32 %v129, 4294901760
    %2042 = vmatpush1.msra.mxu0 %v2041
    %2043 = vmatprep.subr.mxu0 0.0
    %v2044 = vand.u32 %v128, 4294901760
    %2045 = vmatpush1.msra.mxu0 %v2044
    %2046 = vmatprep.subr.mxu0 0.0
    %v2047 = vand.u32 %v127, 4294901760
    %2048 = vmatpush1.msra.mxu0 %v2047
    %2049 = vmatprep.subr.mxu0 0.0
    %v2050 = vand.u32 %v158, 4294901760
    %2051 = vmatpush2.msra.mxu0 %v2050
    %2052 = vmatprep.subr.mxu0 0.0
    %v2053 = vand.u32 %v157, 4294901760
    %2054 = vmatpush2.msra.mxu0 %v2053
    %2055 = vmatprep.subr.mxu0 0.0
    %v2056 = vand.u32 %v156, 4294901760
    %2057 = vmatpush2.msra.mxu0 %v2056
    %2058 = vmatprep.subr.mxu0 0.0
    %v2059 = vand.u32 %v155, 4294901760
    %2060 = vmatpush2.msra.mxu0 %v2059
    %2061 = vmatprep.subr.mxu0 0.0
    %v2062 = vand.u32 %v154, 4294901760
    %2063 = vmatpush2.msra.mxu0 %v2062
    %2064 = vmatprep.subr.mxu0 0.0
    %v2065 = vand.u32 %v153, 4294901760
    %2066 = vmatpush2.msra.mxu0 %v2065
    %2067 = vmatprep.subr.mxu0 0.0
    %v2068 = vand.u32 %v152, 4294901760
    %2069 = vmatpush2.msra.mxu0 %v2068
    %2070 = vmatprep.subr.mxu0 0.0
    %v2071 = vand.u32 %v151, 4294901760
    %2072 = vmatpush2.msra.mxu0 %v2071
    %2073 = vmatprep.subr.mxu0 0.0
    %v2074 = vand.u32 %v150, 4294901760
    %2075 = vmatpush2.msra.mxu0 %v2074
    %2076 = vmatprep.subr.mxu0 0.0
    %v2077 = vand.u32 %v149, 4294901760
    %2078 = vmatpush2.msra.mxu0 %v2077
    %2079 = vmatprep.subr.mxu0 0.0
    %v2080 = vand.u32 %v148, 4294901760
    %2081 = vmatpush2.msra.mxu0 %v2080
    %2082 = vmatprep.subr.mxu0 0.0
    %v2083 = vand.u32 %v147, 4294901760
    %2084 = vmatpush2.msra.mxu0 %v2083
    %2085 = vmatprep.subr.mxu0 0.0
    %v2086 = vand.u32 %v146, 4294901760
    %2087 = vmatpush2.msra.mxu0 %v2086
    %2088 = vmatprep.subr.mxu0 0.0
    %v2089 = vand.u32 %v145, 4294901760
    %2090 = vmatpush2.msra.mxu0 %v2089
    %2091 = vmatprep.subr.mxu0 0.0
    %v2092 = vand.u32 %v144, 4294901760
    %2093 = vmatpush2.msra.mxu0 %v2092
    %2094 = vmatprep.subr.mxu0 0.0
    %v2095 = vand.u32 %v143, 4294901760
    %2096 = vmatpush2.msra.mxu0 %v2095
    %v2097 = vand.u32 %v255, 4294901760
    %v2098 = vsub.f32 %v255, %v2097
    %v2099 = vand.u32 %v2098, 4294901760
    %v2100 = vsub.f32 %v2098, %v2099
    %v2101 = vand.u32 %v2100, 4294901760
    %2102 = vmatprep.mubr.f32.mxu0 %v2101
    %v2103 = vand.u32 %v247, 4294901760
    %v2104 = vsub.f32 %v247, %v2103
    %v2105 = vand.u32 %v2104, 4294901760
    %v2106 = vsub.f32 %v2104, %v2105
    %v2107 = vand.u32 %v2106, 4294901760
    %2108 = vmatmul.mubr.f32.gmra.mxu0 %v2107
    %v2109 = vpop.f32.mrf.mxu0
    %v2110 = vadd.f32 %v1998, %v2109
    %v2111 = vpop.f32.mrf.mxu0
    %2112 = vdwg.mxu0
    %2113 = vmatprep.subr.mxu0 0.0
    %v2114 = vand.u32 %v142, 4294901760
    %v2115 = vsub.f32 %v142, %v2114
    %v2116 = vand.u32 %v2115, 4294901760
    %v2117 = vsub.f32 %v2115, %v2116
    %v2118 = vand.u32 %v2117, 4294901760
    %2119 = vmatpush1.msra.mxu0 %v2118
    %2120 = vmatprep.subr.mxu0 0.0
    %v2121 = vand.u32 %v141, 4294901760
    %v2122 = vsub.f32 %v141, %v2121
    %v2123 = vand.u32 %v2122, 4294901760
    %v2124 = vsub.f32 %v2122, %v2123
    %v2125 = vand.u32 %v2124, 4294901760
    %2126 = vmatpush1.msra.mxu0 %v2125
    %2127 = vmatprep.subr.mxu0 0.0
    %v2128 = vand.u32 %v140, 4294901760
    %v2129 = vsub.f32 %v140, %v2128
    %v2130 = vand.u32 %v2129, 4294901760
    %v2131 = vsub.f32 %v2129, %v2130
    %v2132 = vand.u32 %v2131, 4294901760
    %2133 = vmatpush1.msra.mxu0 %v2132
    %2134 = vmatprep.subr.mxu0 0.0
    %v2135 = vand.u32 %v139, 4294901760
    %v2136 = vsub.f32 %v139, %v2135
    %v2137 = vand.u32 %v2136, 4294901760
    %v2138 = vsub.f32 %v2136, %v2137
    %v2139 = vand.u32 %v2138, 4294901760
    %2140 = vmatpush1.msra.mxu0 %v2139
    %2141 = vmatprep.subr.mxu0 0.0
    %v2142 = vand.u32 %v138, 4294901760
    %v2143 = vsub.f32 %v138, %v2142
    %v2144 = vand.u32 %v2143, 4294901760
    %v2145 = vsub.f32 %v2143, %v2144
    %v2146 = vand.u32 %v2145, 4294901760
    %2147 = vmatpush1.msra.mxu0 %v2146
    %2148 = vmatprep.subr.mxu0 0.0
    %v2149 = vand.u32 %v137, 4294901760
    %v2150 = vsub.f32 %v137, %v2149
    %v2151 = vand.u32 %v2150, 4294901760
    %v2152 = vsub.f32 %v2150, %v2151
    %v2153 = vand.u32 %v2152, 4294901760
    %2154 = vmatpush1.msra.mxu0 %v2153
    %2155 = vmatprep.subr.mxu0 0.0
    %v2156 = vand.u32 %v136, 4294901760
    %v2157 = vsub.f32 %v136, %v2156
    %v2158 = vand.u32 %v2157, 4294901760
    %v2159 = vsub.f32 %v2157, %v2158
    %v2160 = vand.u32 %v2159, 4294901760
    %2161 = vmatpush1.msra.mxu0 %v2160
    %2162 = vmatprep.subr.mxu0 0.0
    %v2163 = vand.u32 %v135, 4294901760
    %v2164 = vsub.f32 %v135, %v2163
    %v2165 = vand.u32 %v2164, 4294901760
    %v2166 = vsub.f32 %v2164, %v2165
    %v2167 = vand.u32 %v2166, 4294901760
    %2168 = vmatpush1.msra.mxu0 %v2167
    %2169 = vmatprep.subr.mxu0 0.0
    %v2170 = vand.u32 %v134, 4294901760
    %v2171 = vsub.f32 %v134, %v2170
    %v2172 = vand.u32 %v2171, 4294901760
    %v2173 = vsub.f32 %v2171, %v2172
    %v2174 = vand.u32 %v2173, 4294901760
    %2175 = vmatpush1.msra.mxu0 %v2174
    %2176 = vmatprep.subr.mxu0 0.0
    %v2177 = vand.u32 %v133, 4294901760
    %v2178 = vsub.f32 %v133, %v2177
    %v2179 = vand.u32 %v2178, 4294901760
    %v2180 = vsub.f32 %v2178, %v2179
    %v2181 = vand.u32 %v2180, 4294901760
    %2182 = vmatpush1.msra.mxu0 %v2181
    %2183 = vmatprep.subr.mxu0 0.0
    %v2184 = vand.u32 %v132, 4294901760
    %v2185 = vsub.f32 %v132, %v2184
    %v2186 = vand.u32 %v2185, 4294901760
    %v2187 = vsub.f32 %v2185, %v2186
    %v2188 = vand.u32 %v2187, 4294901760
    %2189 = vmatpush1.msra.mxu0 %v2188
    %2190 = vmatprep.subr.mxu0 0.0
    %v2191 = vand.u32 %v131, 4294901760
    %v2192 = vsub.f32 %v131, %v2191
    %v2193 = vand.u32 %v2192, 4294901760
    %v2194 = vsub.f32 %v2192, %v2193
    %v2195 = vand.u32 %v2194, 4294901760
    %2196 = vmatpush1.msra.mxu0 %v2195
    %2197 = vmatprep.subr.mxu0 0.0
    %v2198 = vand.u32 %v130, 4294901760
    %v2199 = vsub.f32 %v130, %v2198
    %v2200 = vand.u32 %v2199, 4294901760
    %v2201 = vsub.f32 %v2199, %v2200
    %v2202 = vand.u32 %v2201, 4294901760
    %2203 = vmatpush1.msra.mxu0 %v2202
    %2204 = vmatprep.subr.mxu0 0.0
    %v2205 = vand.u32 %v129, 4294901760
    %v2206 = vsub.f32 %v129, %v2205
    %v2207 = vand.u32 %v2206, 4294901760
    %v2208 = vsub.f32 %v2206, %v2207
    %v2209 = vand.u32 %v2208, 4294901760
    %2210 = vmatpush1.msra.mxu0 %v2209
    %2211 = vmatprep.subr.mxu0 0.0
    %v2212 = vand.u32 %v128, 4294901760
    %v2213 = vsub.f32 %v128, %v2212
    %v2214 = vand.u32 %v2213, 4294901760
    %v2215 = vsub.f32 %v2213, %v2214
    %v2216 = vand.u32 %v2215, 4294901760
    %2217 = vmatpush1.msra.mxu0 %v2216
    %2218 = vmatprep.subr.mxu0 0.0
    %v2219 = vand.u32 %v127, 4294901760
    %v2220 = vsub.f32 %v127, %v2219
    %v2221 = vand.u32 %v2220, 4294901760
    %v2222 = vsub.f32 %v2220, %v2221
    %v2223 = vand.u32 %v2222, 4294901760
    %2224 = vmatpush1.msra.mxu0 %v2223
    %2225 = vmatprep.subr.mxu0 0.0
    %v2226 = vand.u32 %v158, 4294901760
    %v2227 = vsub.f32 %v158, %v2226
    %v2228 = vand.u32 %v2227, 4294901760
    %v2229 = vsub.f32 %v2227, %v2228
    %v2230 = vand.u32 %v2229, 4294901760
    %2231 = vmatpush2.msra.mxu0 %v2230
    %2232 = vmatprep.subr.mxu0 0.0
    %v2233 = vand.u32 %v157, 4294901760
    %v2234 = vsub.f32 %v157, %v2233
    %v2235 = vand.u32 %v2234, 4294901760
    %v2236 = vsub.f32 %v2234, %v2235
    %v2237 = vand.u32 %v2236, 4294901760
    %2238 = vmatpush2.msra.mxu0 %v2237
    %2239 = vmatprep.subr.mxu0 0.0
    %v2240 = vand.u32 %v156, 4294901760
    %v2241 = vsub.f32 %v156, %v2240
    %v2242 = vand.u32 %v2241, 4294901760
    %v2243 = vsub.f32 %v2241, %v2242
    %v2244 = vand.u32 %v2243, 4294901760
    %2245 = vmatpush2.msra.mxu0 %v2244
    %2246 = vmatprep.subr.mxu0 0.0
    %v2247 = vand.u32 %v155, 4294901760
    %v2248 = vsub.f32 %v155, %v2247
    %v2249 = vand.u32 %v2248, 4294901760
    %v2250 = vsub.f32 %v2248, %v2249
    %v2251 = vand.u32 %v2250, 4294901760
    %2252 = vmatpush2.msra.mxu0 %v2251
    %2253 = vmatprep.subr.mxu0 0.0
    %v2254 = vand.u32 %v154, 4294901760
    %v2255 = vsub.f32 %v154, %v2254
    %v2256 = vand.u32 %v2255, 4294901760
    %v2257 = vsub.f32 %v2255, %v2256
    %v2258 = vand.u32 %v2257, 4294901760
    %2259 = vmatpush2.msra.mxu0 %v2258
    %2260 = vmatprep.subr.mxu0 0.0
    %v2261 = vand.u32 %v153, 4294901760
    %v2262 = vsub.f32 %v153, %v2261
    %v2263 = vand.u32 %v2262, 4294901760
    %v2264 = vsub.f32 %v2262, %v2263
    %v2265 = vand.u32 %v2264, 4294901760
    %2266 = vmatpush2.msra.mxu0 %v2265
    %2267 = vmatprep.subr.mxu0 0.0
    %v2268 = vand.u32 %v152, 4294901760
    %v2269 = vsub.f32 %v152, %v2268
    %v2270 = vand.u32 %v2269, 4294901760
    %v2271 = vsub.f32 %v2269, %v2270
    %v2272 = vand.u32 %v2271, 4294901760
    %2273 = vmatpush2.msra.mxu0 %v2272
    %2274 = vmatprep.subr.mxu0 0.0
    %v2275 = vand.u32 %v151, 4294901760
    %v2276 = vsub.f32 %v151, %v2275
    %v2277 = vand.u32 %v2276, 4294901760
    %v2278 = vsub.f32 %v2276, %v2277
    %v2279 = vand.u32 %v2278, 4294901760
    %2280 = vmatpush2.msra.mxu0 %v2279
    %2281 = vmatprep.subr.mxu0 0.0
    %v2282 = vand.u32 %v150, 4294901760
    %v2283 = vsub.f32 %v150, %v2282
    %v2284 = vand.u32 %v2283, 4294901760
    %v2285 = vsub.f32 %v2283, %v2284
    %v2286 = vand.u32 %v2285, 4294901760
    %2287 = vmatpush2.msra.mxu0 %v2286
    %2288 = vmatprep.subr.mxu0 0.0
    %v2289 = vand.u32 %v149, 4294901760
    %v2290 = vsub.f32 %v149, %v2289
    %v2291 = vand.u32 %v2290, 4294901760
    %v2292 = vsub.f32 %v2290, %v2291
    %v2293 = vand.u32 %v2292, 4294901760
    %2294 = vmatpush2.msra.mxu0 %v2293
    %2295 = vmatprep.subr.mxu0 0.0
    %v2296 = vand.u32 %v148, 4294901760
    %v2297 = vsub.f32 %v148, %v2296
    %v2298 = vand.u32 %v2297, 4294901760
    %v2299 = vsub.f32 %v2297, %v2298
    %v2300 = vand.u32 %v2299, 4294901760
    %2301 = vmatpush2.msra.mxu0 %v2300
    %2302 = vmatprep.subr.mxu0 0.0
    %v2303 = vand.u32 %v147, 4294901760
    %v2304 = vsub.f32 %v147, %v2303
    %v2305 = vand.u32 %v2304, 4294901760
    %v2306 = vsub.f32 %v2304, %v2305
    %v2307 = vand.u32 %v2306, 4294901760
    %2308 = vmatpush2.msra.mxu0 %v2307
    %2309 = vmatprep.subr.mxu0 0.0
    %v2310 = vand.u32 %v146, 4294901760
    %v2311 = vsub.f32 %v146, %v2310
    %v2312 = vand.u32 %v2311, 4294901760
    %v2313 = vsub.f32 %v2311, %v2312
    %v2314 = vand.u32 %v2313, 4294901760
    %2315 = vmatpush2.msra.mxu0 %v2314
    %2316 = vmatprep.subr.mxu0 0.0
    %v2317 = vand.u32 %v145, 4294901760
    %v2318 = vsub.f32 %v145, %v2317
    %v2319 = vand.u32 %v2318, 4294901760
    %v2320 = vsub.f32 %v2318, %v2319
    %v2321 = vand.u32 %v2320, 4294901760
    %2322 = vmatpush2.msra.mxu0 %v2321
    %2323 = vmatprep.subr.mxu0 0.0
    %v2324 = vand.u32 %v144, 4294901760
    %v2325 = vsub.f32 %v144, %v2324
    %v2326 = vand.u32 %v2325, 4294901760
    %v2327 = vsub.f32 %v2325, %v2326
    %v2328 = vand.u32 %v2327, 4294901760
    %2329 = vmatpush2.msra.mxu0 %v2328
    %2330 = vmatprep.subr.mxu0 0.0
    %v2331 = vand.u32 %v143, 4294901760
    %v2332 = vsub.f32 %v143, %v2331
    %v2333 = vand.u32 %v2332, 4294901760
    %v2334 = vsub.f32 %v2332, %v2333
    %v2335 = vand.u32 %v2334, 4294901760
    %2336 = vmatpush2.msra.mxu0 %v2335
    %v2337 = vand.u32 %v255, 4294901760
    %2338 = vmatprep.mubr.f32.mxu0 %v2337
    %v2339 = vand.u32 %v247, 4294901760
    %2340 = vmatmul.mubr.f32.gmra.mxu0 %v2339
    %v2341 = vpop.f32.mrf.mxu0
    %v2342 = vadd.f32 %v2110, %v2341
    %v2343 = vpop.f32.mrf.mxu0
    %2344 = vdwg.mxu0
    %2345 = vmatprep.subr.mxu0 0.0
    %v2346 = vand.u32 %v142, 4294901760
    %v2347 = vsub.f32 %v142, %v2346
    %2348 = vmatpush1.msra.mxu0 %v2347
    %2349 = vmatprep.subr.mxu0 0.0
    %v2350 = vand.u32 %v141, 4294901760
    %v2351 = vsub.f32 %v141, %v2350
    %2352 = vmatpush1.msra.mxu0 %v2351
    %2353 = vmatprep.subr.mxu0 0.0
    %v2354 = vand.u32 %v140, 4294901760
    %v2355 = vsub.f32 %v140, %v2354
    %2356 = vmatpush1.msra.mxu0 %v2355
    %2357 = vmatprep.subr.mxu0 0.0
    %v2358 = vand.u32 %v139, 4294901760
    %v2359 = vsub.f32 %v139, %v2358
    %2360 = vmatpush1.msra.mxu0 %v2359
    %2361 = vmatprep.subr.mxu0 0.0
    %v2362 = vand.u32 %v138, 4294901760
    %v2363 = vsub.f32 %v138, %v2362
    %2364 = vmatpush1.msra.mxu0 %v2363
    %2365 = vmatprep.subr.mxu0 0.0
    %v2366 = vand.u32 %v137, 4294901760
    %v2367 = vsub.f32 %v137, %v2366
    %2368 = vmatpush1.msra.mxu0 %v2367
    %2369 = vmatprep.subr.mxu0 0.0
    %v2370 = vand.u32 %v136, 4294901760
    %v2371 = vsub.f32 %v136, %v2370
    %2372 = vmatpush1.msra.mxu0 %v2371
    %2373 = vmatprep.subr.mxu0 0.0
    %v2374 = vand.u32 %v135, 4294901760
    %v2375 = vsub.f32 %v135, %v2374
    %2376 = vmatpush1.msra.mxu0 %v2375
    %2377 = vmatprep.subr.mxu0 0.0
    %v2378 = vand.u32 %v134, 4294901760
    %v2379 = vsub.f32 %v134, %v2378
    %2380 = vmatpush1.msra.mxu0 %v2379
    %2381 = vmatprep.subr.mxu0 0.0
    %v2382 = vand.u32 %v133, 4294901760
    %v2383 = vsub.f32 %v133, %v2382
    %2384 = vmatpush1.msra.mxu0 %v2383
    %2385 = vmatprep.subr.mxu0 0.0
    %v2386 = vand.u32 %v132, 4294901760
    %v2387 = vsub.f32 %v132, %v2386
    %2388 = vmatpush1.msra.mxu0 %v2387
    %2389 = vmatprep.subr.mxu0 0.0
    %v2390 = vand.u32 %v131, 4294901760
    %v2391 = vsub.f32 %v131, %v2390
    %2392 = vmatpush1.msra.mxu0 %v2391
    %2393 = vmatprep.subr.mxu0 0.0
    %v2394 = vand.u32 %v130, 4294901760
    %v2395 = vsub.f32 %v130, %v2394
    %2396 = vmatpush1.msra.mxu0 %v2395
    %2397 = vmatprep.subr.mxu0 0.0
    %v2398 = vand.u32 %v129, 4294901760
    %v2399 = vsub.f32 %v129, %v2398
    %2400 = vmatpush1.msra.mxu0 %v2399
    %2401 = vmatprep.subr.mxu0 0.0
    %v2402 = vand.u32 %v128, 4294901760
    %v2403 = vsub.f32 %v128, %v2402
    %2404 = vmatpush1.msra.mxu0 %v2403
    %2405 = vmatprep.subr.mxu0 0.0
    %v2406 = vand.u32 %v127, 4294901760
    %v2407 = vsub.f32 %v127, %v2406
    %2408 = vmatpush1.msra.mxu0 %v2407
    %2409 = vmatprep.subr.mxu0 0.0
    %v2410 = vand.u32 %v158, 4294901760
    %v2411 = vsub.f32 %v158, %v2410
    %2412 = vmatpush2.msra.mxu0 %v2411
    %2413 = vmatprep.subr.mxu0 0.0
    %v2414 = vand.u32 %v157, 4294901760
    %v2415 = vsub.f32 %v157, %v2414
    %2416 = vmatpush2.msra.mxu0 %v2415
    %2417 = vmatprep.subr.mxu0 0.0
    %v2418 = vand.u32 %v156, 4294901760
    %v2419 = vsub.f32 %v156, %v2418
    %2420 = vmatpush2.msra.mxu0 %v2419
    %2421 = vmatprep.subr.mxu0 0.0
    %v2422 = vand.u32 %v155, 4294901760
    %v2423 = vsub.f32 %v155, %v2422
    %2424 = vmatpush2.msra.mxu0 %v2423
    %2425 = vmatprep.subr.mxu0 0.0
    %v2426 = vand.u32 %v154, 4294901760
    %v2427 = vsub.f32 %v154, %v2426
    %2428 = vmatpush2.msra.mxu0 %v2427
    %2429 = vmatprep.subr.mxu0 0.0
    %v2430 = vand.u32 %v153, 4294901760
    %v2431 = vsub.f32 %v153, %v2430
    %2432 = vmatpush2.msra.mxu0 %v2431
    %2433 = vmatprep.subr.mxu0 0.0
    %v2434 = vand.u32 %v152, 4294901760
    %v2435 = vsub.f32 %v152, %v2434
    %2436 = vmatpush2.msra.mxu0 %v2435
    %2437 = vmatprep.subr.mxu0 0.0
    %v2438 = vand.u32 %v151, 4294901760
    %v2439 = vsub.f32 %v151, %v2438
    %2440 = vmatpush2.msra.mxu0 %v2439
    %2441 = vmatprep.subr.mxu0 0.0
    %v2442 = vand.u32 %v150, 4294901760
    %v2443 = vsub.f32 %v150, %v2442
    %2444 = vmatpush2.msra.mxu0 %v2443
    %2445 = vmatprep.subr.mxu0 0.0
    %v2446 = vand.u32 %v149, 4294901760
    %v2447 = vsub.f32 %v149, %v2446
    %2448 = vmatpush2.msra.mxu0 %v2447
    %2449 = vmatprep.subr.mxu0 0.0
    %v2450 = vand.u32 %v148, 4294901760
    %v2451 = vsub.f32 %v148, %v2450
    %2452 = vmatpush2.msra.mxu0 %v2451
    %2453 = vmatprep.subr.mxu0 0.0
    %v2454 = vand.u32 %v147, 4294901760
    %v2455 = vsub.f32 %v147, %v2454
    %2456 = vmatpush2.msra.mxu0 %v2455
    %2457 = vmatprep.subr.mxu0 0.0
    %v2458 = vand.u32 %v146, 4294901760
    %v2459 = vsub.f32 %v146, %v2458
    %2460 = vmatpush2.msra.mxu0 %v2459
    %2461 = vmatprep.subr.mxu0 0.0
    %v2462 = vand.u32 %v145, 4294901760
    %v2463 = vsub.f32 %v145, %v2462
    %2464 = vmatpush2.msra.mxu0 %v2463
    %2465 = vmatprep.subr.mxu0 0.0
    %v2466 = vand.u32 %v144, 4294901760
    %v2467 = vsub.f32 %v144, %v2466
    %2468 = vmatpush2.msra.mxu0 %v2467
    %2469 = vmatprep.subr.mxu0 0.0
    %v2470 = vand.u32 %v143, 4294901760
    %v2471 = vsub.f32 %v143, %v2470
    %2472 = vmatpush2.msra.mxu0 %v2471
    %v2473 = vand.u32 %v255, 4294901760
    %v2474 = vsub.f32 %v255, %v2473
    %2475 = vmatprep.mubr.f32.mxu0 %v2474
    %v2476 = vand.u32 %v247, 4294901760
    %v2477 = vsub.f32 %v247, %v2476
    %2478 = vmatmul.mubr.f32.gmra.mxu0 %v2477
    %v2479 = vpop.f32.mrf.mxu0
    %v2480 = vadd.f32 %v2342, %v2479
    %v2481 = vpop.f32.mrf.mxu0
    %2482 = vdwg.mxu0
    %2483 = vmatprep.subr.mxu0 0.0
    %v2484 = vand.u32 %v142, 4294901760
    %2485 = vmatpush1.msra.mxu0 %v2484
    %2486 = vmatprep.subr.mxu0 0.0
    %v2487 = vand.u32 %v141, 4294901760
    %2488 = vmatpush1.msra.mxu0 %v2487
    %2489 = vmatprep.subr.mxu0 0.0
    %v2490 = vand.u32 %v140, 4294901760
    %2491 = vmatpush1.msra.mxu0 %v2490
    %2492 = vmatprep.subr.mxu0 0.0
    %v2493 = vand.u32 %v139, 4294901760
    %2494 = vmatpush1.msra.mxu0 %v2493
    %2495 = vmatprep.subr.mxu0 0.0
    %v2496 = vand.u32 %v138, 4294901760
    %2497 = vmatpush1.msra.mxu0 %v2496
    %2498 = vmatprep.subr.mxu0 0.0
    %v2499 = vand.u32 %v137, 4294901760
    %2500 = vmatpush1.msra.mxu0 %v2499
    %2501 = vmatprep.subr.mxu0 0.0
    %v2502 = vand.u32 %v136, 4294901760
    %2503 = vmatpush1.msra.mxu0 %v2502
    %2504 = vmatprep.subr.mxu0 0.0
    %v2505 = vand.u32 %v135, 4294901760
    %2506 = vmatpush1.msra.mxu0 %v2505
    %2507 = vmatprep.subr.mxu0 0.0
    %v2508 = vand.u32 %v134, 4294901760
    %2509 = vmatpush1.msra.mxu0 %v2508
    %2510 = vmatprep.subr.mxu0 0.0
    %v2511 = vand.u32 %v133, 4294901760
    %2512 = vmatpush1.msra.mxu0 %v2511
    %2513 = vmatprep.subr.mxu0 0.0
    %v2514 = vand.u32 %v132, 4294901760
    %2515 = vmatpush1.msra.mxu0 %v2514
    %2516 = vmatprep.subr.mxu0 0.0
    %v2517 = vand.u32 %v131, 4294901760
    %2518 = vmatpush1.msra.mxu0 %v2517
    %2519 = vmatprep.subr.mxu0 0.0
    %v2520 = vand.u32 %v130, 4294901760
    %2521 = vmatpush1.msra.mxu0 %v2520
    %2522 = vmatprep.subr.mxu0 0.0
    %v2523 = vand.u32 %v129, 4294901760
    %2524 = vmatpush1.msra.mxu0 %v2523
    %2525 = vmatprep.subr.mxu0 0.0
    %v2526 = vand.u32 %v128, 4294901760
    %2527 = vmatpush1.msra.mxu0 %v2526
    %2528 = vmatprep.subr.mxu0 0.0
    %v2529 = vand.u32 %v127, 4294901760
    %2530 = vmatpush1.msra.mxu0 %v2529
    %2531 = vmatprep.subr.mxu0 0.0
    %v2532 = vand.u32 %v158, 4294901760
    %2533 = vmatpush2.msra.mxu0 %v2532
    %2534 = vmatprep.subr.mxu0 0.0
    %v2535 = vand.u32 %v157, 4294901760
    %2536 = vmatpush2.msra.mxu0 %v2535
    %2537 = vmatprep.subr.mxu0 0.0
    %v2538 = vand.u32 %v156, 4294901760
    %2539 = vmatpush2.msra.mxu0 %v2538
    %2540 = vmatprep.subr.mxu0 0.0
    %v2541 = vand.u32 %v155, 4294901760
    %2542 = vmatpush2.msra.mxu0 %v2541
    %2543 = vmatprep.subr.mxu0 0.0
    %v2544 = vand.u32 %v154, 4294901760
    %2545 = vmatpush2.msra.mxu0 %v2544
    %2546 = vmatprep.subr.mxu0 0.0
    %v2547 = vand.u32 %v153, 4294901760
    %2548 = vmatpush2.msra.mxu0 %v2547
    %2549 = vmatprep.subr.mxu0 0.0
    %v2550 = vand.u32 %v152, 4294901760
    %2551 = vmatpush2.msra.mxu0 %v2550
    %2552 = vmatprep.subr.mxu0 0.0
    %v2553 = vand.u32 %v151, 4294901760
    %2554 = vmatpush2.msra.mxu0 %v2553
    %2555 = vmatprep.subr.mxu0 0.0
    %v2556 = vand.u32 %v150, 4294901760
    %2557 = vmatpush2.msra.mxu0 %v2556
    %2558 = vmatprep.subr.mxu0 0.0
    %v2559 = vand.u32 %v149, 4294901760
    %2560 = vmatpush2.msra.mxu0 %v2559
    %2561 = vmatprep.subr.mxu0 0.0
    %v2562 = vand.u32 %v148, 4294901760
    %2563 = vmatpush2.msra.mxu0 %v2562
    %2564 = vmatprep.subr.mxu0 0.0
    %v2565 = vand.u32 %v147, 4294901760
    %2566 = vmatpush2.msra.mxu0 %v2565
    %2567 = vmatprep.subr.mxu0 0.0
    %v2568 = vand.u32 %v146, 4294901760
    %2569 = vmatpush2.msra.mxu0 %v2568
    %2570 = vmatprep.subr.mxu0 0.0
    %v2571 = vand.u32 %v145, 4294901760
    %2572 = vmatpush2.msra.mxu0 %v2571
    %2573 = vmatprep.subr.mxu0 0.0
    %v2574 = vand.u32 %v144, 4294901760
    %2575 = vmatpush2.msra.mxu0 %v2574
    %2576 = vmatprep.subr.mxu0 0.0
    %v2577 = vand.u32 %v143, 4294901760
    %2578 = vmatpush2.msra.mxu0 %v2577
    %v2579 = vand.u32 %v255, 4294901760
    %v2580 = vsub.f32 %v255, %v2579
    %v2581 = vand.u32 %v2580, 4294901760
    %2582 = vmatprep.mubr.f32.mxu0 %v2581
    %v2583 = vand.u32 %v247, 4294901760
    %v2584 = vsub.f32 %v247, %v2583
    %v2585 = vand.u32 %v2584, 4294901760
    %2586 = vmatmul.mubr.f32.gmra.mxu0 %v2585
    %v2587 = vpop.f32.mrf.mxu0
    %v2588 = vadd.f32 %v2480, %v2587
    %v2589 = vpop.f32.mrf.mxu0
    %2590 = vdwg.mxu0
    %2591 = vmatprep.subr.mxu0 0.0
    %v2592 = vand.u32 %v142, 4294901760
    %v2593 = vsub.f32 %v142, %v2592
    %v2594 = vand.u32 %v2593, 4294901760
    %2595 = vmatpush1.msra.mxu0 %v2594
    %2596 = vmatprep.subr.mxu0 0.0
    %v2597 = vand.u32 %v141, 4294901760
    %v2598 = vsub.f32 %v141, %v2597
    %v2599 = vand.u32 %v2598, 4294901760
    %2600 = vmatpush1.msra.mxu0 %v2599
    %2601 = vmatprep.subr.mxu0 0.0
    %v2602 = vand.u32 %v140, 4294901760
    %v2603 = vsub.f32 %v140, %v2602
    %v2604 = vand.u32 %v2603, 4294901760
    %2605 = vmatpush1.msra.mxu0 %v2604
    %2606 = vmatprep.subr.mxu0 0.0
    %v2607 = vand.u32 %v139, 4294901760
    %v2608 = vsub.f32 %v139, %v2607
    %v2609 = vand.u32 %v2608, 4294901760
    %2610 = vmatpush1.msra.mxu0 %v2609
    %2611 = vmatprep.subr.mxu0 0.0
    %v2612 = vand.u32 %v138, 4294901760
    %v2613 = vsub.f32 %v138, %v2612
    %v2614 = vand.u32 %v2613, 4294901760
    %2615 = vmatpush1.msra.mxu0 %v2614
    %2616 = vmatprep.subr.mxu0 0.0
    %v2617 = vand.u32 %v137, 4294901760
    %v2618 = vsub.f32 %v137, %v2617
    %v2619 = vand.u32 %v2618, 4294901760
    %2620 = vmatpush1.msra.mxu0 %v2619
    %2621 = vmatprep.subr.mxu0 0.0
    %v2622 = vand.u32 %v136, 4294901760
    %v2623 = vsub.f32 %v136, %v2622
    %v2624 = vand.u32 %v2623, 4294901760
    %2625 = vmatpush1.msra.mxu0 %v2624
    %2626 = vmatprep.subr.mxu0 0.0
    %v2627 = vand.u32 %v135, 4294901760
    %v2628 = vsub.f32 %v135, %v2627
    %v2629 = vand.u32 %v2628, 4294901760
    %2630 = vmatpush1.msra.mxu0 %v2629
    %2631 = vmatprep.subr.mxu0 0.0
    %v2632 = vand.u32 %v134, 4294901760
    %v2633 = vsub.f32 %v134, %v2632
    %v2634 = vand.u32 %v2633, 4294901760
    %2635 = vmatpush1.msra.mxu0 %v2634
    %2636 = vmatprep.subr.mxu0 0.0
    %v2637 = vand.u32 %v133, 4294901760
    %v2638 = vsub.f32 %v133, %v2637
    %v2639 = vand.u32 %v2638, 4294901760
    %2640 = vmatpush1.msra.mxu0 %v2639
    %2641 = vmatprep.subr.mxu0 0.0
    %v2642 = vand.u32 %v132, 4294901760
    %v2643 = vsub.f32 %v132, %v2642
    %v2644 = vand.u32 %v2643, 4294901760
    %2645 = vmatpush1.msra.mxu0 %v2644
    %2646 = vmatprep.subr.mxu0 0.0
    %v2647 = vand.u32 %v131, 4294901760
    %v2648 = vsub.f32 %v131, %v2647
    %v2649 = vand.u32 %v2648, 4294901760
    %2650 = vmatpush1.msra.mxu0 %v2649
    %2651 = vmatprep.subr.mxu0 0.0
    %v2652 = vand.u32 %v130, 4294901760
    %v2653 = vsub.f32 %v130, %v2652
    %v2654 = vand.u32 %v2653, 4294901760
    %2655 = vmatpush1.msra.mxu0 %v2654
    %2656 = vmatprep.subr.mxu0 0.0
    %v2657 = vand.u32 %v129, 4294901760
    %v2658 = vsub.f32 %v129, %v2657
    %v2659 = vand.u32 %v2658, 4294901760
    %2660 = vmatpush1.msra.mxu0 %v2659
    %2661 = vmatprep.subr.mxu0 0.0
    %v2662 = vand.u32 %v128, 4294901760
    %v2663 = vsub.f32 %v128, %v2662
    %v2664 = vand.u32 %v2663, 4294901760
    %2665 = vmatpush1.msra.mxu0 %v2664
    %2666 = vmatprep.subr.mxu0 0.0
    %v2667 = vand.u32 %v127, 4294901760
    %v2668 = vsub.f32 %v127, %v2667
    %v2669 = vand.u32 %v2668, 4294901760
    %2670 = vmatpush1.msra.mxu0 %v2669
    %2671 = vmatprep.subr.mxu0 0.0
    %v2672 = vand.u32 %v158, 4294901760
    %v2673 = vsub.f32 %v158, %v2672
    %v2674 = vand.u32 %v2673, 4294901760
    %2675 = vmatpush2.msra.mxu0 %v2674
    %2676 = vmatprep.subr.mxu0 0.0
    %v2677 = vand.u32 %v157, 4294901760
    %v2678 = vsub.f32 %v157, %v2677
    %v2679 = vand.u32 %v2678, 4294901760
    %2680 = vmatpush2.msra.mxu0 %v2679
    %2681 = vmatprep.subr.mxu0 0.0
    %v2682 = vand.u32 %v156, 4294901760
    %v2683 = vsub.f32 %v156, %v2682
    %v2684 = vand.u32 %v2683, 4294901760
    %2685 = vmatpush2.msra.mxu0 %v2684
    %2686 = vmatprep.subr.mxu0 0.0
    %v2687 = vand.u32 %v155, 4294901760
    %v2688 = vsub.f32 %v155, %v2687
    %v2689 = vand.u32 %v2688, 4294901760
    %2690 = vmatpush2.msra.mxu0 %v2689
    %2691 = vmatprep.subr.mxu0 0.0
    %v2692 = vand.u32 %v154, 4294901760
    %v2693 = vsub.f32 %v154, %v2692
    %v2694 = vand.u32 %v2693, 4294901760
    %2695 = vmatpush2.msra.mxu0 %v2694
    %2696 = vmatprep.subr.mxu0 0.0
    %v2697 = vand.u32 %v153, 4294901760
    %v2698 = vsub.f32 %v153, %v2697
    %v2699 = vand.u32 %v2698, 4294901760
    %2700 = vmatpush2.msra.mxu0 %v2699
    %2701 = vmatprep.subr.mxu0 0.0
    %v2702 = vand.u32 %v152, 4294901760
    %v2703 = vsub.f32 %v152, %v2702
    %v2704 = vand.u32 %v2703, 4294901760
    %2705 = vmatpush2.msra.mxu0 %v2704
    %2706 = vmatprep.subr.mxu0 0.0
    %v2707 = vand.u32 %v151, 4294901760
    %v2708 = vsub.f32 %v151, %v2707
    %v2709 = vand.u32 %v2708, 4294901760
    %2710 = vmatpush2.msra.mxu0 %v2709
    %2711 = vmatprep.subr.mxu0 0.0
    %v2712 = vand.u32 %v150, 4294901760
    %v2713 = vsub.f32 %v150, %v2712
    %v2714 = vand.u32 %v2713, 4294901760
    %2715 = vmatpush2.msra.mxu0 %v2714
    %2716 = vmatprep.subr.mxu0 0.0
    %v2717 = vand.u32 %v149, 4294901760
    %v2718 = vsub.f32 %v149, %v2717
    %v2719 = vand.u32 %v2718, 4294901760
    %2720 = vmatpush2.msra.mxu0 %v2719
    %2721 = vmatprep.subr.mxu0 0.0
    %v2722 = vand.u32 %v148, 4294901760
    %v2723 = vsub.f32 %v148, %v2722
    %v2724 = vand.u32 %v2723, 4294901760
    %2725 = vmatpush2.msra.mxu0 %v2724
    %2726 = vmatprep.subr.mxu0 0.0
    %v2727 = vand.u32 %v147, 4294901760
    %v2728 = vsub.f32 %v147, %v2727
    %v2729 = vand.u32 %v2728, 4294901760
    %2730 = vmatpush2.msra.mxu0 %v2729
    %2731 = vmatprep.subr.mxu0 0.0
    %v2732 = vand.u32 %v146, 4294901760
    %v2733 = vsub.f32 %v146, %v2732
    %v2734 = vand.u32 %v2733, 4294901760
    %2735 = vmatpush2.msra.mxu0 %v2734
    %2736 = vmatprep.subr.mxu0 0.0
    %v2737 = vand.u32 %v145, 4294901760
    %v2738 = vsub.f32 %v145, %v2737
    %v2739 = vand.u32 %v2738, 4294901760
    %2740 = vmatpush2.msra.mxu0 %v2739
    %2741 = vmatprep.subr.mxu0 0.0
    %v2742 = vand.u32 %v144, 4294901760
    %v2743 = vsub.f32 %v144, %v2742
    %v2744 = vand.u32 %v2743, 4294901760
    %2745 = vmatpush2.msra.mxu0 %v2744
    %2746 = vmatprep.subr.mxu0 0.0
    %v2747 = vand.u32 %v143, 4294901760
    %v2748 = vsub.f32 %v143, %v2747
    %v2749 = vand.u32 %v2748, 4294901760
    %2750 = vmatpush2.msra.mxu0 %v2749
    %v2751 = vand.u32 %v255, 4294901760
    %2752 = vmatprep.mubr.f32.mxu0 %v2751
    %v2753 = vand.u32 %v247, 4294901760
    %2754 = vmatmul.mubr.f32.gmra.mxu0 %v2753
    %v2755 = vpop.f32.mrf.mxu0
    %v2756 = vadd.f32 %v2588, %v2755
    %v2757 = vpop.f32.mrf.mxu0
    %2758 = vdwg.mxu0
    %2759 = vmatprep.subr.mxu0 0.0
    %v2760 = vand.u32 %v142, 4294901760
    %2761 = vmatpush1.msra.mxu0 %v2760
    %2762 = vmatprep.subr.mxu0 0.0
    %v2763 = vand.u32 %v141, 4294901760
    %2764 = vmatpush1.msra.mxu0 %v2763
    %2765 = vmatprep.subr.mxu0 0.0
    %v2766 = vand.u32 %v140, 4294901760
    %2767 = vmatpush1.msra.mxu0 %v2766
    %2768 = vmatprep.subr.mxu0 0.0
    %v2769 = vand.u32 %v139, 4294901760
    %2770 = vmatpush1.msra.mxu0 %v2769
    %2771 = vmatprep.subr.mxu0 0.0
    %v2772 = vand.u32 %v138, 4294901760
    %2773 = vmatpush1.msra.mxu0 %v2772
    %2774 = vmatprep.subr.mxu0 0.0
    %v2775 = vand.u32 %v137, 4294901760
    %2776 = vmatpush1.msra.mxu0 %v2775
    %2777 = vmatprep.subr.mxu0 0.0
    %v2778 = vand.u32 %v136, 4294901760
    %2779 = vmatpush1.msra.mxu0 %v2778
    %2780 = vmatprep.subr.mxu0 0.0
    %v2781 = vand.u32 %v135, 4294901760
    %2782 = vmatpush1.msra.mxu0 %v2781
    %2783 = vmatprep.subr.mxu0 0.0
    %v2784 = vand.u32 %v134, 4294901760
    %2785 = vmatpush1.msra.mxu0 %v2784
    %2786 = vmatprep.subr.mxu0 0.0
    %v2787 = vand.u32 %v133, 4294901760
    %2788 = vmatpush1.msra.mxu0 %v2787
    %2789 = vmatprep.subr.mxu0 0.0
    %v2790 = vand.u32 %v132, 4294901760
    %2791 = vmatpush1.msra.mxu0 %v2790
    %2792 = vmatprep.subr.mxu0 0.0
    %v2793 = vand.u32 %v131, 4294901760
    %2794 = vmatpush1.msra.mxu0 %v2793
    %2795 = vmatprep.subr.mxu0 0.0
    %v2796 = vand.u32 %v130, 4294901760
    %2797 = vmatpush1.msra.mxu0 %v2796
    %2798 = vmatprep.subr.mxu0 0.0
    %v2799 = vand.u32 %v129, 4294901760
    %2800 = vmatpush1.msra.mxu0 %v2799
    %2801 = vmatprep.subr.mxu0 0.0
    %v2802 = vand.u32 %v128, 4294901760
    %2803 = vmatpush1.msra.mxu0 %v2802
    %2804 = vmatprep.subr.mxu0 0.0
    %v2805 = vand.u32 %v127, 4294901760
    %2806 = vmatpush1.msra.mxu0 %v2805
    %2807 = vmatprep.subr.mxu0 0.0
    %v2808 = vand.u32 %v158, 4294901760
    %2809 = vmatpush2.msra.mxu0 %v2808
    %2810 = vmatprep.subr.mxu0 0.0
    %v2811 = vand.u32 %v157, 4294901760
    %2812 = vmatpush2.msra.mxu0 %v2811
    %2813 = vmatprep.subr.mxu0 0.0
    %v2814 = vand.u32 %v156, 4294901760
    %2815 = vmatpush2.msra.mxu0 %v2814
    %2816 = vmatprep.subr.mxu0 0.0
    %v2817 = vand.u32 %v155, 4294901760
    %2818 = vmatpush2.msra.mxu0 %v2817
    %2819 = vmatprep.subr.mxu0 0.0
    %v2820 = vand.u32 %v154, 4294901760
    %2821 = vmatpush2.msra.mxu0 %v2820
    %2822 = vmatprep.subr.mxu0 0.0
    %v2823 = vand.u32 %v153, 4294901760
    %2824 = vmatpush2.msra.mxu0 %v2823
    %2825 = vmatprep.subr.mxu0 0.0
    %v2826 = vand.u32 %v152, 4294901760
    %2827 = vmatpush2.msra.mxu0 %v2826
    %2828 = vmatprep.subr.mxu0 0.0
    %v2829 = vand.u32 %v151, 4294901760
    %2830 = vmatpush2.msra.mxu0 %v2829
    %2831 = vmatprep.subr.mxu0 0.0
    %v2832 = vand.u32 %v150, 4294901760
    %2833 = vmatpush2.msra.mxu0 %v2832
    %2834 = vmatprep.subr.mxu0 0.0
    %v2835 = vand.u32 %v149, 4294901760
    %2836 = vmatpush2.msra.mxu0 %v2835
    %2837 = vmatprep.subr.mxu0 0.0
    %v2838 = vand.u32 %v148, 4294901760
    %2839 = vmatpush2.msra.mxu0 %v2838
    %2840 = vmatprep.subr.mxu0 0.0
    %v2841 = vand.u32 %v147, 4294901760
    %2842 = vmatpush2.msra.mxu0 %v2841
    %2843 = vmatprep.subr.mxu0 0.0
    %v2844 = vand.u32 %v146, 4294901760
    %2845 = vmatpush2.msra.mxu0 %v2844
    %2846 = vmatprep.subr.mxu0 0.0
    %v2847 = vand.u32 %v145, 4294901760
    %2848 = vmatpush2.msra.mxu0 %v2847
    %2849 = vmatprep.subr.mxu0 0.0
    %v2850 = vand.u32 %v144, 4294901760
    %2851 = vmatpush2.msra.mxu0 %v2850
    %2852 = vmatprep.subr.mxu0 0.0
    %v2853 = vand.u32 %v143, 4294901760
    %2854 = vmatpush2.msra.mxu0 %v2853
    %v2855 = vand.u32 %v255, 4294901760
    %2856 = vmatprep.mubr.f32.mxu0 %v2855
    %v2857 = vand.u32 %v247, 4294901760
    %2858 = vmatmul.mubr.f32.gmra.mxu0 %v2857
    %v2859 = vpop.f32.mrf.mxu0
    %v2860 = vadd.f32 %v2756, %v2859
    %v2861 = vpop.f32.mrf.mxu0
    %2862 = vdwg.mxu0
    %2863 = vmatprep.subr.mxu0 0.0
    %v2864 = vand.u32 %v174, 4294901760
    %2865 = vmatpush1.msra.mxu0 %v2864
    %2866 = vmatprep.subr.mxu0 0.0
    %v2867 = vand.u32 %v173, 4294901760
    %2868 = vmatpush1.msra.mxu0 %v2867
    %2869 = vmatprep.subr.mxu0 0.0
    %v2870 = vand.u32 %v172, 4294901760
    %2871 = vmatpush1.msra.mxu0 %v2870
    %2872 = vmatprep.subr.mxu0 0.0
    %v2873 = vand.u32 %v171, 4294901760
    %2874 = vmatpush1.msra.mxu0 %v2873
    %2875 = vmatprep.subr.mxu0 0.0
    %v2876 = vand.u32 %v170, 4294901760
    %2877 = vmatpush1.msra.mxu0 %v2876
    %2878 = vmatprep.subr.mxu0 0.0
    %v2879 = vand.u32 %v169, 4294901760
    %2880 = vmatpush1.msra.mxu0 %v2879
    %2881 = vmatprep.subr.mxu0 0.0
    %v2882 = vand.u32 %v168, 4294901760
    %2883 = vmatpush1.msra.mxu0 %v2882
    %2884 = vmatprep.subr.mxu0 0.0
    %v2885 = vand.u32 %v167, 4294901760
    %2886 = vmatpush1.msra.mxu0 %v2885
    %2887 = vmatprep.subr.mxu0 0.0
    %v2888 = vand.u32 %v166, 4294901760
    %2889 = vmatpush1.msra.mxu0 %v2888
    %2890 = vmatprep.subr.mxu0 0.0
    %v2891 = vand.u32 %v165, 4294901760
    %2892 = vmatpush1.msra.mxu0 %v2891
    %2893 = vmatprep.subr.mxu0 0.0
    %v2894 = vand.u32 %v164, 4294901760
    %2895 = vmatpush1.msra.mxu0 %v2894
    %2896 = vmatprep.subr.mxu0 0.0
    %v2897 = vand.u32 %v163, 4294901760
    %2898 = vmatpush1.msra.mxu0 %v2897
    %2899 = vmatprep.subr.mxu0 0.0
    %v2900 = vand.u32 %v162, 4294901760
    %2901 = vmatpush1.msra.mxu0 %v2900
    %2902 = vmatprep.subr.mxu0 0.0
    %v2903 = vand.u32 %v161, 4294901760
    %2904 = vmatpush1.msra.mxu0 %v2903
    %2905 = vmatprep.subr.mxu0 0.0
    %v2906 = vand.u32 %v160, 4294901760
    %2907 = vmatpush1.msra.mxu0 %v2906
    %2908 = vmatprep.subr.mxu0 0.0
    %v2909 = vand.u32 %v159, 4294901760
    %2910 = vmatpush1.msra.mxu0 %v2909
    %2911 = vmatprep.subr.mxu0 0.0
    %v2912 = vand.u32 %v190, 4294901760
    %2913 = vmatpush2.msra.mxu0 %v2912
    %2914 = vmatprep.subr.mxu0 0.0
    %v2915 = vand.u32 %v189, 4294901760
    %2916 = vmatpush2.msra.mxu0 %v2915
    %2917 = vmatprep.subr.mxu0 0.0
    %v2918 = vand.u32 %v188, 4294901760
    %2919 = vmatpush2.msra.mxu0 %v2918
    %2920 = vmatprep.subr.mxu0 0.0
    %v2921 = vand.u32 %v187, 4294901760
    %2922 = vmatpush2.msra.mxu0 %v2921
    %2923 = vmatprep.subr.mxu0 0.0
    %v2924 = vand.u32 %v186, 4294901760
    %2925 = vmatpush2.msra.mxu0 %v2924
    %2926 = vmatprep.subr.mxu0 0.0
    %v2927 = vand.u32 %v185, 4294901760
    %2928 = vmatpush2.msra.mxu0 %v2927
    %2929 = vmatprep.subr.mxu0 0.0
    %v2930 = vand.u32 %v184, 4294901760
    %2931 = vmatpush2.msra.mxu0 %v2930
    %2932 = vmatprep.subr.mxu0 0.0
    %v2933 = vand.u32 %v183, 4294901760
    %2934 = vmatpush2.msra.mxu0 %v2933
    %2935 = vmatprep.subr.mxu0 0.0
    %v2936 = vand.u32 %v182, 4294901760
    %2937 = vmatpush2.msra.mxu0 %v2936
    %2938 = vmatprep.subr.mxu0 0.0
    %v2939 = vand.u32 %v181, 4294901760
    %2940 = vmatpush2.msra.mxu0 %v2939
    %2941 = vmatprep.subr.mxu0 0.0
    %v2942 = vand.u32 %v180, 4294901760
    %2943 = vmatpush2.msra.mxu0 %v2942
    %2944 = vmatprep.subr.mxu0 0.0
    %v2945 = vand.u32 %v179, 4294901760
    %2946 = vmatpush2.msra.mxu0 %v2945
    %2947 = vmatprep.subr.mxu0 0.0
    %v2948 = vand.u32 %v178, 4294901760
    %2949 = vmatpush2.msra.mxu0 %v2948
    %2950 = vmatprep.subr.mxu0 0.0
    %v2951 = vand.u32 %v177, 4294901760
    %2952 = vmatpush2.msra.mxu0 %v2951
    %2953 = vmatprep.subr.mxu0 0.0
    %v2954 = vand.u32 %v176, 4294901760
    %2955 = vmatpush2.msra.mxu0 %v2954
    %2956 = vmatprep.subr.mxu0 0.0
    %v2957 = vand.u32 %v175, 4294901760
    %2958 = vmatpush2.msra.mxu0 %v2957
    %v2959 = vand.u32 %v256, 4294901760
    %v2960 = vsub.f32 %v256, %v2959
    %v2961 = vand.u32 %v2960, 4294901760
    %v2962 = vsub.f32 %v2960, %v2961
    %v2963 = vand.u32 %v2962, 4294901760
    %2964 = vmatprep.mubr.f32.mxu0 %v2963
    %v2965 = vand.u32 %v254, 4294901760
    %v2966 = vsub.f32 %v254, %v2965
    %v2967 = vand.u32 %v2966, 4294901760
    %v2968 = vsub.f32 %v2966, %v2967
    %v2969 = vand.u32 %v2968, 4294901760
    %2970 = vmatmul.mubr.f32.gmra.mxu0 %v2969
    %v2971 = vpop.f32.mrf.mxu0
    %v2972 = vadd.f32 %v2860, %v2971
    %v2973 = vpop.f32.mrf.mxu0
    %2974 = vdwg.mxu0
    %2975 = vmatprep.subr.mxu0 0.0
    %v2976 = vand.u32 %v174, 4294901760
    %v2977 = vsub.f32 %v174, %v2976
    %v2978 = vand.u32 %v2977, 4294901760
    %v2979 = vsub.f32 %v2977, %v2978
    %v2980 = vand.u32 %v2979, 4294901760
    %2981 = vmatpush1.msra.mxu0 %v2980
    %2982 = vmatprep.subr.mxu0 0.0
    %v2983 = vand.u32 %v173, 4294901760
    %v2984 = vsub.f32 %v173, %v2983
    %v2985 = vand.u32 %v2984, 4294901760
    %v2986 = vsub.f32 %v2984, %v2985
    %v2987 = vand.u32 %v2986, 4294901760
    %2988 = vmatpush1.msra.mxu0 %v2987
    %2989 = vmatprep.subr.mxu0 0.0
    %v2990 = vand.u32 %v172, 4294901760
    %v2991 = vsub.f32 %v172, %v2990
    %v2992 = vand.u32 %v2991, 4294901760
    %v2993 = vsub.f32 %v2991, %v2992
    %v2994 = vand.u32 %v2993, 4294901760
    %2995 = vmatpush1.msra.mxu0 %v2994
    %2996 = vmatprep.subr.mxu0 0.0
    %v2997 = vand.u32 %v171, 4294901760
    %v2998 = vsub.f32 %v171, %v2997
    %v2999 = vand.u32 %v2998, 4294901760
    %v3000 = vsub.f32 %v2998, %v2999
    %v3001 = vand.u32 %v3000, 4294901760
    %3002 = vmatpush1.msra.mxu0 %v3001
    %3003 = vmatprep.subr.mxu0 0.0
    %v3004 = vand.u32 %v170, 4294901760
    %v3005 = vsub.f32 %v170, %v3004
    %v3006 = vand.u32 %v3005, 4294901760
    %v3007 = vsub.f32 %v3005, %v3006
    %v3008 = vand.u32 %v3007, 4294901760
    %3009 = vmatpush1.msra.mxu0 %v3008
    %3010 = vmatprep.subr.mxu0 0.0
    %v3011 = vand.u32 %v169, 4294901760
    %v3012 = vsub.f32 %v169, %v3011
    %v3013 = vand.u32 %v3012, 4294901760
    %v3014 = vsub.f32 %v3012, %v3013
    %v3015 = vand.u32 %v3014, 4294901760
    %3016 = vmatpush1.msra.mxu0 %v3015
    %3017 = vmatprep.subr.mxu0 0.0
    %v3018 = vand.u32 %v168, 4294901760
    %v3019 = vsub.f32 %v168, %v3018
    %v3020 = vand.u32 %v3019, 4294901760
    %v3021 = vsub.f32 %v3019, %v3020
    %v3022 = vand.u32 %v3021, 4294901760
    %3023 = vmatpush1.msra.mxu0 %v3022
    %3024 = vmatprep.subr.mxu0 0.0
    %v3025 = vand.u32 %v167, 4294901760
    %v3026 = vsub.f32 %v167, %v3025
    %v3027 = vand.u32 %v3026, 4294901760
    %v3028 = vsub.f32 %v3026, %v3027
    %v3029 = vand.u32 %v3028, 4294901760
    %3030 = vmatpush1.msra.mxu0 %v3029
    %3031 = vmatprep.subr.mxu0 0.0
    %v3032 = vand.u32 %v166, 4294901760
    %v3033 = vsub.f32 %v166, %v3032
    %v3034 = vand.u32 %v3033, 4294901760
    %v3035 = vsub.f32 %v3033, %v3034
    %v3036 = vand.u32 %v3035, 4294901760
    %3037 = vmatpush1.msra.mxu0 %v3036
    %3038 = vmatprep.subr.mxu0 0.0
    %v3039 = vand.u32 %v165, 4294901760
    %v3040 = vsub.f32 %v165, %v3039
    %v3041 = vand.u32 %v3040, 4294901760
    %v3042 = vsub.f32 %v3040, %v3041
    %v3043 = vand.u32 %v3042, 4294901760
    %3044 = vmatpush1.msra.mxu0 %v3043
    %3045 = vmatprep.subr.mxu0 0.0
    %v3046 = vand.u32 %v164, 4294901760
    %v3047 = vsub.f32 %v164, %v3046
    %v3048 = vand.u32 %v3047, 4294901760
    %v3049 = vsub.f32 %v3047, %v3048
    %v3050 = vand.u32 %v3049, 4294901760
    %3051 = vmatpush1.msra.mxu0 %v3050
    %3052 = vmatprep.subr.mxu0 0.0
    %v3053 = vand.u32 %v163, 4294901760
    %v3054 = vsub.f32 %v163, %v3053
    %v3055 = vand.u32 %v3054, 4294901760
    %v3056 = vsub.f32 %v3054, %v3055
    %v3057 = vand.u32 %v3056, 4294901760
    %3058 = vmatpush1.msra.mxu0 %v3057
    %3059 = vmatprep.subr.mxu0 0.0
    %v3060 = vand.u32 %v162, 4294901760
    %v3061 = vsub.f32 %v162, %v3060
    %v3062 = vand.u32 %v3061, 4294901760
    %v3063 = vsub.f32 %v3061, %v3062
    %v3064 = vand.u32 %v3063, 4294901760
    %3065 = vmatpush1.msra.mxu0 %v3064
    %3066 = vmatprep.subr.mxu0 0.0
    %v3067 = vand.u32 %v161, 4294901760
    %v3068 = vsub.f32 %v161, %v3067
    %v3069 = vand.u32 %v3068, 4294901760
    %v3070 = vsub.f32 %v3068, %v3069
    %v3071 = vand.u32 %v3070, 4294901760
    %3072 = vmatpush1.msra.mxu0 %v3071
    %3073 = vmatprep.subr.mxu0 0.0
    %v3074 = vand.u32 %v160, 4294901760
    %v3075 = vsub.f32 %v160, %v3074
    %v3076 = vand.u32 %v3075, 4294901760
    %v3077 = vsub.f32 %v3075, %v3076
    %v3078 = vand.u32 %v3077, 4294901760
    %3079 = vmatpush1.msra.mxu0 %v3078
    %3080 = vmatprep.subr.mxu0 0.0
    %v3081 = vand.u32 %v159, 4294901760
    %v3082 = vsub.f32 %v159, %v3081
    %v3083 = vand.u32 %v3082, 4294901760
    %v3084 = vsub.f32 %v3082, %v3083
    %v3085 = vand.u32 %v3084, 4294901760
    %3086 = vmatpush1.msra.mxu0 %v3085
    %3087 = vmatprep.subr.mxu0 0.0
    %v3088 = vand.u32 %v190, 4294901760
    %v3089 = vsub.f32 %v190, %v3088
    %v3090 = vand.u32 %v3089, 4294901760
    %v3091 = vsub.f32 %v3089, %v3090
    %v3092 = vand.u32 %v3091, 4294901760
    %3093 = vmatpush2.msra.mxu0 %v3092
    %3094 = vmatprep.subr.mxu0 0.0
    %v3095 = vand.u32 %v189, 4294901760
    %v3096 = vsub.f32 %v189, %v3095
    %v3097 = vand.u32 %v3096, 4294901760
    %v3098 = vsub.f32 %v3096, %v3097
    %v3099 = vand.u32 %v3098, 4294901760
    %3100 = vmatpush2.msra.mxu0 %v3099
    %3101 = vmatprep.subr.mxu0 0.0
    %v3102 = vand.u32 %v188, 4294901760
    %v3103 = vsub.f32 %v188, %v3102
    %v3104 = vand.u32 %v3103, 4294901760
    %v3105 = vsub.f32 %v3103, %v3104
    %v3106 = vand.u32 %v3105, 4294901760
    %3107 = vmatpush2.msra.mxu0 %v3106
    %3108 = vmatprep.subr.mxu0 0.0
    %v3109 = vand.u32 %v187, 4294901760
    %v3110 = vsub.f32 %v187, %v3109
    %v3111 = vand.u32 %v3110, 4294901760
    %v3112 = vsub.f32 %v3110, %v3111
    %v3113 = vand.u32 %v3112, 4294901760
    %3114 = vmatpush2.msra.mxu0 %v3113
    %3115 = vmatprep.subr.mxu0 0.0
    %v3116 = vand.u32 %v186, 4294901760
    %v3117 = vsub.f32 %v186, %v3116
    %v3118 = vand.u32 %v3117, 4294901760
    %v3119 = vsub.f32 %v3117, %v3118
    %v3120 = vand.u32 %v3119, 4294901760
    %3121 = vmatpush2.msra.mxu0 %v3120
    %3122 = vmatprep.subr.mxu0 0.0
    %v3123 = vand.u32 %v185, 4294901760
    %v3124 = vsub.f32 %v185, %v3123
    %v3125 = vand.u32 %v3124, 4294901760
    %v3126 = vsub.f32 %v3124, %v3125
    %v3127 = vand.u32 %v3126, 4294901760
    %3128 = vmatpush2.msra.mxu0 %v3127
    %3129 = vmatprep.subr.mxu0 0.0
    %v3130 = vand.u32 %v184, 4294901760
    %v3131 = vsub.f32 %v184, %v3130
    %v3132 = vand.u32 %v3131, 4294901760
    %v3133 = vsub.f32 %v3131, %v3132
    %v3134 = vand.u32 %v3133, 4294901760
    %3135 = vmatpush2.msra.mxu0 %v3134
    %3136 = vmatprep.subr.mxu0 0.0
    %v3137 = vand.u32 %v183, 4294901760
    %v3138 = vsub.f32 %v183, %v3137
    %v3139 = vand.u32 %v3138, 4294901760
    %v3140 = vsub.f32 %v3138, %v3139
    %v3141 = vand.u32 %v3140, 4294901760
    %3142 = vmatpush2.msra.mxu0 %v3141
    %3143 = vmatprep.subr.mxu0 0.0
    %v3144 = vand.u32 %v182, 4294901760
    %v3145 = vsub.f32 %v182, %v3144
    %v3146 = vand.u32 %v3145, 4294901760
    %v3147 = vsub.f32 %v3145, %v3146
    %v3148 = vand.u32 %v3147, 4294901760
    %3149 = vmatpush2.msra.mxu0 %v3148
    %3150 = vmatprep.subr.mxu0 0.0
    %v3151 = vand.u32 %v181, 4294901760
    %v3152 = vsub.f32 %v181, %v3151
    %v3153 = vand.u32 %v3152, 4294901760
    %v3154 = vsub.f32 %v3152, %v3153
    %v3155 = vand.u32 %v3154, 4294901760
    %3156 = vmatpush2.msra.mxu0 %v3155
    %3157 = vmatprep.subr.mxu0 0.0
    %v3158 = vand.u32 %v180, 4294901760
    %v3159 = vsub.f32 %v180, %v3158
    %v3160 = vand.u32 %v3159, 4294901760
    %v3161 = vsub.f32 %v3159, %v3160
    %v3162 = vand.u32 %v3161, 4294901760
    %3163 = vmatpush2.msra.mxu0 %v3162
    %3164 = vmatprep.subr.mxu0 0.0
    %v3165 = vand.u32 %v179, 4294901760
    %v3166 = vsub.f32 %v179, %v3165
    %v3167 = vand.u32 %v3166, 4294901760
    %v3168 = vsub.f32 %v3166, %v3167
    %v3169 = vand.u32 %v3168, 4294901760
    %3170 = vmatpush2.msra.mxu0 %v3169
    %3171 = vmatprep.subr.mxu0 0.0
    %v3172 = vand.u32 %v178, 4294901760
    %v3173 = vsub.f32 %v178, %v3172
    %v3174 = vand.u32 %v3173, 4294901760
    %v3175 = vsub.f32 %v3173, %v3174
    %v3176 = vand.u32 %v3175, 4294901760
    %3177 = vmatpush2.msra.mxu0 %v3176
    %3178 = vmatprep.subr.mxu0 0.0
    %v3179 = vand.u32 %v177, 4294901760
    %v3180 = vsub.f32 %v177, %v3179
    %v3181 = vand.u32 %v3180, 4294901760
    %v3182 = vsub.f32 %v3180, %v3181
    %v3183 = vand.u32 %v3182, 4294901760
    %3184 = vmatpush2.msra.mxu0 %v3183
    %3185 = vmatprep.subr.mxu0 0.0
    %v3186 = vand.u32 %v176, 4294901760
    %v3187 = vsub.f32 %v176, %v3186
    %v3188 = vand.u32 %v3187, 4294901760
    %v3189 = vsub.f32 %v3187, %v3188
    %v3190 = vand.u32 %v3189, 4294901760
    %3191 = vmatpush2.msra.mxu0 %v3190
    %3192 = vmatprep.subr.mxu0 0.0
    %v3193 = vand.u32 %v175, 4294901760
    %v3194 = vsub.f32 %v175, %v3193
    %v3195 = vand.u32 %v3194, 4294901760
    %v3196 = vsub.f32 %v3194, %v3195
    %v3197 = vand.u32 %v3196, 4294901760
    %3198 = vmatpush2.msra.mxu0 %v3197
    %v3199 = vand.u32 %v256, 4294901760
    %3200 = vmatprep.mubr.f32.mxu0 %v3199
    %v3201 = vand.u32 %v254, 4294901760
    %3202 = vmatmul.mubr.f32.gmra.mxu0 %v3201
    %v3203 = vpop.f32.mrf.mxu0
    %v3204 = vadd.f32 %v2972, %v3203
    %v3205 = vpop.f32.mrf.mxu0
    %3206 = vdwg.mxu0
    %3207 = vmatprep.subr.mxu0 0.0
    %v3208 = vand.u32 %v174, 4294901760
    %v3209 = vsub.f32 %v174, %v3208
    %3210 = vmatpush1.msra.mxu0 %v3209
    %3211 = vmatprep.subr.mxu0 0.0
    %v3212 = vand.u32 %v173, 4294901760
    %v3213 = vsub.f32 %v173, %v3212
    %3214 = vmatpush1.msra.mxu0 %v3213
    %3215 = vmatprep.subr.mxu0 0.0
    %v3216 = vand.u32 %v172, 4294901760
    %v3217 = vsub.f32 %v172, %v3216
    %3218 = vmatpush1.msra.mxu0 %v3217
    %3219 = vmatprep.subr.mxu0 0.0
    %v3220 = vand.u32 %v171, 4294901760
    %v3221 = vsub.f32 %v171, %v3220
    %3222 = vmatpush1.msra.mxu0 %v3221
    %3223 = vmatprep.subr.mxu0 0.0
    %v3224 = vand.u32 %v170, 4294901760
    %v3225 = vsub.f32 %v170, %v3224
    %3226 = vmatpush1.msra.mxu0 %v3225
    %3227 = vmatprep.subr.mxu0 0.0
    %v3228 = vand.u32 %v169, 4294901760
    %v3229 = vsub.f32 %v169, %v3228
    %3230 = vmatpush1.msra.mxu0 %v3229
    %3231 = vmatprep.subr.mxu0 0.0
    %v3232 = vand.u32 %v168, 4294901760
    %v3233 = vsub.f32 %v168, %v3232
    %3234 = vmatpush1.msra.mxu0 %v3233
    %3235 = vmatprep.subr.mxu0 0.0
    %v3236 = vand.u32 %v167, 4294901760
    %v3237 = vsub.f32 %v167, %v3236
    %3238 = vmatpush1.msra.mxu0 %v3237
    %3239 = vmatprep.subr.mxu0 0.0
    %v3240 = vand.u32 %v166, 4294901760
    %v3241 = vsub.f32 %v166, %v3240
    %3242 = vmatpush1.msra.mxu0 %v3241
    %3243 = vmatprep.subr.mxu0 0.0
    %v3244 = vand.u32 %v165, 4294901760
    %v3245 = vsub.f32 %v165, %v3244
    %3246 = vmatpush1.msra.mxu0 %v3245
    %3247 = vmatprep.subr.mxu0 0.0
    %v3248 = vand.u32 %v164, 4294901760
    %v3249 = vsub.f32 %v164, %v3248
    %3250 = vmatpush1.msra.mxu0 %v3249
    %3251 = vmatprep.subr.mxu0 0.0
    %v3252 = vand.u32 %v163, 4294901760
    %v3253 = vsub.f32 %v163, %v3252
    %3254 = vmatpush1.msra.mxu0 %v3253
    %3255 = vmatprep.subr.mxu0 0.0
    %v3256 = vand.u32 %v162, 4294901760
    %v3257 = vsub.f32 %v162, %v3256
    %3258 = vmatpush1.msra.mxu0 %v3257
    %3259 = vmatprep.subr.mxu0 0.0
    %v3260 = vand.u32 %v161, 4294901760
    %v3261 = vsub.f32 %v161, %v3260
    %3262 = vmatpush1.msra.mxu0 %v3261
    %3263 = vmatprep.subr.mxu0 0.0
    %v3264 = vand.u32 %v160, 4294901760
    %v3265 = vsub.f32 %v160, %v3264
    %3266 = vmatpush1.msra.mxu0 %v3265
    %3267 = vmatprep.subr.mxu0 0.0
    %v3268 = vand.u32 %v159, 4294901760
    %v3269 = vsub.f32 %v159, %v3268
    %3270 = vmatpush1.msra.mxu0 %v3269
    %3271 = vmatprep.subr.mxu0 0.0
    %v3272 = vand.u32 %v190, 4294901760
    %v3273 = vsub.f32 %v190, %v3272
    %3274 = vmatpush2.msra.mxu0 %v3273
    %3275 = vmatprep.subr.mxu0 0.0
    %v3276 = vand.u32 %v189, 4294901760
    %v3277 = vsub.f32 %v189, %v3276
    %3278 = vmatpush2.msra.mxu0 %v3277
    %3279 = vmatprep.subr.mxu0 0.0
    %v3280 = vand.u32 %v188, 4294901760
    %v3281 = vsub.f32 %v188, %v3280
    %3282 = vmatpush2.msra.mxu0 %v3281
    %3283 = vmatprep.subr.mxu0 0.0
    %v3284 = vand.u32 %v187, 4294901760
    %v3285 = vsub.f32 %v187, %v3284
    %3286 = vmatpush2.msra.mxu0 %v3285
    %3287 = vmatprep.subr.mxu0 0.0
    %v3288 = vand.u32 %v186, 4294901760
    %v3289 = vsub.f32 %v186, %v3288
    %3290 = vmatpush2.msra.mxu0 %v3289
    %3291 = vmatprep.subr.mxu0 0.0
    %v3292 = vand.u32 %v185, 4294901760
    %v3293 = vsub.f32 %v185, %v3292
    %3294 = vmatpush2.msra.mxu0 %v3293
    %3295 = vmatprep.subr.mxu0 0.0
    %v3296 = vand.u32 %v184, 4294901760
    %v3297 = vsub.f32 %v184, %v3296
    %3298 = vmatpush2.msra.mxu0 %v3297
    %3299 = vmatprep.subr.mxu0 0.0
    %v3300 = vand.u32 %v183, 4294901760
    %v3301 = vsub.f32 %v183, %v3300
    %3302 = vmatpush2.msra.mxu0 %v3301
    %3303 = vmatprep.subr.mxu0 0.0
    %v3304 = vand.u32 %v182, 4294901760
    %v3305 = vsub.f32 %v182, %v3304
    %3306 = vmatpush2.msra.mxu0 %v3305
    %3307 = vmatprep.subr.mxu0 0.0
    %v3308 = vand.u32 %v181, 4294901760
    %v3309 = vsub.f32 %v181, %v3308
    %3310 = vmatpush2.msra.mxu0 %v3309
    %3311 = vmatprep.subr.mxu0 0.0
    %v3312 = vand.u32 %v180, 4294901760
    %v3313 = vsub.f32 %v180, %v3312
    %3314 = vmatpush2.msra.mxu0 %v3313
    %3315 = vmatprep.subr.mxu0 0.0
    %v3316 = vand.u32 %v179, 4294901760
    %v3317 = vsub.f32 %v179, %v3316
    %3318 = vmatpush2.msra.mxu0 %v3317
    %3319 = vmatprep.subr.mxu0 0.0
    %v3320 = vand.u32 %v178, 4294901760
    %v3321 = vsub.f32 %v178, %v3320
    %3322 = vmatpush2.msra.mxu0 %v3321
    %3323 = vmatprep.subr.mxu0 0.0
    %v3324 = vand.u32 %v177, 4294901760
    %v3325 = vsub.f32 %v177, %v3324
    %3326 = vmatpush2.msra.mxu0 %v3325
    %3327 = vmatprep.subr.mxu0 0.0
    %v3328 = vand.u32 %v176, 4294901760
    %v3329 = vsub.f32 %v176, %v3328
    %3330 = vmatpush2.msra.mxu0 %v3329
    %3331 = vmatprep.subr.mxu0 0.0
    %v3332 = vand.u32 %v175, 4294901760
    %v3333 = vsub.f32 %v175, %v3332
    %3334 = vmatpush2.msra.mxu0 %v3333
    %v3335 = vand.u32 %v256, 4294901760
    %v3336 = vsub.f32 %v256, %v3335
    %3337 = vmatprep.mubr.f32.mxu0 %v3336
    %v3338 = vand.u32 %v254, 4294901760
    %v3339 = vsub.f32 %v254, %v3338
    %3340 = vmatmul.mubr.f32.gmra.mxu0 %v3339
    %v3341 = vpop.f32.mrf.mxu0
    %v3342 = vadd.f32 %v3204, %v3341
    %v3343 = vpop.f32.mrf.mxu0
    %3344 = vdwg.mxu0
    %3345 = vmatprep.subr.mxu0 0.0
    %v3346 = vand.u32 %v174, 4294901760
    %3347 = vmatpush1.msra.mxu0 %v3346
    %3348 = vmatprep.subr.mxu0 0.0
    %v3349 = vand.u32 %v173, 4294901760
    %3350 = vmatpush1.msra.mxu0 %v3349
    %3351 = vmatprep.subr.mxu0 0.0
    %v3352 = vand.u32 %v172, 4294901760
    %3353 = vmatpush1.msra.mxu0 %v3352
    %3354 = vmatprep.subr.mxu0 0.0
    %v3355 = vand.u32 %v171, 4294901760
    %3356 = vmatpush1.msra.mxu0 %v3355
    %3357 = vmatprep.subr.mxu0 0.0
    %v3358 = vand.u32 %v170, 4294901760
    %3359 = vmatpush1.msra.mxu0 %v3358
    %3360 = vmatprep.subr.mxu0 0.0
    %v3361 = vand.u32 %v169, 4294901760
    %3362 = vmatpush1.msra.mxu0 %v3361
    %3363 = vmatprep.subr.mxu0 0.0
    %v3364 = vand.u32 %v168, 4294901760
    %3365 = vmatpush1.msra.mxu0 %v3364
    %3366 = vmatprep.subr.mxu0 0.0
    %v3367 = vand.u32 %v167, 4294901760
    %3368 = vmatpush1.msra.mxu0 %v3367
    %3369 = vmatprep.subr.mxu0 0.0
    %v3370 = vand.u32 %v166, 4294901760
    %3371 = vmatpush1.msra.mxu0 %v3370
    %3372 = vmatprep.subr.mxu0 0.0
    %v3373 = vand.u32 %v165, 4294901760
    %3374 = vmatpush1.msra.mxu0 %v3373
    %3375 = vmatprep.subr.mxu0 0.0
    %v3376 = vand.u32 %v164, 4294901760
    %3377 = vmatpush1.msra.mxu0 %v3376
    %3378 = vmatprep.subr.mxu0 0.0
    %v3379 = vand.u32 %v163, 4294901760
    %3380 = vmatpush1.msra.mxu0 %v3379
    %3381 = vmatprep.subr.mxu0 0.0
    %v3382 = vand.u32 %v162, 4294901760
    %3383 = vmatpush1.msra.mxu0 %v3382
    %3384 = vmatprep.subr.mxu0 0.0
    %v3385 = vand.u32 %v161, 4294901760
    %3386 = vmatpush1.msra.mxu0 %v3385
    %3387 = vmatprep.subr.mxu0 0.0
    %v3388 = vand.u32 %v160, 4294901760
    %3389 = vmatpush1.msra.mxu0 %v3388
    %3390 = vmatprep.subr.mxu0 0.0
    %v3391 = vand.u32 %v159, 4294901760
    %3392 = vmatpush1.msra.mxu0 %v3391
    %3393 = vmatprep.subr.mxu0 0.0
    %v3394 = vand.u32 %v190, 4294901760
    %3395 = vmatpush2.msra.mxu0 %v3394
    %3396 = vmatprep.subr.mxu0 0.0
    %v3397 = vand.u32 %v189, 4294901760
    %3398 = vmatpush2.msra.mxu0 %v3397
    %3399 = vmatprep.subr.mxu0 0.0
    %v3400 = vand.u32 %v188, 4294901760
    %3401 = vmatpush2.msra.mxu0 %v3400
    %3402 = vmatprep.subr.mxu0 0.0
    %v3403 = vand.u32 %v187, 4294901760
    %3404 = vmatpush2.msra.mxu0 %v3403
    %3405 = vmatprep.subr.mxu0 0.0
    %v3406 = vand.u32 %v186, 4294901760
    %3407 = vmatpush2.msra.mxu0 %v3406
    %3408 = vmatprep.subr.mxu0 0.0
    %v3409 = vand.u32 %v185, 4294901760
    %3410 = vmatpush2.msra.mxu0 %v3409
    %3411 = vmatprep.subr.mxu0 0.0
    %v3412 = vand.u32 %v184, 4294901760
    %3413 = vmatpush2.msra.mxu0 %v3412
    %3414 = vmatprep.subr.mxu0 0.0
    %v3415 = vand.u32 %v183, 4294901760
    %3416 = vmatpush2.msra.mxu0 %v3415
    %3417 = vmatprep.subr.mxu0 0.0
    %v3418 = vand.u32 %v182, 4294901760
    %3419 = vmatpush2.msra.mxu0 %v3418
    %3420 = vmatprep.subr.mxu0 0.0
    %v3421 = vand.u32 %v181, 4294901760
    %3422 = vmatpush2.msra.mxu0 %v3421
    %3423 = vmatprep.subr.mxu0 0.0
    %v3424 = vand.u32 %v180, 4294901760
    %3425 = vmatpush2.msra.mxu0 %v3424
    %3426 = vmatprep.subr.mxu0 0.0
    %v3427 = vand.u32 %v179, 4294901760
    %3428 = vmatpush2.msra.mxu0 %v3427
    %3429 = vmatprep.subr.mxu0 0.0
    %v3430 = vand.u32 %v178, 4294901760
    %3431 = vmatpush2.msra.mxu0 %v3430
    %3432 = vmatprep.subr.mxu0 0.0
    %v3433 = vand.u32 %v177, 4294901760
    %3434 = vmatpush2.msra.mxu0 %v3433
    %3435 = vmatprep.subr.mxu0 0.0
    %v3436 = vand.u32 %v176, 4294901760
    %3437 = vmatpush2.msra.mxu0 %v3436
    %3438 = vmatprep.subr.mxu0 0.0
    %v3439 = vand.u32 %v175, 4294901760
    %3440 = vmatpush2.msra.mxu0 %v3439
    %v3441 = vand.u32 %v256, 4294901760
    %v3442 = vsub.f32 %v256, %v3441
    %v3443 = vand.u32 %v3442, 4294901760
    %3444 = vmatprep.mubr.f32.mxu0 %v3443
    %v3445 = vand.u32 %v254, 4294901760
    %v3446 = vsub.f32 %v254, %v3445
    %v3447 = vand.u32 %v3446, 4294901760
    %3448 = vmatmul.mubr.f32.gmra.mxu0 %v3447
    %v3449 = vpop.f32.mrf.mxu0
    %v3450 = vadd.f32 %v3342, %v3449
    %v3451 = vpop.f32.mrf.mxu0
    %3452 = vdwg.mxu0
    %3453 = vmatprep.subr.mxu0 0.0
    %v3454 = vand.u32 %v174, 4294901760
    %v3455 = vsub.f32 %v174, %v3454
    %v3456 = vand.u32 %v3455, 4294901760
    %3457 = vmatpush1.msra.mxu0 %v3456
    %3458 = vmatprep.subr.mxu0 0.0
    %v3459 = vand.u32 %v173, 4294901760
    %v3460 = vsub.f32 %v173, %v3459
    %v3461 = vand.u32 %v3460, 4294901760
    %3462 = vmatpush1.msra.mxu0 %v3461
    %3463 = vmatprep.subr.mxu0 0.0
    %v3464 = vand.u32 %v172, 4294901760
    %v3465 = vsub.f32 %v172, %v3464
    %v3466 = vand.u32 %v3465, 4294901760
    %3467 = vmatpush1.msra.mxu0 %v3466
    %3468 = vmatprep.subr.mxu0 0.0
    %v3469 = vand.u32 %v171, 4294901760
    %v3470 = vsub.f32 %v171, %v3469
    %v3471 = vand.u32 %v3470, 4294901760
    %3472 = vmatpush1.msra.mxu0 %v3471
    %3473 = vmatprep.subr.mxu0 0.0
    %v3474 = vand.u32 %v170, 4294901760
    %v3475 = vsub.f32 %v170, %v3474
    %v3476 = vand.u32 %v3475, 4294901760
    %3477 = vmatpush1.msra.mxu0 %v3476
    %3478 = vmatprep.subr.mxu0 0.0
    %v3479 = vand.u32 %v169, 4294901760
    %v3480 = vsub.f32 %v169, %v3479
    %v3481 = vand.u32 %v3480, 4294901760
    %3482 = vmatpush1.msra.mxu0 %v3481
    %3483 = vmatprep.subr.mxu0 0.0
    %v3484 = vand.u32 %v168, 4294901760
    %v3485 = vsub.f32 %v168, %v3484
    %v3486 = vand.u32 %v3485, 4294901760
    %3487 = vmatpush1.msra.mxu0 %v3486
    %3488 = vmatprep.subr.mxu0 0.0
    %v3489 = vand.u32 %v167, 4294901760
    %v3490 = vsub.f32 %v167, %v3489
    %v3491 = vand.u32 %v3490, 4294901760
    %3492 = vmatpush1.msra.mxu0 %v3491
    %3493 = vmatprep.subr.mxu0 0.0
    %v3494 = vand.u32 %v166, 4294901760
    %v3495 = vsub.f32 %v166, %v3494
    %v3496 = vand.u32 %v3495, 4294901760
    %3497 = vmatpush1.msra.mxu0 %v3496
    %3498 = vmatprep.subr.mxu0 0.0
    %v3499 = vand.u32 %v165, 4294901760
    %v3500 = vsub.f32 %v165, %v3499
    %v3501 = vand.u32 %v3500, 4294901760
    %3502 = vmatpush1.msra.mxu0 %v3501
    %3503 = vmatprep.subr.mxu0 0.0
    %v3504 = vand.u32 %v164, 4294901760
    %v3505 = vsub.f32 %v164, %v3504
    %v3506 = vand.u32 %v3505, 4294901760
    %3507 = vmatpush1.msra.mxu0 %v3506
    %3508 = vmatprep.subr.mxu0 0.0
    %v3509 = vand.u32 %v163, 4294901760
    %v3510 = vsub.f32 %v163, %v3509
    %v3511 = vand.u32 %v3510, 4294901760
    %3512 = vmatpush1.msra.mxu0 %v3511
    %3513 = vmatprep.subr.mxu0 0.0
    %v3514 = vand.u32 %v162, 4294901760
    %v3515 = vsub.f32 %v162, %v3514
    %v3516 = vand.u32 %v3515, 4294901760
    %3517 = vmatpush1.msra.mxu0 %v3516
    %3518 = vmatprep.subr.mxu0 0.0
    %v3519 = vand.u32 %v161, 4294901760
    %v3520 = vsub.f32 %v161, %v3519
    %v3521 = vand.u32 %v3520, 4294901760
    %3522 = vmatpush1.msra.mxu0 %v3521
    %3523 = vmatprep.subr.mxu0 0.0
    %v3524 = vand.u32 %v160, 4294901760
    %v3525 = vsub.f32 %v160, %v3524
    %v3526 = vand.u32 %v3525, 4294901760
    %3527 = vmatpush1.msra.mxu0 %v3526
    %3528 = vmatprep.subr.mxu0 0.0
    %v3529 = vand.u32 %v159, 4294901760
    %v3530 = vsub.f32 %v159, %v3529
    %v3531 = vand.u32 %v3530, 4294901760
    %3532 = vmatpush1.msra.mxu0 %v3531
    %3533 = vmatprep.subr.mxu0 0.0
    %v3534 = vand.u32 %v190, 4294901760
    %v3535 = vsub.f32 %v190, %v3534
    %v3536 = vand.u32 %v3535, 4294901760
    %3537 = vmatpush2.msra.mxu0 %v3536
    %3538 = vmatprep.subr.mxu0 0.0
    %v3539 = vand.u32 %v189, 4294901760
    %v3540 = vsub.f32 %v189, %v3539
    %v3541 = vand.u32 %v3540, 4294901760
    %3542 = vmatpush2.msra.mxu0 %v3541
    %3543 = vmatprep.subr.mxu0 0.0
    %v3544 = vand.u32 %v188, 4294901760
    %v3545 = vsub.f32 %v188, %v3544
    %v3546 = vand.u32 %v3545, 4294901760
    %3547 = vmatpush2.msra.mxu0 %v3546
    %3548 = vmatprep.subr.mxu0 0.0
    %v3549 = vand.u32 %v187, 4294901760
    %v3550 = vsub.f32 %v187, %v3549
    %v3551 = vand.u32 %v3550, 4294901760
    %3552 = vmatpush2.msra.mxu0 %v3551
    %3553 = vmatprep.subr.mxu0 0.0
    %v3554 = vand.u32 %v186, 4294901760
    %v3555 = vsub.f32 %v186, %v3554
    %v3556 = vand.u32 %v3555, 4294901760
    %3557 = vmatpush2.msra.mxu0 %v3556
    %3558 = vmatprep.subr.mxu0 0.0
    %v3559 = vand.u32 %v185, 4294901760
    %v3560 = vsub.f32 %v185, %v3559
    %v3561 = vand.u32 %v3560, 4294901760
    %3562 = vmatpush2.msra.mxu0 %v3561
    %3563 = vmatprep.subr.mxu0 0.0
    %v3564 = vand.u32 %v184, 4294901760
    %v3565 = vsub.f32 %v184, %v3564
    %v3566 = vand.u32 %v3565, 4294901760
    %3567 = vmatpush2.msra.mxu0 %v3566
    %3568 = vmatprep.subr.mxu0 0.0
    %v3569 = vand.u32 %v183, 4294901760
    %v3570 = vsub.f32 %v183, %v3569
    %v3571 = vand.u32 %v3570, 4294901760
    %3572 = vmatpush2.msra.mxu0 %v3571
    %3573 = vmatprep.subr.mxu0 0.0
    %v3574 = vand.u32 %v182, 4294901760
    %v3575 = vsub.f32 %v182, %v3574
    %v3576 = vand.u32 %v3575, 4294901760
    %3577 = vmatpush2.msra.mxu0 %v3576
    %3578 = vmatprep.subr.mxu0 0.0
    %v3579 = vand.u32 %v181, 4294901760
    %v3580 = vsub.f32 %v181, %v3579
    %v3581 = vand.u32 %v3580, 4294901760
    %3582 = vmatpush2.msra.mxu0 %v3581
    %3583 = vmatprep.subr.mxu0 0.0
    %v3584 = vand.u32 %v180, 4294901760
    %v3585 = vsub.f32 %v180, %v3584
    %v3586 = vand.u32 %v3585, 4294901760
    %3587 = vmatpush2.msra.mxu0 %v3586
    %3588 = vmatprep.subr.mxu0 0.0
    %v3589 = vand.u32 %v179, 4294901760
    %v3590 = vsub.f32 %v179, %v3589
    %v3591 = vand.u32 %v3590, 4294901760
    %3592 = vmatpush2.msra.mxu0 %v3591
    %3593 = vmatprep.subr.mxu0 0.0
    %v3594 = vand.u32 %v178, 4294901760
    %v3595 = vsub.f32 %v178, %v3594
    %v3596 = vand.u32 %v3595, 4294901760
    %3597 = vmatpush2.msra.mxu0 %v3596
    %3598 = vmatprep.subr.mxu0 0.0
    %v3599 = vand.u32 %v177, 4294901760
    %v3600 = vsub.f32 %v177, %v3599
    %v3601 = vand.u32 %v3600, 4294901760
    %3602 = vmatpush2.msra.mxu0 %v3601
    %3603 = vmatprep.subr.mxu0 0.0
    %v3604 = vand.u32 %v176, 4294901760
    %v3605 = vsub.f32 %v176, %v3604
    %v3606 = vand.u32 %v3605, 4294901760
    %3607 = vmatpush2.msra.mxu0 %v3606
    %3608 = vmatprep.subr.mxu0 0.0
    %v3609 = vand.u32 %v175, 4294901760
    %v3610 = vsub.f32 %v175, %v3609
    %v3611 = vand.u32 %v3610, 4294901760
    %3612 = vmatpush2.msra.mxu0 %v3611
    %v3613 = vand.u32 %v256, 4294901760
    %3614 = vmatprep.mubr.f32.mxu0 %v3613
    %v3615 = vand.u32 %v254, 4294901760
    %3616 = vmatmul.mubr.f32.gmra.mxu0 %v3615
    %v3617 = vpop.f32.mrf.mxu0
    %v3618 = vadd.f32 %v3450, %v3617
    %v3619 = vpop.f32.mrf.mxu0
    %3620 = vdwg.mxu0
    %3621 = vmatprep.subr.mxu0 0.0
    %v3622 = vand.u32 %v174, 4294901760
    %3623 = vmatpush1.msra.mxu0 %v3622
    %3624 = vmatprep.subr.mxu0 0.0
    %v3625 = vand.u32 %v173, 4294901760
    %3626 = vmatpush1.msra.mxu0 %v3625
    %3627 = vmatprep.subr.mxu0 0.0
    %v3628 = vand.u32 %v172, 4294901760
    %3629 = vmatpush1.msra.mxu0 %v3628
    %3630 = vmatprep.subr.mxu0 0.0
    %v3631 = vand.u32 %v171, 4294901760
    %3632 = vmatpush1.msra.mxu0 %v3631
    %3633 = vmatprep.subr.mxu0 0.0
    %v3634 = vand.u32 %v170, 4294901760
    %3635 = vmatpush1.msra.mxu0 %v3634
    %3636 = vmatprep.subr.mxu0 0.0
    %v3637 = vand.u32 %v169, 4294901760
    %3638 = vmatpush1.msra.mxu0 %v3637
    %3639 = vmatprep.subr.mxu0 0.0
    %v3640 = vand.u32 %v168, 4294901760
    %3641 = vmatpush1.msra.mxu0 %v3640
    %3642 = vmatprep.subr.mxu0 0.0
    %v3643 = vand.u32 %v167, 4294901760
    %3644 = vmatpush1.msra.mxu0 %v3643
    %3645 = vmatprep.subr.mxu0 0.0
    %v3646 = vand.u32 %v166, 4294901760
    %3647 = vmatpush1.msra.mxu0 %v3646
    %3648 = vmatprep.subr.mxu0 0.0
    %v3649 = vand.u32 %v165, 4294901760
    %3650 = vmatpush1.msra.mxu0 %v3649
    %3651 = vmatprep.subr.mxu0 0.0
    %v3652 = vand.u32 %v164, 4294901760
    %3653 = vmatpush1.msra.mxu0 %v3652
    %3654 = vmatprep.subr.mxu0 0.0
    %v3655 = vand.u32 %v163, 4294901760
    %3656 = vmatpush1.msra.mxu0 %v3655
    %3657 = vmatprep.subr.mxu0 0.0
    %v3658 = vand.u32 %v162, 4294901760
    %3659 = vmatpush1.msra.mxu0 %v3658
    %3660 = vmatprep.subr.mxu0 0.0
    %v3661 = vand.u32 %v161, 4294901760
    %3662 = vmatpush1.msra.mxu0 %v3661
    %3663 = vmatprep.subr.mxu0 0.0
    %v3664 = vand.u32 %v160, 4294901760
    %3665 = vmatpush1.msra.mxu0 %v3664
    %3666 = vmatprep.subr.mxu0 0.0
    %v3667 = vand.u32 %v159, 4294901760
    %3668 = vmatpush1.msra.mxu0 %v3667
    %3669 = vmatprep.subr.mxu0 0.0
    %v3670 = vand.u32 %v190, 4294901760
    %3671 = vmatpush2.msra.mxu0 %v3670
    %3672 = vmatprep.subr.mxu0 0.0
    %v3673 = vand.u32 %v189, 4294901760
    %3674 = vmatpush2.msra.mxu0 %v3673
    %3675 = vmatprep.subr.mxu0 0.0
    %v3676 = vand.u32 %v188, 4294901760
    %3677 = vmatpush2.msra.mxu0 %v3676
    %3678 = vmatprep.subr.mxu0 0.0
    %v3679 = vand.u32 %v187, 4294901760
    %3680 = vmatpush2.msra.mxu0 %v3679
    %3681 = vmatprep.subr.mxu0 0.0
    %v3682 = vand.u32 %v186, 4294901760
    %3683 = vmatpush2.msra.mxu0 %v3682
    %3684 = vmatprep.subr.mxu0 0.0
    %v3685 = vand.u32 %v185, 4294901760
    %3686 = vmatpush2.msra.mxu0 %v3685
    %3687 = vmatprep.subr.mxu0 0.0
    %v3688 = vand.u32 %v184, 4294901760
    %3689 = vmatpush2.msra.mxu0 %v3688
    %3690 = vmatprep.subr.mxu0 0.0
    %v3691 = vand.u32 %v183, 4294901760
    %3692 = vmatpush2.msra.mxu0 %v3691
    %3693 = vmatprep.subr.mxu0 0.0
    %v3694 = vand.u32 %v182, 4294901760
    %3695 = vmatpush2.msra.mxu0 %v3694
    %3696 = vmatprep.subr.mxu0 0.0
    %v3697 = vand.u32 %v181, 4294901760
    %3698 = vmatpush2.msra.mxu0 %v3697
    %3699 = vmatprep.subr.mxu0 0.0
    %v3700 = vand.u32 %v180, 4294901760
    %3701 = vmatpush2.msra.mxu0 %v3700
    %3702 = vmatprep.subr.mxu0 0.0
    %v3703 = vand.u32 %v179, 4294901760
    %3704 = vmatpush2.msra.mxu0 %v3703
    %3705 = vmatprep.subr.mxu0 0.0
    %v3706 = vand.u32 %v178, 4294901760
    %3707 = vmatpush2.msra.mxu0 %v3706
    %3708 = vmatprep.subr.mxu0 0.0
    %v3709 = vand.u32 %v177, 4294901760
    %3710 = vmatpush2.msra.mxu0 %v3709
    %3711 = vmatprep.subr.mxu0 0.0
    %v3712 = vand.u32 %v176, 4294901760
    %3713 = vmatpush2.msra.mxu0 %v3712
    %3714 = vmatprep.subr.mxu0 0.0
    %v3715 = vand.u32 %v175, 4294901760
    %3716 = vmatpush2.msra.mxu0 %v3715
    %v3717 = vand.u32 %v256, 4294901760
    %3718 = vmatprep.mubr.f32.mxu0 %v3717
    %v3719 = vand.u32 %v254, 4294901760
    %3720 = vmatmul.mubr.f32.gmra.mxu0 %v3719
    %v3721 = vpop.f32.mrf.mxu0
    %v3722 = vadd.f32 %v3618, %v3721
    %v3723 = vpop.f32.mrf.mxu0
    %3724 = vdwg.mxu0
    %3725 = vmatprep.subr.mxu0 0.0
    %v3726 = vand.u32 %v206, 4294901760
    %3727 = vmatpush1.msra.mxu0 %v3726
    %3728 = vmatprep.subr.mxu0 0.0
    %v3729 = vand.u32 %v205, 4294901760
    %3730 = vmatpush1.msra.mxu0 %v3729
    %3731 = vmatprep.subr.mxu0 0.0
    %v3732 = vand.u32 %v204, 4294901760
    %3733 = vmatpush1.msra.mxu0 %v3732
    %3734 = vmatprep.subr.mxu0 0.0
    %v3735 = vand.u32 %v203, 4294901760
    %3736 = vmatpush1.msra.mxu0 %v3735
    %3737 = vmatprep.subr.mxu0 0.0
    %v3738 = vand.u32 %v202, 4294901760
    %3739 = vmatpush1.msra.mxu0 %v3738
    %3740 = vmatprep.subr.mxu0 0.0
    %v3741 = vand.u32 %v201, 4294901760
    %3742 = vmatpush1.msra.mxu0 %v3741
    %3743 = vmatprep.subr.mxu0 0.0
    %v3744 = vand.u32 %v200, 4294901760
    %3745 = vmatpush1.msra.mxu0 %v3744
    %3746 = vmatprep.subr.mxu0 0.0
    %v3747 = vand.u32 %v199, 4294901760
    %3748 = vmatpush1.msra.mxu0 %v3747
    %3749 = vmatprep.subr.mxu0 0.0
    %v3750 = vand.u32 %v198, 4294901760
    %3751 = vmatpush1.msra.mxu0 %v3750
    %3752 = vmatprep.subr.mxu0 0.0
    %v3753 = vand.u32 %v197, 4294901760
    %3754 = vmatpush1.msra.mxu0 %v3753
    %3755 = vmatprep.subr.mxu0 0.0
    %v3756 = vand.u32 %v196, 4294901760
    %3757 = vmatpush1.msra.mxu0 %v3756
    %3758 = vmatprep.subr.mxu0 0.0
    %v3759 = vand.u32 %v195, 4294901760
    %3760 = vmatpush1.msra.mxu0 %v3759
    %3761 = vmatprep.subr.mxu0 0.0
    %v3762 = vand.u32 %v194, 4294901760
    %3763 = vmatpush1.msra.mxu0 %v3762
    %3764 = vmatprep.subr.mxu0 0.0
    %v3765 = vand.u32 %v193, 4294901760
    %3766 = vmatpush1.msra.mxu0 %v3765
    %3767 = vmatprep.subr.mxu0 0.0
    %v3768 = vand.u32 %v192, 4294901760
    %3769 = vmatpush1.msra.mxu0 %v3768
    %3770 = vmatprep.subr.mxu0 0.0
    %v3771 = vand.u32 %v191, 4294901760
    %3772 = vmatpush1.msra.mxu0 %v3771
    %3773 = vmatprep.subr.mxu0 0.0
    %3774 = vmatpush2.msra.mxu0 0.0
    %3775 = vmatprep.subr.mxu0 0.0
    %3776 = vmatpush2.msra.mxu0 0.0
    %3777 = vmatprep.subr.mxu0 0.0
    %3778 = vmatpush2.msra.mxu0 0.0
    %3779 = vmatprep.subr.mxu0 0.0
    %3780 = vmatpush2.msra.mxu0 0.0
    %3781 = vmatprep.subr.mxu0 0.0
    %3782 = vmatpush2.msra.mxu0 0.0
    %3783 = vmatprep.subr.mxu0 0.0
    %3784 = vmatpush2.msra.mxu0 0.0
    %3785 = vmatprep.subr.mxu0 0.0
    %3786 = vmatpush2.msra.mxu0 0.0
    %3787 = vmatprep.subr.mxu0 0.0
    %3788 = vmatpush2.msra.mxu0 0.0
    %3789 = vmatprep.subr.mxu0 0.0
    %3790 = vmatpush2.msra.mxu0 0.0
    %3791 = vmatprep.subr.mxu0 0.0
    %3792 = vmatpush2.msra.mxu0 0.0
    %3793 = vmatprep.subr.mxu0 0.0
    %v3794 = vand.u32 %v212, 4294901760
    %3795 = vmatpush2.msra.mxu0 %v3794
    %3796 = vmatprep.subr.mxu0 0.0
    %v3797 = vand.u32 %v211, 4294901760
    %3798 = vmatpush2.msra.mxu0 %v3797
    %3799 = vmatprep.subr.mxu0 0.0
    %v3800 = vand.u32 %v210, 4294901760
    %3801 = vmatpush2.msra.mxu0 %v3800
    %3802 = vmatprep.subr.mxu0 0.0
    %v3803 = vand.u32 %v209, 4294901760
    %3804 = vmatpush2.msra.mxu0 %v3803
    %3805 = vmatprep.subr.mxu0 0.0
    %v3806 = vand.u32 %v208, 4294901760
    %3807 = vmatpush2.msra.mxu0 %v3806
    %3808 = vmatprep.subr.mxu0 0.0
    %v3809 = vand.u32 %v207, 4294901760
    %3810 = vmatpush2.msra.mxu0 %v3809
    %v3811 = vand.u32 %v275, 4294901760
    %v3812 = vsub.f32 %v275, %v3811
    %v3813 = vand.u32 %v3812, 4294901760
    %v3814 = vsub.f32 %v3812, %v3813
    %v3815 = vand.u32 %v3814, 4294901760
    %3816 = vmatprep.mubr.f32.mxu0 %v3815
    %v3817 = vand.u32 %v263, 4294901760
    %v3818 = vsub.f32 %v263, %v3817
    %v3819 = vand.u32 %v3818, 4294901760
    %v3820 = vsub.f32 %v3818, %v3819
    %v3821 = vand.u32 %v3820, 4294901760
    %3822 = vmatmul.mubr.f32.gmra.mxu0 %v3821
    %v3823 = vpop.f32.mrf.mxu0
    %v3824 = vadd.f32 %v3722, %v3823
    %v3825 = vpop.f32.mrf.mxu0
    %3826 = vdwg.mxu0
    %3827 = vmatprep.subr.mxu0 0.0
    %v3828 = vand.u32 %v206, 4294901760
    %v3829 = vsub.f32 %v206, %v3828
    %v3830 = vand.u32 %v3829, 4294901760
    %v3831 = vsub.f32 %v3829, %v3830
    %v3832 = vand.u32 %v3831, 4294901760
    %3833 = vmatpush1.msra.mxu0 %v3832
    %3834 = vmatprep.subr.mxu0 0.0
    %v3835 = vand.u32 %v205, 4294901760
    %v3836 = vsub.f32 %v205, %v3835
    %v3837 = vand.u32 %v3836, 4294901760
    %v3838 = vsub.f32 %v3836, %v3837
    %v3839 = vand.u32 %v3838, 4294901760
    %3840 = vmatpush1.msra.mxu0 %v3839
    %3841 = vmatprep.subr.mxu0 0.0
    %v3842 = vand.u32 %v204, 4294901760
    %v3843 = vsub.f32 %v204, %v3842
    %v3844 = vand.u32 %v3843, 4294901760
    %v3845 = vsub.f32 %v3843, %v3844
    %v3846 = vand.u32 %v3845, 4294901760
    %3847 = vmatpush1.msra.mxu0 %v3846
    %3848 = vmatprep.subr.mxu0 0.0
    %v3849 = vand.u32 %v203, 4294901760
    %v3850 = vsub.f32 %v203, %v3849
    %v3851 = vand.u32 %v3850, 4294901760
    %v3852 = vsub.f32 %v3850, %v3851
    %v3853 = vand.u32 %v3852, 4294901760
    %3854 = vmatpush1.msra.mxu0 %v3853
    %3855 = vmatprep.subr.mxu0 0.0
    %v3856 = vand.u32 %v202, 4294901760
    %v3857 = vsub.f32 %v202, %v3856
    %v3858 = vand.u32 %v3857, 4294901760
    %v3859 = vsub.f32 %v3857, %v3858
    %v3860 = vand.u32 %v3859, 4294901760
    %3861 = vmatpush1.msra.mxu0 %v3860
    %3862 = vmatprep.subr.mxu0 0.0
    %v3863 = vand.u32 %v201, 4294901760
    %v3864 = vsub.f32 %v201, %v3863
    %v3865 = vand.u32 %v3864, 4294901760
    %v3866 = vsub.f32 %v3864, %v3865
    %v3867 = vand.u32 %v3866, 4294901760
    %3868 = vmatpush1.msra.mxu0 %v3867
    %3869 = vmatprep.subr.mxu0 0.0
    %v3870 = vand.u32 %v200, 4294901760
    %v3871 = vsub.f32 %v200, %v3870
    %v3872 = vand.u32 %v3871, 4294901760
    %v3873 = vsub.f32 %v3871, %v3872
    %v3874 = vand.u32 %v3873, 4294901760
    %3875 = vmatpush1.msra.mxu0 %v3874
    %3876 = vmatprep.subr.mxu0 0.0
    %v3877 = vand.u32 %v199, 4294901760
    %v3878 = vsub.f32 %v199, %v3877
    %v3879 = vand.u32 %v3878, 4294901760
    %v3880 = vsub.f32 %v3878, %v3879
    %v3881 = vand.u32 %v3880, 4294901760
    %3882 = vmatpush1.msra.mxu0 %v3881
    %3883 = vmatprep.subr.mxu0 0.0
    %v3884 = vand.u32 %v198, 4294901760
    %v3885 = vsub.f32 %v198, %v3884
    %v3886 = vand.u32 %v3885, 4294901760
    %v3887 = vsub.f32 %v3885, %v3886
    %v3888 = vand.u32 %v3887, 4294901760
    %3889 = vmatpush1.msra.mxu0 %v3888
    %3890 = vmatprep.subr.mxu0 0.0
    %v3891 = vand.u32 %v197, 4294901760
    %v3892 = vsub.f32 %v197, %v3891
    %v3893 = vand.u32 %v3892, 4294901760
    %v3894 = vsub.f32 %v3892, %v3893
    %v3895 = vand.u32 %v3894, 4294901760
    %3896 = vmatpush1.msra.mxu0 %v3895
    %3897 = vmatprep.subr.mxu0 0.0
    %v3898 = vand.u32 %v196, 4294901760
    %v3899 = vsub.f32 %v196, %v3898
    %v3900 = vand.u32 %v3899, 4294901760
    %v3901 = vsub.f32 %v3899, %v3900
    %v3902 = vand.u32 %v3901, 4294901760
    %3903 = vmatpush1.msra.mxu0 %v3902
    %3904 = vmatprep.subr.mxu0 0.0
    %v3905 = vand.u32 %v195, 4294901760
    %v3906 = vsub.f32 %v195, %v3905
    %v3907 = vand.u32 %v3906, 4294901760
    %v3908 = vsub.f32 %v3906, %v3907
    %v3909 = vand.u32 %v3908, 4294901760
    %3910 = vmatpush1.msra.mxu0 %v3909
    %3911 = vmatprep.subr.mxu0 0.0
    %v3912 = vand.u32 %v194, 4294901760
    %v3913 = vsub.f32 %v194, %v3912
    %v3914 = vand.u32 %v3913, 4294901760
    %v3915 = vsub.f32 %v3913, %v3914
    %v3916 = vand.u32 %v3915, 4294901760
    %3917 = vmatpush1.msra.mxu0 %v3916
    %3918 = vmatprep.subr.mxu0 0.0
    %v3919 = vand.u32 %v193, 4294901760
    %v3920 = vsub.f32 %v193, %v3919
    %v3921 = vand.u32 %v3920, 4294901760
    %v3922 = vsub.f32 %v3920, %v3921
    %v3923 = vand.u32 %v3922, 4294901760
    %3924 = vmatpush1.msra.mxu0 %v3923
    %3925 = vmatprep.subr.mxu0 0.0
    %v3926 = vand.u32 %v192, 4294901760
    %v3927 = vsub.f32 %v192, %v3926
    %v3928 = vand.u32 %v3927, 4294901760
    %v3929 = vsub.f32 %v3927, %v3928
    %v3930 = vand.u32 %v3929, 4294901760
    %3931 = vmatpush1.msra.mxu0 %v3930
    %3932 = vmatprep.subr.mxu0 0.0
    %v3933 = vand.u32 %v191, 4294901760
    %v3934 = vsub.f32 %v191, %v3933
    %v3935 = vand.u32 %v3934, 4294901760
    %v3936 = vsub.f32 %v3934, %v3935
    %v3937 = vand.u32 %v3936, 4294901760
    %3938 = vmatpush1.msra.mxu0 %v3937
    %3939 = vmatprep.subr.mxu0 0.0
    %3940 = vmatpush2.msra.mxu0 0.0
    %3941 = vmatprep.subr.mxu0 0.0
    %3942 = vmatpush2.msra.mxu0 0.0
    %3943 = vmatprep.subr.mxu0 0.0
    %3944 = vmatpush2.msra.mxu0 0.0
    %3945 = vmatprep.subr.mxu0 0.0
    %3946 = vmatpush2.msra.mxu0 0.0
    %3947 = vmatprep.subr.mxu0 0.0
    %3948 = vmatpush2.msra.mxu0 0.0
    %3949 = vmatprep.subr.mxu0 0.0
    %3950 = vmatpush2.msra.mxu0 0.0
    %3951 = vmatprep.subr.mxu0 0.0
    %3952 = vmatpush2.msra.mxu0 0.0
    %3953 = vmatprep.subr.mxu0 0.0
    %3954 = vmatpush2.msra.mxu0 0.0
    %3955 = vmatprep.subr.mxu0 0.0
    %3956 = vmatpush2.msra.mxu0 0.0
    %3957 = vmatprep.subr.mxu0 0.0
    %3958 = vmatpush2.msra.mxu0 0.0
    %3959 = vmatprep.subr.mxu0 0.0
    %v3960 = vand.u32 %v212, 4294901760
    %v3961 = vsub.f32 %v212, %v3960
    %v3962 = vand.u32 %v3961, 4294901760
    %v3963 = vsub.f32 %v3961, %v3962
    %v3964 = vand.u32 %v3963, 4294901760
    %3965 = vmatpush2.msra.mxu0 %v3964
    %3966 = vmatprep.subr.mxu0 0.0
    %v3967 = vand.u32 %v211, 4294901760
    %v3968 = vsub.f32 %v211, %v3967
    %v3969 = vand.u32 %v3968, 4294901760
    %v3970 = vsub.f32 %v3968, %v3969
    %v3971 = vand.u32 %v3970, 4294901760
    %3972 = vmatpush2.msra.mxu0 %v3971
    %3973 = vmatprep.subr.mxu0 0.0
    %v3974 = vand.u32 %v210, 4294901760
    %v3975 = vsub.f32 %v210, %v3974
    %v3976 = vand.u32 %v3975, 4294901760
    %v3977 = vsub.f32 %v3975, %v3976
    %v3978 = vand.u32 %v3977, 4294901760
    %3979 = vmatpush2.msra.mxu0 %v3978
    %3980 = vmatprep.subr.mxu0 0.0
    %v3981 = vand.u32 %v209, 4294901760
    %v3982 = vsub.f32 %v209, %v3981
    %v3983 = vand.u32 %v3982, 4294901760
    %v3984 = vsub.f32 %v3982, %v3983
    %v3985 = vand.u32 %v3984, 4294901760
    %3986 = vmatpush2.msra.mxu0 %v3985
    %3987 = vmatprep.subr.mxu0 0.0
    %v3988 = vand.u32 %v208, 4294901760
    %v3989 = vsub.f32 %v208, %v3988
    %v3990 = vand.u32 %v3989, 4294901760
    %v3991 = vsub.f32 %v3989, %v3990
    %v3992 = vand.u32 %v3991, 4294901760
    %3993 = vmatpush2.msra.mxu0 %v3992
    %3994 = vmatprep.subr.mxu0 0.0
    %v3995 = vand.u32 %v207, 4294901760
    %v3996 = vsub.f32 %v207, %v3995
    %v3997 = vand.u32 %v3996, 4294901760
    %v3998 = vsub.f32 %v3996, %v3997
    %v3999 = vand.u32 %v3998, 4294901760
    %4000 = vmatpush2.msra.mxu0 %v3999
    %v4001 = vand.u32 %v275, 4294901760
    %4002 = vmatprep.mubr.f32.mxu0 %v4001
    %v4003 = vand.u32 %v263, 4294901760
    %4004 = vmatmul.mubr.f32.gmra.mxu0 %v4003
    %v4005 = vpop.f32.mrf.mxu0
    %v4006 = vadd.f32 %v3824, %v4005
    %v4007 = vpop.f32.mrf.mxu0
    %4008 = vdwg.mxu0
    %4009 = vmatprep.subr.mxu0 0.0
    %v4010 = vand.u32 %v206, 4294901760
    %v4011 = vsub.f32 %v206, %v4010
    %4012 = vmatpush1.msra.mxu0 %v4011
    %4013 = vmatprep.subr.mxu0 0.0
    %v4014 = vand.u32 %v205, 4294901760
    %v4015 = vsub.f32 %v205, %v4014
    %4016 = vmatpush1.msra.mxu0 %v4015
    %4017 = vmatprep.subr.mxu0 0.0
    %v4018 = vand.u32 %v204, 4294901760
    %v4019 = vsub.f32 %v204, %v4018
    %4020 = vmatpush1.msra.mxu0 %v4019
    %4021 = vmatprep.subr.mxu0 0.0
    %v4022 = vand.u32 %v203, 4294901760
    %v4023 = vsub.f32 %v203, %v4022
    %4024 = vmatpush1.msra.mxu0 %v4023
    %4025 = vmatprep.subr.mxu0 0.0
    %v4026 = vand.u32 %v202, 4294901760
    %v4027 = vsub.f32 %v202, %v4026
    %4028 = vmatpush1.msra.mxu0 %v4027
    %4029 = vmatprep.subr.mxu0 0.0
    %v4030 = vand.u32 %v201, 4294901760
    %v4031 = vsub.f32 %v201, %v4030
    %4032 = vmatpush1.msra.mxu0 %v4031
    %4033 = vmatprep.subr.mxu0 0.0
    %v4034 = vand.u32 %v200, 4294901760
    %v4035 = vsub.f32 %v200, %v4034
    %4036 = vmatpush1.msra.mxu0 %v4035
    %4037 = vmatprep.subr.mxu0 0.0
    %v4038 = vand.u32 %v199, 4294901760
    %v4039 = vsub.f32 %v199, %v4038
    %4040 = vmatpush1.msra.mxu0 %v4039
    %4041 = vmatprep.subr.mxu0 0.0
    %v4042 = vand.u32 %v198, 4294901760
    %v4043 = vsub.f32 %v198, %v4042
    %4044 = vmatpush1.msra.mxu0 %v4043
    %4045 = vmatprep.subr.mxu0 0.0
    %v4046 = vand.u32 %v197, 4294901760
    %v4047 = vsub.f32 %v197, %v4046
    %4048 = vmatpush1.msra.mxu0 %v4047
    %4049 = vmatprep.subr.mxu0 0.0
    %v4050 = vand.u32 %v196, 4294901760
    %v4051 = vsub.f32 %v196, %v4050
    %4052 = vmatpush1.msra.mxu0 %v4051
    %4053 = vmatprep.subr.mxu0 0.0
    %v4054 = vand.u32 %v195, 4294901760
    %v4055 = vsub.f32 %v195, %v4054
    %4056 = vmatpush1.msra.mxu0 %v4055
    %4057 = vmatprep.subr.mxu0 0.0
    %v4058 = vand.u32 %v194, 4294901760
    %v4059 = vsub.f32 %v194, %v4058
    %4060 = vmatpush1.msra.mxu0 %v4059
    %4061 = vmatprep.subr.mxu0 0.0
    %v4062 = vand.u32 %v193, 4294901760
    %v4063 = vsub.f32 %v193, %v4062
    %4064 = vmatpush1.msra.mxu0 %v4063
    %4065 = vmatprep.subr.mxu0 0.0
    %v4066 = vand.u32 %v192, 4294901760
    %v4067 = vsub.f32 %v192, %v4066
    %4068 = vmatpush1.msra.mxu0 %v4067
    %4069 = vmatprep.subr.mxu0 0.0
    %v4070 = vand.u32 %v191, 4294901760
    %v4071 = vsub.f32 %v191, %v4070
    %4072 = vmatpush1.msra.mxu0 %v4071
    %4073 = vmatprep.subr.mxu0 0.0
    %4074 = vmatpush2.msra.mxu0 0.0
    %4075 = vmatprep.subr.mxu0 0.0
    %4076 = vmatpush2.msra.mxu0 0.0
    %4077 = vmatprep.subr.mxu0 0.0
    %4078 = vmatpush2.msra.mxu0 0.0
    %4079 = vmatprep.subr.mxu0 0.0
    %4080 = vmatpush2.msra.mxu0 0.0
    %4081 = vmatprep.subr.mxu0 0.0
    %4082 = vmatpush2.msra.mxu0 0.0
    %4083 = vmatprep.subr.mxu0 0.0
    %4084 = vmatpush2.msra.mxu0 0.0
    %4085 = vmatprep.subr.mxu0 0.0
    %4086 = vmatpush2.msra.mxu0 0.0
    %4087 = vmatprep.subr.mxu0 0.0
    %4088 = vmatpush2.msra.mxu0 0.0
    %4089 = vmatprep.subr.mxu0 0.0
    %4090 = vmatpush2.msra.mxu0 0.0
    %4091 = vmatprep.subr.mxu0 0.0
    %4092 = vmatpush2.msra.mxu0 0.0
    %4093 = vmatprep.subr.mxu0 0.0
    %v4094 = vand.u32 %v212, 4294901760
    %v4095 = vsub.f32 %v212, %v4094
    %4096 = vmatpush2.msra.mxu0 %v4095
    %4097 = vmatprep.subr.mxu0 0.0
    %v4098 = vand.u32 %v211, 4294901760
    %v4099 = vsub.f32 %v211, %v4098
    %4100 = vmatpush2.msra.mxu0 %v4099
    %4101 = vmatprep.subr.mxu0 0.0
    %v4102 = vand.u32 %v210, 4294901760
    %v4103 = vsub.f32 %v210, %v4102
    %4104 = vmatpush2.msra.mxu0 %v4103
    %4105 = vmatprep.subr.mxu0 0.0
    %v4106 = vand.u32 %v209, 4294901760
    %v4107 = vsub.f32 %v209, %v4106
    %4108 = vmatpush2.msra.mxu0 %v4107
    %4109 = vmatprep.subr.mxu0 0.0
    %v4110 = vand.u32 %v208, 4294901760
    %v4111 = vsub.f32 %v208, %v4110
    %4112 = vmatpush2.msra.mxu0 %v4111
    %4113 = vmatprep.subr.mxu0 0.0
    %v4114 = vand.u32 %v207, 4294901760
    %v4115 = vsub.f32 %v207, %v4114
    %4116 = vmatpush2.msra.mxu0 %v4115
    %v4117 = vand.u32 %v275, 4294901760
    %v4118 = vsub.f32 %v275, %v4117
    %4119 = vmatprep.mubr.f32.mxu0 %v4118
    %v4120 = vand.u32 %v263, 4294901760
    %v4121 = vsub.f32 %v263, %v4120
    %4122 = vmatmul.mubr.f32.gmra.mxu0 %v4121
    %v4123 = vpop.f32.mrf.mxu0
    %v4124 = vadd.f32 %v4006, %v4123
    %v4125 = vpop.f32.mrf.mxu0
    %4126 = vdwg.mxu0
    %4127 = vmatprep.subr.mxu0 0.0
    %v4128 = vand.u32 %v206, 4294901760
    %4129 = vmatpush1.msra.mxu0 %v4128
    %4130 = vmatprep.subr.mxu0 0.0
    %v4131 = vand.u32 %v205, 4294901760
    %4132 = vmatpush1.msra.mxu0 %v4131
    %4133 = vmatprep.subr.mxu0 0.0
    %v4134 = vand.u32 %v204, 4294901760
    %4135 = vmatpush1.msra.mxu0 %v4134
    %4136 = vmatprep.subr.mxu0 0.0
    %v4137 = vand.u32 %v203, 4294901760
    %4138 = vmatpush1.msra.mxu0 %v4137
    %4139 = vmatprep.subr.mxu0 0.0
    %v4140 = vand.u32 %v202, 4294901760
    %4141 = vmatpush1.msra.mxu0 %v4140
    %4142 = vmatprep.subr.mxu0 0.0
    %v4143 = vand.u32 %v201, 4294901760
    %4144 = vmatpush1.msra.mxu0 %v4143
    %4145 = vmatprep.subr.mxu0 0.0
    %v4146 = vand.u32 %v200, 4294901760
    %4147 = vmatpush1.msra.mxu0 %v4146
    %4148 = vmatprep.subr.mxu0 0.0
    %v4149 = vand.u32 %v199, 4294901760
    %4150 = vmatpush1.msra.mxu0 %v4149
    %4151 = vmatprep.subr.mxu0 0.0
    %v4152 = vand.u32 %v198, 4294901760
    %4153 = vmatpush1.msra.mxu0 %v4152
    %4154 = vmatprep.subr.mxu0 0.0
    %v4155 = vand.u32 %v197, 4294901760
    %4156 = vmatpush1.msra.mxu0 %v4155
    %4157 = vmatprep.subr.mxu0 0.0
    %v4158 = vand.u32 %v196, 4294901760
    %4159 = vmatpush1.msra.mxu0 %v4158
    %4160 = vmatprep.subr.mxu0 0.0
    %v4161 = vand.u32 %v195, 4294901760
    %4162 = vmatpush1.msra.mxu0 %v4161
    %4163 = vmatprep.subr.mxu0 0.0
    %v4164 = vand.u32 %v194, 4294901760
    %4165 = vmatpush1.msra.mxu0 %v4164
    %4166 = vmatprep.subr.mxu0 0.0
    %v4167 = vand.u32 %v193, 4294901760
    %4168 = vmatpush1.msra.mxu0 %v4167
    %4169 = vmatprep.subr.mxu0 0.0
    %v4170 = vand.u32 %v192, 4294901760
    %4171 = vmatpush1.msra.mxu0 %v4170
    %4172 = vmatprep.subr.mxu0 0.0
    %v4173 = vand.u32 %v191, 4294901760
    %4174 = vmatpush1.msra.mxu0 %v4173
    %4175 = vmatprep.subr.mxu0 0.0
    %4176 = vmatpush2.msra.mxu0 0.0
    %4177 = vmatprep.subr.mxu0 0.0
    %4178 = vmatpush2.msra.mxu0 0.0
    %4179 = vmatprep.subr.mxu0 0.0
    %4180 = vmatpush2.msra.mxu0 0.0
    %4181 = vmatprep.subr.mxu0 0.0
    %4182 = vmatpush2.msra.mxu0 0.0
    %4183 = vmatprep.subr.mxu0 0.0
    %4184 = vmatpush2.msra.mxu0 0.0
    %4185 = vmatprep.subr.mxu0 0.0
    %4186 = vmatpush2.msra.mxu0 0.0
    %4187 = vmatprep.subr.mxu0 0.0
    %4188 = vmatpush2.msra.mxu0 0.0
    %4189 = vmatprep.subr.mxu0 0.0
    %4190 = vmatpush2.msra.mxu0 0.0
    %4191 = vmatprep.subr.mxu0 0.0
    %4192 = vmatpush2.msra.mxu0 0.0
    %4193 = vmatprep.subr.mxu0 0.0
    %4194 = vmatpush2.msra.mxu0 0.0
    %4195 = vmatprep.subr.mxu0 0.0
    %v4196 = vand.u32 %v212, 4294901760
    %4197 = vmatpush2.msra.mxu0 %v4196
    %4198 = vmatprep.subr.mxu0 0.0
    %v4199 = vand.u32 %v211, 4294901760
    %4200 = vmatpush2.msra.mxu0 %v4199
    %4201 = vmatprep.subr.mxu0 0.0
    %v4202 = vand.u32 %v210, 4294901760
    %4203 = vmatpush2.msra.mxu0 %v4202
    %4204 = vmatprep.subr.mxu0 0.0
    %v4205 = vand.u32 %v209, 4294901760
    %4206 = vmatpush2.msra.mxu0 %v4205
    %4207 = vmatprep.subr.mxu0 0.0
    %v4208 = vand.u32 %v208, 4294901760
    %4209 = vmatpush2.msra.mxu0 %v4208
    %4210 = vmatprep.subr.mxu0 0.0
    %v4211 = vand.u32 %v207, 4294901760
    %4212 = vmatpush2.msra.mxu0 %v4211
    %v4213 = vand.u32 %v275, 4294901760
    %v4214 = vsub.f32 %v275, %v4213
    %v4215 = vand.u32 %v4214, 4294901760
    %4216 = vmatprep.mubr.f32.mxu0 %v4215
    %v4217 = vand.u32 %v263, 4294901760
    %v4218 = vsub.f32 %v263, %v4217
    %v4219 = vand.u32 %v4218, 4294901760
    %4220 = vmatmul.mubr.f32.gmra.mxu0 %v4219
    %v4221 = vpop.f32.mrf.mxu0
    %v4222 = vadd.f32 %v4124, %v4221
    %v4223 = vpop.f32.mrf.mxu0
    %4224 = vdwg.mxu0
    %4225 = vmatprep.subr.mxu0 0.0
    %v4226 = vand.u32 %v206, 4294901760
    %v4227 = vsub.f32 %v206, %v4226
    %v4228 = vand.u32 %v4227, 4294901760
    %4229 = vmatpush1.msra.mxu0 %v4228
    %4230 = vmatprep.subr.mxu0 0.0
    %v4231 = vand.u32 %v205, 4294901760
    %v4232 = vsub.f32 %v205, %v4231
    %v4233 = vand.u32 %v4232, 4294901760
    %4234 = vmatpush1.msra.mxu0 %v4233
    %4235 = vmatprep.subr.mxu0 0.0
    %v4236 = vand.u32 %v204, 4294901760
    %v4237 = vsub.f32 %v204, %v4236
    %v4238 = vand.u32 %v4237, 4294901760
    %4239 = vmatpush1.msra.mxu0 %v4238
    %4240 = vmatprep.subr.mxu0 0.0
    %v4241 = vand.u32 %v203, 4294901760
    %v4242 = vsub.f32 %v203, %v4241
    %v4243 = vand.u32 %v4242, 4294901760
    %4244 = vmatpush1.msra.mxu0 %v4243
    %4245 = vmatprep.subr.mxu0 0.0
    %v4246 = vand.u32 %v202, 4294901760
    %v4247 = vsub.f32 %v202, %v4246
    %v4248 = vand.u32 %v4247, 4294901760
    %4249 = vmatpush1.msra.mxu0 %v4248
    %4250 = vmatprep.subr.mxu0 0.0
    %v4251 = vand.u32 %v201, 4294901760
    %v4252 = vsub.f32 %v201, %v4251
    %v4253 = vand.u32 %v4252, 4294901760
    %4254 = vmatpush1.msra.mxu0 %v4253
    %4255 = vmatprep.subr.mxu0 0.0
    %v4256 = vand.u32 %v200, 4294901760
    %v4257 = vsub.f32 %v200, %v4256
    %v4258 = vand.u32 %v4257, 4294901760
    %4259 = vmatpush1.msra.mxu0 %v4258
    %4260 = vmatprep.subr.mxu0 0.0
    %v4261 = vand.u32 %v199, 4294901760
    %v4262 = vsub.f32 %v199, %v4261
    %v4263 = vand.u32 %v4262, 4294901760
    %4264 = vmatpush1.msra.mxu0 %v4263
    %4265 = vmatprep.subr.mxu0 0.0
    %v4266 = vand.u32 %v198, 4294901760
    %v4267 = vsub.f32 %v198, %v4266
    %v4268 = vand.u32 %v4267, 4294901760
    %4269 = vmatpush1.msra.mxu0 %v4268
    %4270 = vmatprep.subr.mxu0 0.0
    %v4271 = vand.u32 %v197, 4294901760
    %v4272 = vsub.f32 %v197, %v4271
    %v4273 = vand.u32 %v4272, 4294901760
    %4274 = vmatpush1.msra.mxu0 %v4273
    %4275 = vmatprep.subr.mxu0 0.0
    %v4276 = vand.u32 %v196, 4294901760
    %v4277 = vsub.f32 %v196, %v4276
    %v4278 = vand.u32 %v4277, 4294901760
    %4279 = vmatpush1.msra.mxu0 %v4278
    %4280 = vmatprep.subr.mxu0 0.0
    %v4281 = vand.u32 %v195, 4294901760
    %v4282 = vsub.f32 %v195, %v4281
    %v4283 = vand.u32 %v4282, 4294901760
    %4284 = vmatpush1.msra.mxu0 %v4283
    %4285 = vmatprep.subr.mxu0 0.0
    %v4286 = vand.u32 %v194, 4294901760
    %v4287 = vsub.f32 %v194, %v4286
    %v4288 = vand.u32 %v4287, 4294901760
    %4289 = vmatpush1.msra.mxu0 %v4288
    %4290 = vmatprep.subr.mxu0 0.0
    %v4291 = vand.u32 %v193, 4294901760
    %v4292 = vsub.f32 %v193, %v4291
    %v4293 = vand.u32 %v4292, 4294901760
    %4294 = vmatpush1.msra.mxu0 %v4293
    %4295 = vmatprep.subr.mxu0 0.0
    %v4296 = vand.u32 %v192, 4294901760
    %v4297 = vsub.f32 %v192, %v4296
    %v4298 = vand.u32 %v4297, 4294901760
    %4299 = vmatpush1.msra.mxu0 %v4298
    %4300 = vmatprep.subr.mxu0 0.0
    %v4301 = vand.u32 %v191, 4294901760
    %v4302 = vsub.f32 %v191, %v4301
    %v4303 = vand.u32 %v4302, 4294901760
    %4304 = vmatpush1.msra.mxu0 %v4303
    %4305 = vmatprep.subr.mxu0 0.0
    %4306 = vmatpush2.msra.mxu0 0.0
    %4307 = vmatprep.subr.mxu0 0.0
    %4308 = vmatpush2.msra.mxu0 0.0
    %4309 = vmatprep.subr.mxu0 0.0
    %4310 = vmatpush2.msra.mxu0 0.0
    %4311 = vmatprep.subr.mxu0 0.0
    %4312 = vmatpush2.msra.mxu0 0.0
    %4313 = vmatprep.subr.mxu0 0.0
    %4314 = vmatpush2.msra.mxu0 0.0
    %4315 = vmatprep.subr.mxu0 0.0
    %4316 = vmatpush2.msra.mxu0 0.0
    %4317 = vmatprep.subr.mxu0 0.0
    %4318 = vmatpush2.msra.mxu0 0.0
    %4319 = vmatprep.subr.mxu0 0.0
    %4320 = vmatpush2.msra.mxu0 0.0
    %4321 = vmatprep.subr.mxu0 0.0
    %4322 = vmatpush2.msra.mxu0 0.0
    %4323 = vmatprep.subr.mxu0 0.0
    %4324 = vmatpush2.msra.mxu0 0.0
    %4325 = vmatprep.subr.mxu0 0.0
    %v4326 = vand.u32 %v212, 4294901760
    %v4327 = vsub.f32 %v212, %v4326
    %v4328 = vand.u32 %v4327, 4294901760
    %4329 = vmatpush2.msra.mxu0 %v4328
    %4330 = vmatprep.subr.mxu0 0.0
    %v4331 = vand.u32 %v211, 4294901760
    %v4332 = vsub.f32 %v211, %v4331
    %v4333 = vand.u32 %v4332, 4294901760
    %4334 = vmatpush2.msra.mxu0 %v4333
    %4335 = vmatprep.subr.mxu0 0.0
    %v4336 = vand.u32 %v210, 4294901760
    %v4337 = vsub.f32 %v210, %v4336
    %v4338 = vand.u32 %v4337, 4294901760
    %4339 = vmatpush2.msra.mxu0 %v4338
    %4340 = vmatprep.subr.mxu0 0.0
    %v4341 = vand.u32 %v209, 4294901760
    %v4342 = vsub.f32 %v209, %v4341
    %v4343 = vand.u32 %v4342, 4294901760
    %4344 = vmatpush2.msra.mxu0 %v4343
    %4345 = vmatprep.subr.mxu0 0.0
    %v4346 = vand.u32 %v208, 4294901760
    %v4347 = vsub.f32 %v208, %v4346
    %v4348 = vand.u32 %v4347, 4294901760
    %4349 = vmatpush2.msra.mxu0 %v4348
    %4350 = vmatprep.subr.mxu0 0.0
    %v4351 = vand.u32 %v207, 4294901760
    %v4352 = vsub.f32 %v207, %v4351
    %v4353 = vand.u32 %v4352, 4294901760
    %4354 = vmatpush2.msra.mxu0 %v4353
    %v4355 = vand.u32 %v275, 4294901760
    %4356 = vmatprep.mubr.f32.mxu0 %v4355
    %v4357 = vand.u32 %v263, 4294901760
    %4358 = vmatmul.mubr.f32.gmra.mxu0 %v4357
    %v4359 = vpop.f32.mrf.mxu0
    %v4360 = vadd.f32 %v4222, %v4359
    %v4361 = vpop.f32.mrf.mxu0
    %4362 = vdwg.mxu0
    %4363 = vmatprep.subr.mxu0 0.0
    %v4364 = vand.u32 %v206, 4294901760
    %4365 = vmatpush1.msra.mxu0 %v4364
    %4366 = vmatprep.subr.mxu0 0.0
    %v4367 = vand.u32 %v205, 4294901760
    %4368 = vmatpush1.msra.mxu0 %v4367
    %4369 = vmatprep.subr.mxu0 0.0
    %v4370 = vand.u32 %v204, 4294901760
    %4371 = vmatpush1.msra.mxu0 %v4370
    %4372 = vmatprep.subr.mxu0 0.0
    %v4373 = vand.u32 %v203, 4294901760
    %4374 = vmatpush1.msra.mxu0 %v4373
    %4375 = vmatprep.subr.mxu0 0.0
    %v4376 = vand.u32 %v202, 4294901760
    %4377 = vmatpush1.msra.mxu0 %v4376
    %4378 = vmatprep.subr.mxu0 0.0
    %v4379 = vand.u32 %v201, 4294901760
    %4380 = vmatpush1.msra.mxu0 %v4379
    %4381 = vmatprep.subr.mxu0 0.0
    %v4382 = vand.u32 %v200, 4294901760
    %4383 = vmatpush1.msra.mxu0 %v4382
    %4384 = vmatprep.subr.mxu0 0.0
    %v4385 = vand.u32 %v199, 4294901760
    %4386 = vmatpush1.msra.mxu0 %v4385
    %4387 = vmatprep.subr.mxu0 0.0
    %v4388 = vand.u32 %v198, 4294901760
    %4389 = vmatpush1.msra.mxu0 %v4388
    %4390 = vmatprep.subr.mxu0 0.0
    %v4391 = vand.u32 %v197, 4294901760
    %4392 = vmatpush1.msra.mxu0 %v4391
    %4393 = vmatprep.subr.mxu0 0.0
    %v4394 = vand.u32 %v196, 4294901760
    %4395 = vmatpush1.msra.mxu0 %v4394
    %4396 = vmatprep.subr.mxu0 0.0
    %v4397 = vand.u32 %v195, 4294901760
    %4398 = vmatpush1.msra.mxu0 %v4397
    %4399 = vmatprep.subr.mxu0 0.0
    %v4400 = vand.u32 %v194, 4294901760
    %4401 = vmatpush1.msra.mxu0 %v4400
    %4402 = vmatprep.subr.mxu0 0.0
    %v4403 = vand.u32 %v193, 4294901760
    %4404 = vmatpush1.msra.mxu0 %v4403
    %4405 = vmatprep.subr.mxu0 0.0
    %v4406 = vand.u32 %v192, 4294901760
    %4407 = vmatpush1.msra.mxu0 %v4406
    %4408 = vmatprep.subr.mxu0 0.0
    %v4409 = vand.u32 %v191, 4294901760
    %4410 = vmatpush1.msra.mxu0 %v4409
    %4411 = vmatprep.subr.mxu0 0.0
    %4412 = vmatpush2.msra.mxu0 0.0
    %4413 = vmatprep.subr.mxu0 0.0
    %4414 = vmatpush2.msra.mxu0 0.0
    %4415 = vmatprep.subr.mxu0 0.0
    %4416 = vmatpush2.msra.mxu0 0.0
    %4417 = vmatprep.subr.mxu0 0.0
    %4418 = vmatpush2.msra.mxu0 0.0
    %4419 = vmatprep.subr.mxu0 0.0
    %4420 = vmatpush2.msra.mxu0 0.0
    %4421 = vmatprep.subr.mxu0 0.0
    %4422 = vmatpush2.msra.mxu0 0.0
    %4423 = vmatprep.subr.mxu0 0.0
    %4424 = vmatpush2.msra.mxu0 0.0
    %4425 = vmatprep.subr.mxu0 0.0
    %4426 = vmatpush2.msra.mxu0 0.0
    %4427 = vmatprep.subr.mxu0 0.0
    %4428 = vmatpush2.msra.mxu0 0.0
    %4429 = vmatprep.subr.mxu0 0.0
    %4430 = vmatpush2.msra.mxu0 0.0
    %4431 = vmatprep.subr.mxu0 0.0
    %v4432 = vand.u32 %v212, 4294901760
    %4433 = vmatpush2.msra.mxu0 %v4432
    %4434 = vmatprep.subr.mxu0 0.0
    %v4435 = vand.u32 %v211, 4294901760
    %4436 = vmatpush2.msra.mxu0 %v4435
    %4437 = vmatprep.subr.mxu0 0.0
    %v4438 = vand.u32 %v210, 4294901760
    %4439 = vmatpush2.msra.mxu0 %v4438
    %4440 = vmatprep.subr.mxu0 0.0
    %v4441 = vand.u32 %v209, 4294901760
    %4442 = vmatpush2.msra.mxu0 %v4441
    %4443 = vmatprep.subr.mxu0 0.0
    %v4444 = vand.u32 %v208, 4294901760
    %4445 = vmatpush2.msra.mxu0 %v4444
    %4446 = vmatprep.subr.mxu0 0.0
    %v4447 = vand.u32 %v207, 4294901760
    %4448 = vmatpush2.msra.mxu0 %v4447
    %v4449 = vand.u32 %v275, 4294901760
    %4450 = vmatprep.mubr.f32.mxu0 %v4449
    %v4451 = vand.u32 %v263, 4294901760
    %4452 = vmatmul.mubr.f32.gmra.mxu0 %v4451
    %v4453 = vpop.f32.mrf.mxu0
    %v4454 = vadd.f32 %v4360, %v4453
    %v4455 = vpop.f32.mrf.mxu0
    %4456 = vdwg.mxu0
    %v4457 = vmax.f32 %v4454, 0.0
    %v4458 = vld [vmem:[#allocation7] sm:$0xff]
    %v4459 = vld [vmem:[#allocation7 + $0x8] sm:$0xff]
    %v4460 = vld [vmem:[#allocation7 + $0x10] sm:$0xff]
    %v4461 = vld [vmem:[#allocation7 + $0x18] sm:$0xff]
    %v4462 = vld [vmem:[#allocation7 + $0x20] sm:$0xff]
    %v4463 = vld [vmem:[#allocation7 + $0x28] sm:$0xff]
    %v4464 = vld [vmem:[#allocation7 + $0x30] sm:$0xff]
    %v4465 = vld [vmem:[#allocation7 + $0x38] sm:$0xff]
    %v4466 = vld [vmem:[#allocation7 + $0x40] sm:$0xff]
    %v4467 = vld [vmem:[#allocation7 + $0x48] sm:$0xff]
    %v4468 = vld [vmem:[#allocation7 + $0x50] sm:$0xff]
    %v4469 = vld [vmem:[#allocation7 + $0x58] sm:$0xff]
    %v4470 = vld [vmem:[#allocation7 + $0x60] sm:$0xff]
    %v4471 = vld [vmem:[#allocation7 + $0x68] sm:$0xff]
    %v4472 = vld [vmem:[#allocation7 + $0x70] sm:$0xff]
    %v4473 = vld [vmem:[#allocation7 + $0x78] sm:$0xff]
    %v4474 = vld [vmem:[%s4] sm:$0x1]
    %v4476 = vlaneseq
    %v4477 = vshrl.u32 %v4476, 7
    %v4478 = vsub.s32 0, %v4477
    %v4479 = vrot.slane %v4474, %v4478
    %4481 = vmatprep.subr.mxu0 0.0
    %v4482 = vand.u32 %v4473, 4294901760
    %4483 = vmatpush1.msra.mxu0 %v4482
    %4484 = vmatprep.subr.mxu0 0.0
    %v4485 = vand.u32 %v4472, 4294901760
    %4486 = vmatpush1.msra.mxu0 %v4485
    %4487 = vmatprep.subr.mxu0 0.0
    %v4488 = vand.u32 %v4471, 4294901760
    %4489 = vmatpush1.msra.mxu0 %v4488
    %4490 = vmatprep.subr.mxu0 0.0
    %v4491 = vand.u32 %v4470, 4294901760
    %4492 = vmatpush1.msra.mxu0 %v4491
    %4493 = vmatprep.subr.mxu0 0.0
    %v4494 = vand.u32 %v4469, 4294901760
    %4495 = vmatpush1.msra.mxu0 %v4494
    %4496 = vmatprep.subr.mxu0 0.0
    %v4497 = vand.u32 %v4468, 4294901760
    %4498 = vmatpush1.msra.mxu0 %v4497
    %4499 = vmatprep.subr.mxu0 0.0
    %v4500 = vand.u32 %v4467, 4294901760
    %4501 = vmatpush1.msra.mxu0 %v4500
    %4502 = vmatprep.subr.mxu0 0.0
    %v4503 = vand.u32 %v4466, 4294901760
    %4504 = vmatpush1.msra.mxu0 %v4503
    %4505 = vmatprep.subr.mxu0 0.0
    %v4506 = vand.u32 %v4465, 4294901760
    %4507 = vmatpush1.msra.mxu0 %v4506
    %4508 = vmatprep.subr.mxu0 0.0
    %v4509 = vand.u32 %v4464, 4294901760
    %4510 = vmatpush1.msra.mxu0 %v4509
    %4511 = vmatprep.subr.mxu0 0.0
    %v4512 = vand.u32 %v4463, 4294901760
    %4513 = vmatpush1.msra.mxu0 %v4512
    %4514 = vmatprep.subr.mxu0 0.0
    %v4515 = vand.u32 %v4462, 4294901760
    %4516 = vmatpush1.msra.mxu0 %v4515
    %4517 = vmatprep.subr.mxu0 0.0
    %v4518 = vand.u32 %v4461, 4294901760
    %4519 = vmatpush1.msra.mxu0 %v4518
    %4520 = vmatprep.subr.mxu0 0.0
    %v4521 = vand.u32 %v4460, 4294901760
    %4522 = vmatpush1.msra.mxu0 %v4521
    %4523 = vmatprep.subr.mxu0 0.0
    %v4524 = vand.u32 %v4459, 4294901760
    %4525 = vmatpush1.msra.mxu0 %v4524
    %4526 = vmatprep.subr.mxu0 0.0
    %v4527 = vand.u32 %v4458, 4294901760
    %4528 = vmatpush1.msra.mxu0 %v4527
    %4529 = vmatprep.subr.mxu0 0.0
    %4530 = vmatpush2.msra.mxu0 0.0
    %4531 = vmatprep.subr.mxu0 0.0
    %4532 = vmatpush2.msra.mxu0 0.0
    %4533 = vmatprep.subr.mxu0 0.0
    %4534 = vmatpush2.msra.mxu0 0.0
    %4535 = vmatprep.subr.mxu0 0.0
    %4536 = vmatpush2.msra.mxu0 0.0
    %4537 = vmatprep.subr.mxu0 0.0
    %4538 = vmatpush2.msra.mxu0 0.0
    %4539 = vmatprep.subr.mxu0 0.0
    %4540 = vmatpush2.msra.mxu0 0.0
    %4541 = vmatprep.subr.mxu0 0.0
    %4542 = vmatpush2.msra.mxu0 0.0
    %4543 = vmatprep.subr.mxu0 0.0
    %4544 = vmatpush2.msra.mxu0 0.0
    %4545 = vmatprep.subr.mxu0 0.0
    %4546 = vmatpush2.msra.mxu0 0.0
    %4547 = vmatprep.subr.mxu0 0.0
    %4548 = vmatpush2.msra.mxu0 0.0
    %4549 = vmatprep.subr.mxu0 0.0
    %4550 = vmatpush2.msra.mxu0 0.0
    %4551 = vmatprep.subr.mxu0 0.0
    %4552 = vmatpush2.msra.mxu0 0.0
    %4553 = vmatprep.subr.mxu0 0.0
    %4554 = vmatpush2.msra.mxu0 0.0
    %4555 = vmatprep.subr.mxu0 0.0
    %4556 = vmatpush2.msra.mxu0 0.0
    %4557 = vmatprep.subr.mxu0 0.0
    %4558 = vmatpush2.msra.mxu0 0.0
    %4559 = vmatprep.subr.mxu0 0.0
    %4560 = vmatpush2.msra.mxu0 0.0
    %4561 = vmatprep.mubr.f32.mxu0 0.0
    %v4562 = vand.u32 %v4457, 4294901760
    %v4563 = vsub.f32 %v4457, %v4562
    %v4564 = vand.u32 %v4563, 4294901760
    %v4565 = vsub.f32 %v4563, %v4564
    %v4566 = vand.u32 %v4565, 4294901760
    %4567 = vmatmul.mubr.f32.gmra.mxu0 %v4566
    %v4568 = vpop.f32.mrf.mxu0
    %v4569 = vadd.f32 %v4479, %v4568
    %v4570 = vpop.f32.mrf.mxu0
    %4571 = vdwg.mxu0
    %4572 = vmatprep.subr.mxu0 0.0
    %v4573 = vand.u32 %v4473, 4294901760
    %v4574 = vsub.f32 %v4473, %v4573
    %v4575 = vand.u32 %v4574, 4294901760
    %v4576 = vsub.f32 %v4574, %v4575
    %v4577 = vand.u32 %v4576, 4294901760
    %4578 = vmatpush1.msra.mxu0 %v4577
    %4579 = vmatprep.subr.mxu0 0.0
    %v4580 = vand.u32 %v4472, 4294901760
    %v4581 = vsub.f32 %v4472, %v4580
    %v4582 = vand.u32 %v4581, 4294901760
    %v4583 = vsub.f32 %v4581, %v4582
    %v4584 = vand.u32 %v4583, 4294901760
    %4585 = vmatpush1.msra.mxu0 %v4584
    %4586 = vmatprep.subr.mxu0 0.0
    %v4587 = vand.u32 %v4471, 4294901760
    %v4588 = vsub.f32 %v4471, %v4587
    %v4589 = vand.u32 %v4588, 4294901760
    %v4590 = vsub.f32 %v4588, %v4589
    %v4591 = vand.u32 %v4590, 4294901760
    %4592 = vmatpush1.msra.mxu0 %v4591
    %4593 = vmatprep.subr.mxu0 0.0
    %v4594 = vand.u32 %v4470, 4294901760
    %v4595 = vsub.f32 %v4470, %v4594
    %v4596 = vand.u32 %v4595, 4294901760
    %v4597 = vsub.f32 %v4595, %v4596
    %v4598 = vand.u32 %v4597, 4294901760
    %4599 = vmatpush1.msra.mxu0 %v4598
    %4600 = vmatprep.subr.mxu0 0.0
    %v4601 = vand.u32 %v4469, 4294901760
    %v4602 = vsub.f32 %v4469, %v4601
    %v4603 = vand.u32 %v4602, 4294901760
    %v4604 = vsub.f32 %v4602, %v4603
    %v4605 = vand.u32 %v4604, 4294901760
    %4606 = vmatpush1.msra.mxu0 %v4605
    %4607 = vmatprep.subr.mxu0 0.0
    %v4608 = vand.u32 %v4468, 4294901760
    %v4609 = vsub.f32 %v4468, %v4608
    %v4610 = vand.u32 %v4609, 4294901760
    %v4611 = vsub.f32 %v4609, %v4610
    %v4612 = vand.u32 %v4611, 4294901760
    %4613 = vmatpush1.msra.mxu0 %v4612
    %4614 = vmatprep.subr.mxu0 0.0
    %v4615 = vand.u32 %v4467, 4294901760
    %v4616 = vsub.f32 %v4467, %v4615
    %v4617 = vand.u32 %v4616, 4294901760
    %v4618 = vsub.f32 %v4616, %v4617
    %v4619 = vand.u32 %v4618, 4294901760
    %4620 = vmatpush1.msra.mxu0 %v4619
    %4621 = vmatprep.subr.mxu0 0.0
    %v4622 = vand.u32 %v4466, 4294901760
    %v4623 = vsub.f32 %v4466, %v4622
    %v4624 = vand.u32 %v4623, 4294901760
    %v4625 = vsub.f32 %v4623, %v4624
    %v4626 = vand.u32 %v4625, 4294901760
    %4627 = vmatpush1.msra.mxu0 %v4626
    %4628 = vmatprep.subr.mxu0 0.0
    %v4629 = vand.u32 %v4465, 4294901760
    %v4630 = vsub.f32 %v4465, %v4629
    %v4631 = vand.u32 %v4630, 4294901760
    %v4632 = vsub.f32 %v4630, %v4631
    %v4633 = vand.u32 %v4632, 4294901760
    %4634 = vmatpush1.msra.mxu0 %v4633
    %4635 = vmatprep.subr.mxu0 0.0
    %v4636 = vand.u32 %v4464, 4294901760
    %v4637 = vsub.f32 %v4464, %v4636
    %v4638 = vand.u32 %v4637, 4294901760
    %v4639 = vsub.f32 %v4637, %v4638
    %v4640 = vand.u32 %v4639, 4294901760
    %4641 = vmatpush1.msra.mxu0 %v4640
    %4642 = vmatprep.subr.mxu0 0.0
    %v4643 = vand.u32 %v4463, 4294901760
    %v4644 = vsub.f32 %v4463, %v4643
    %v4645 = vand.u32 %v4644, 4294901760
    %v4646 = vsub.f32 %v4644, %v4645
    %v4647 = vand.u32 %v4646, 4294901760
    %4648 = vmatpush1.msra.mxu0 %v4647
    %4649 = vmatprep.subr.mxu0 0.0
    %v4650 = vand.u32 %v4462, 4294901760
    %v4651 = vsub.f32 %v4462, %v4650
    %v4652 = vand.u32 %v4651, 4294901760
    %v4653 = vsub.f32 %v4651, %v4652
    %v4654 = vand.u32 %v4653, 4294901760
    %4655 = vmatpush1.msra.mxu0 %v4654
    %4656 = vmatprep.subr.mxu0 0.0
    %v4657 = vand.u32 %v4461, 4294901760
    %v4658 = vsub.f32 %v4461, %v4657
    %v4659 = vand.u32 %v4658, 4294901760
    %v4660 = vsub.f32 %v4658, %v4659
    %v4661 = vand.u32 %v4660, 4294901760
    %4662 = vmatpush1.msra.mxu0 %v4661
    %4663 = vmatprep.subr.mxu0 0.0
    %v4664 = vand.u32 %v4460, 4294901760
    %v4665 = vsub.f32 %v4460, %v4664
    %v4666 = vand.u32 %v4665, 4294901760
    %v4667 = vsub.f32 %v4665, %v4666
    %v4668 = vand.u32 %v4667, 4294901760
    %4669 = vmatpush1.msra.mxu0 %v4668
    %4670 = vmatprep.subr.mxu0 0.0
    %v4671 = vand.u32 %v4459, 4294901760
    %v4672 = vsub.f32 %v4459, %v4671
    %v4673 = vand.u32 %v4672, 4294901760
    %v4674 = vsub.f32 %v4672, %v4673
    %v4675 = vand.u32 %v4674, 4294901760
    %4676 = vmatpush1.msra.mxu0 %v4675
    %4677 = vmatprep.subr.mxu0 0.0
    %v4678 = vand.u32 %v4458, 4294901760
    %v4679 = vsub.f32 %v4458, %v4678
    %v4680 = vand.u32 %v4679, 4294901760
    %v4681 = vsub.f32 %v4679, %v4680
    %v4682 = vand.u32 %v4681, 4294901760
    %4683 = vmatpush1.msra.mxu0 %v4682
    %4684 = vmatprep.subr.mxu0 0.0
    %4685 = vmatpush2.msra.mxu0 0.0
    %4686 = vmatprep.subr.mxu0 0.0
    %4687 = vmatpush2.msra.mxu0 0.0
    %4688 = vmatprep.subr.mxu0 0.0
    %4689 = vmatpush2.msra.mxu0 0.0
    %4690 = vmatprep.subr.mxu0 0.0
    %4691 = vmatpush2.msra.mxu0 0.0
    %4692 = vmatprep.subr.mxu0 0.0
    %4693 = vmatpush2.msra.mxu0 0.0
    %4694 = vmatprep.subr.mxu0 0.0
    %4695 = vmatpush2.msra.mxu0 0.0
    %4696 = vmatprep.subr.mxu0 0.0
    %4697 = vmatpush2.msra.mxu0 0.0
    %4698 = vmatprep.subr.mxu0 0.0
    %4699 = vmatpush2.msra.mxu0 0.0
    %4700 = vmatprep.subr.mxu0 0.0
    %4701 = vmatpush2.msra.mxu0 0.0
    %4702 = vmatprep.subr.mxu0 0.0
    %4703 = vmatpush2.msra.mxu0 0.0
    %4704 = vmatprep.subr.mxu0 0.0
    %4705 = vmatpush2.msra.mxu0 0.0
    %4706 = vmatprep.subr.mxu0 0.0
    %4707 = vmatpush2.msra.mxu0 0.0
    %4708 = vmatprep.subr.mxu0 0.0
    %4709 = vmatpush2.msra.mxu0 0.0
    %4710 = vmatprep.subr.mxu0 0.0
    %4711 = vmatpush2.msra.mxu0 0.0
    %4712 = vmatprep.subr.mxu0 0.0
    %4713 = vmatpush2.msra.mxu0 0.0
    %4714 = vmatprep.subr.mxu0 0.0
    %4715 = vmatpush2.msra.mxu0 0.0
    %4716 = vmatprep.mubr.f32.mxu0 0.0
    %v4717 = vand.u32 %v4457, 4294901760
    %4718 = vmatmul.mubr.f32.gmra.mxu0 %v4717
    %v4719 = vpop.f32.mrf.mxu0
    %v4720 = vadd.f32 %v4569, %v4719
    %v4721 = vpop.f32.mrf.mxu0
    %4722 = vdwg.mxu0
    %4723 = vmatprep.subr.mxu0 0.0
    %v4724 = vand.u32 %v4473, 4294901760
    %v4725 = vsub.f32 %v4473, %v4724
    %4726 = vmatpush1.msra.mxu0 %v4725
    %4727 = vmatprep.subr.mxu0 0.0
    %v4728 = vand.u32 %v4472, 4294901760
    %v4729 = vsub.f32 %v4472, %v4728
    %4730 = vmatpush1.msra.mxu0 %v4729
    %4731 = vmatprep.subr.mxu0 0.0
    %v4732 = vand.u32 %v4471, 4294901760
    %v4733 = vsub.f32 %v4471, %v4732
    %4734 = vmatpush1.msra.mxu0 %v4733
    %4735 = vmatprep.subr.mxu0 0.0
    %v4736 = vand.u32 %v4470, 4294901760
    %v4737 = vsub.f32 %v4470, %v4736
    %4738 = vmatpush1.msra.mxu0 %v4737
    %4739 = vmatprep.subr.mxu0 0.0
    %v4740 = vand.u32 %v4469, 4294901760
    %v4741 = vsub.f32 %v4469, %v4740
    %4742 = vmatpush1.msra.mxu0 %v4741
    %4743 = vmatprep.subr.mxu0 0.0
    %v4744 = vand.u32 %v4468, 4294901760
    %v4745 = vsub.f32 %v4468, %v4744
    %4746 = vmatpush1.msra.mxu0 %v4745
    %4747 = vmatprep.subr.mxu0 0.0
    %v4748 = vand.u32 %v4467, 4294901760
    %v4749 = vsub.f32 %v4467, %v4748
    %4750 = vmatpush1.msra.mxu0 %v4749
    %4751 = vmatprep.subr.mxu0 0.0
    %v4752 = vand.u32 %v4466, 4294901760
    %v4753 = vsub.f32 %v4466, %v4752
    %4754 = vmatpush1.msra.mxu0 %v4753
    %4755 = vmatprep.subr.mxu0 0.0
    %v4756 = vand.u32 %v4465, 4294901760
    %v4757 = vsub.f32 %v4465, %v4756
    %4758 = vmatpush1.msra.mxu0 %v4757
    %4759 = vmatprep.subr.mxu0 0.0
    %v4760 = vand.u32 %v4464, 4294901760
    %v4761 = vsub.f32 %v4464, %v4760
    %4762 = vmatpush1.msra.mxu0 %v4761
    %4763 = vmatprep.subr.mxu0 0.0
    %v4764 = vand.u32 %v4463, 4294901760
    %v4765 = vsub.f32 %v4463, %v4764
    %4766 = vmatpush1.msra.mxu0 %v4765
    %4767 = vmatprep.subr.mxu0 0.0
    %v4768 = vand.u32 %v4462, 4294901760
    %v4769 = vsub.f32 %v4462, %v4768
    %4770 = vmatpush1.msra.mxu0 %v4769
    %4771 = vmatprep.subr.mxu0 0.0
    %v4772 = vand.u32 %v4461, 4294901760
    %v4773 = vsub.f32 %v4461, %v4772
    %4774 = vmatpush1.msra.mxu0 %v4773
    %4775 = vmatprep.subr.mxu0 0.0
    %v4776 = vand.u32 %v4460, 4294901760
    %v4777 = vsub.f32 %v4460, %v4776
    %4778 = vmatpush1.msra.mxu0 %v4777
    %4779 = vmatprep.subr.mxu0 0.0
    %v4780 = vand.u32 %v4459, 4294901760
    %v4781 = vsub.f32 %v4459, %v4780
    %4782 = vmatpush1.msra.mxu0 %v4781
    %4783 = vmatprep.subr.mxu0 0.0
    %v4784 = vand.u32 %v4458, 4294901760
    %v4785 = vsub.f32 %v4458, %v4784
    %4786 = vmatpush1.msra.mxu0 %v4785
    %4787 = vmatprep.subr.mxu0 0.0
    %4788 = vmatpush2.msra.mxu0 0.0
    %4789 = vmatprep.subr.mxu0 0.0
    %4790 = vmatpush2.msra.mxu0 0.0
    %4791 = vmatprep.subr.mxu0 0.0
    %4792 = vmatpush2.msra.mxu0 0.0
    %4793 = vmatprep.subr.mxu0 0.0
    %4794 = vmatpush2.msra.mxu0 0.0
    %4795 = vmatprep.subr.mxu0 0.0
    %4796 = vmatpush2.msra.mxu0 0.0
    %4797 = vmatprep.subr.mxu0 0.0
    %4798 = vmatpush2.msra.mxu0 0.0
    %4799 = vmatprep.subr.mxu0 0.0
    %4800 = vmatpush2.msra.mxu0 0.0
    %4801 = vmatprep.subr.mxu0 0.0
    %4802 = vmatpush2.msra.mxu0 0.0
    %4803 = vmatprep.subr.mxu0 0.0
    %4804 = vmatpush2.msra.mxu0 0.0
    %4805 = vmatprep.subr.mxu0 0.0
    %4806 = vmatpush2.msra.mxu0 0.0
    %4807 = vmatprep.subr.mxu0 0.0
    %4808 = vmatpush2.msra.mxu0 0.0
    %4809 = vmatprep.subr.mxu0 0.0
    %4810 = vmatpush2.msra.mxu0 0.0
    %4811 = vmatprep.subr.mxu0 0.0
    %4812 = vmatpush2.msra.mxu0 0.0
    %4813 = vmatprep.subr.mxu0 0.0
    %4814 = vmatpush2.msra.mxu0 0.0
    %4815 = vmatprep.subr.mxu0 0.0
    %4816 = vmatpush2.msra.mxu0 0.0
    %4817 = vmatprep.subr.mxu0 0.0
    %4818 = vmatpush2.msra.mxu0 0.0
    %4819 = vmatprep.mubr.f32.mxu0 0.0
    %v4820 = vand.u32 %v4457, 4294901760
    %v4821 = vsub.f32 %v4457, %v4820
    %4822 = vmatmul.mubr.f32.gmra.mxu0 %v4821
    %v4823 = vpop.f32.mrf.mxu0
    %v4824 = vadd.f32 %v4720, %v4823
    %v4825 = vpop.f32.mrf.mxu0
    %4826 = vdwg.mxu0
    %4827 = vmatprep.subr.mxu0 0.0
    %v4828 = vand.u32 %v4473, 4294901760
    %4829 = vmatpush1.msra.mxu0 %v4828
    %4830 = vmatprep.subr.mxu0 0.0
    %v4831 = vand.u32 %v4472, 4294901760
    %4832 = vmatpush1.msra.mxu0 %v4831
    %4833 = vmatprep.subr.mxu0 0.0
    %v4834 = vand.u32 %v4471, 4294901760
    %4835 = vmatpush1.msra.mxu0 %v4834
    %4836 = vmatprep.subr.mxu0 0.0
    %v4837 = vand.u32 %v4470, 4294901760
    %4838 = vmatpush1.msra.mxu0 %v4837
    %4839 = vmatprep.subr.mxu0 0.0
    %v4840 = vand.u32 %v4469, 4294901760
    %4841 = vmatpush1.msra.mxu0 %v4840
    %4842 = vmatprep.subr.mxu0 0.0
    %v4843 = vand.u32 %v4468, 4294901760
    %4844 = vmatpush1.msra.mxu0 %v4843
    %4845 = vmatprep.subr.mxu0 0.0
    %v4846 = vand.u32 %v4467, 4294901760
    %4847 = vmatpush1.msra.mxu0 %v4846
    %4848 = vmatprep.subr.mxu0 0.0
    %v4849 = vand.u32 %v4466, 4294901760
    %4850 = vmatpush1.msra.mxu0 %v4849
    %4851 = vmatprep.subr.mxu0 0.0
    %v4852 = vand.u32 %v4465, 4294901760
    %4853 = vmatpush1.msra.mxu0 %v4852
    %4854 = vmatprep.subr.mxu0 0.0
    %v4855 = vand.u32 %v4464, 4294901760
    %4856 = vmatpush1.msra.mxu0 %v4855
    %4857 = vmatprep.subr.mxu0 0.0
    %v4858 = vand.u32 %v4463, 4294901760
    %4859 = vmatpush1.msra.mxu0 %v4858
    %4860 = vmatprep.subr.mxu0 0.0
    %v4861 = vand.u32 %v4462, 4294901760
    %4862 = vmatpush1.msra.mxu0 %v4861
    %4863 = vmatprep.subr.mxu0 0.0
    %v4864 = vand.u32 %v4461, 4294901760
    %4865 = vmatpush1.msra.mxu0 %v4864
    %4866 = vmatprep.subr.mxu0 0.0
    %v4867 = vand.u32 %v4460, 4294901760
    %4868 = vmatpush1.msra.mxu0 %v4867
    %4869 = vmatprep.subr.mxu0 0.0
    %v4870 = vand.u32 %v4459, 4294901760
    %4871 = vmatpush1.msra.mxu0 %v4870
    %4872 = vmatprep.subr.mxu0 0.0
    %v4873 = vand.u32 %v4458, 4294901760
    %4874 = vmatpush1.msra.mxu0 %v4873
    %4875 = vmatprep.subr.mxu0 0.0
    %4876 = vmatpush2.msra.mxu0 0.0
    %4877 = vmatprep.subr.mxu0 0.0
    %4878 = vmatpush2.msra.mxu0 0.0
    %4879 = vmatprep.subr.mxu0 0.0
    %4880 = vmatpush2.msra.mxu0 0.0
    %4881 = vmatprep.subr.mxu0 0.0
    %4882 = vmatpush2.msra.mxu0 0.0
    %4883 = vmatprep.subr.mxu0 0.0
    %4884 = vmatpush2.msra.mxu0 0.0
    %4885 = vmatprep.subr.mxu0 0.0
    %4886 = vmatpush2.msra.mxu0 0.0
    %4887 = vmatprep.subr.mxu0 0.0
    %4888 = vmatpush2.msra.mxu0 0.0
    %4889 = vmatprep.subr.mxu0 0.0
    %4890 = vmatpush2.msra.mxu0 0.0
    %4891 = vmatprep.subr.mxu0 0.0
    %4892 = vmatpush2.msra.mxu0 0.0
    %4893 = vmatprep.subr.mxu0 0.0
    %4894 = vmatpush2.msra.mxu0 0.0
    %4895 = vmatprep.subr.mxu0 0.0
    %4896 = vmatpush2.msra.mxu0 0.0
    %4897 = vmatprep.subr.mxu0 0.0
    %4898 = vmatpush2.msra.mxu0 0.0
    %4899 = vmatprep.subr.mxu0 0.0
    %4900 = vmatpush2.msra.mxu0 0.0
    %4901 = vmatprep.subr.mxu0 0.0
    %4902 = vmatpush2.msra.mxu0 0.0
    %4903 = vmatprep.subr.mxu0 0.0
    %4904 = vmatpush2.msra.mxu0 0.0
    %4905 = vmatprep.subr.mxu0 0.0
    %4906 = vmatpush2.msra.mxu0 0.0
    %4907 = vmatprep.mubr.f32.mxu0 0.0
    %v4908 = vand.u32 %v4457, 4294901760
    %v4909 = vsub.f32 %v4457, %v4908
    %v4910 = vand.u32 %v4909, 4294901760
    %4911 = vmatmul.mubr.f32.gmra.mxu0 %v4910
    %v4912 = vpop.f32.mrf.mxu0
    %v4913 = vadd.f32 %v4824, %v4912
    %v4914 = vpop.f32.mrf.mxu0
    %4915 = vdwg.mxu0
    %4916 = vmatprep.subr.mxu0 0.0
    %v4917 = vand.u32 %v4473, 4294901760
    %v4918 = vsub.f32 %v4473, %v4917
    %v4919 = vand.u32 %v4918, 4294901760
    %4920 = vmatpush1.msra.mxu0 %v4919
    %4921 = vmatprep.subr.mxu0 0.0
    %v4922 = vand.u32 %v4472, 4294901760
    %v4923 = vsub.f32 %v4472, %v4922
    %v4924 = vand.u32 %v4923, 4294901760
    %4925 = vmatpush1.msra.mxu0 %v4924
    %4926 = vmatprep.subr.mxu0 0.0
    %v4927 = vand.u32 %v4471, 4294901760
    %v4928 = vsub.f32 %v4471, %v4927
    %v4929 = vand.u32 %v4928, 4294901760
    %4930 = vmatpush1.msra.mxu0 %v4929
    %4931 = vmatprep.subr.mxu0 0.0
    %v4932 = vand.u32 %v4470, 4294901760
    %v4933 = vsub.f32 %v4470, %v4932
    %v4934 = vand.u32 %v4933, 4294901760
    %4935 = vmatpush1.msra.mxu0 %v4934
    %4936 = vmatprep.subr.mxu0 0.0
    %v4937 = vand.u32 %v4469, 4294901760
    %v4938 = vsub.f32 %v4469, %v4937
    %v4939 = vand.u32 %v4938, 4294901760
    %4940 = vmatpush1.msra.mxu0 %v4939
    %4941 = vmatprep.subr.mxu0 0.0
    %v4942 = vand.u32 %v4468, 4294901760
    %v4943 = vsub.f32 %v4468, %v4942
    %v4944 = vand.u32 %v4943, 4294901760
    %4945 = vmatpush1.msra.mxu0 %v4944
    %4946 = vmatprep.subr.mxu0 0.0
    %v4947 = vand.u32 %v4467, 4294901760
    %v4948 = vsub.f32 %v4467, %v4947
    %v4949 = vand.u32 %v4948, 4294901760
    %4950 = vmatpush1.msra.mxu0 %v4949
    %4951 = vmatprep.subr.mxu0 0.0
    %v4952 = vand.u32 %v4466, 4294901760
    %v4953 = vsub.f32 %v4466, %v4952
    %v4954 = vand.u32 %v4953, 4294901760
    %4955 = vmatpush1.msra.mxu0 %v4954
    %4956 = vmatprep.subr.mxu0 0.0
    %v4957 = vand.u32 %v4465, 4294901760
    %v4958 = vsub.f32 %v4465, %v4957
    %v4959 = vand.u32 %v4958, 4294901760
    %4960 = vmatpush1.msra.mxu0 %v4959
    %4961 = vmatprep.subr.mxu0 0.0
    %v4962 = vand.u32 %v4464, 4294901760
    %v4963 = vsub.f32 %v4464, %v4962
    %v4964 = vand.u32 %v4963, 4294901760
    %4965 = vmatpush1.msra.mxu0 %v4964
    %4966 = vmatprep.subr.mxu0 0.0
    %v4967 = vand.u32 %v4463, 4294901760
    %v4968 = vsub.f32 %v4463, %v4967
    %v4969 = vand.u32 %v4968, 4294901760
    %4970 = vmatpush1.msra.mxu0 %v4969
    %4971 = vmatprep.subr.mxu0 0.0
    %v4972 = vand.u32 %v4462, 4294901760
    %v4973 = vsub.f32 %v4462, %v4972
    %v4974 = vand.u32 %v4973, 4294901760
    %4975 = vmatpush1.msra.mxu0 %v4974
    %4976 = vmatprep.subr.mxu0 0.0
    %v4977 = vand.u32 %v4461, 4294901760
    %v4978 = vsub.f32 %v4461, %v4977
    %v4979 = vand.u32 %v4978, 4294901760
    %4980 = vmatpush1.msra.mxu0 %v4979
    %4981 = vmatprep.subr.mxu0 0.0
    %v4982 = vand.u32 %v4460, 4294901760
    %v4983 = vsub.f32 %v4460, %v4982
    %v4984 = vand.u32 %v4983, 4294901760
    %4985 = vmatpush1.msra.mxu0 %v4984
    %4986 = vmatprep.subr.mxu0 0.0
    %v4987 = vand.u32 %v4459, 4294901760
    %v4988 = vsub.f32 %v4459, %v4987
    %v4989 = vand.u32 %v4988, 4294901760
    %4990 = vmatpush1.msra.mxu0 %v4989
    %4991 = vmatprep.subr.mxu0 0.0
    %v4992 = vand.u32 %v4458, 4294901760
    %v4993 = vsub.f32 %v4458, %v4992
    %v4994 = vand.u32 %v4993, 4294901760
    %4995 = vmatpush1.msra.mxu0 %v4994
    %4996 = vmatprep.subr.mxu0 0.0
    %4997 = vmatpush2.msra.mxu0 0.0
    %4998 = vmatprep.subr.mxu0 0.0
    %4999 = vmatpush2.msra.mxu0 0.0
    %5000 = vmatprep.subr.mxu0 0.0
    %5001 = vmatpush2.msra.mxu0 0.0
    %5002 = vmatprep.subr.mxu0 0.0
    %5003 = vmatpush2.msra.mxu0 0.0
    %5004 = vmatprep.subr.mxu0 0.0
    %5005 = vmatpush2.msra.mxu0 0.0
    %5006 = vmatprep.subr.mxu0 0.0
    %5007 = vmatpush2.msra.mxu0 0.0
    %5008 = vmatprep.subr.mxu0 0.0
    %5009 = vmatpush2.msra.mxu0 0.0
    %5010 = vmatprep.subr.mxu0 0.0
    %5011 = vmatpush2.msra.mxu0 0.0
    %5012 = vmatprep.subr.mxu0 0.0
    %5013 = vmatpush2.msra.mxu0 0.0
    %5014 = vmatprep.subr.mxu0 0.0
    %5015 = vmatpush2.msra.mxu0 0.0
    %5016 = vmatprep.subr.mxu0 0.0
    %5017 = vmatpush2.msra.mxu0 0.0
    %5018 = vmatprep.subr.mxu0 0.0
    %5019 = vmatpush2.msra.mxu0 0.0
    %5020 = vmatprep.subr.mxu0 0.0
    %5021 = vmatpush2.msra.mxu0 0.0
    %5022 = vmatprep.subr.mxu0 0.0
    %5023 = vmatpush2.msra.mxu0 0.0
    %5024 = vmatprep.subr.mxu0 0.0
    %5025 = vmatpush2.msra.mxu0 0.0
    %5026 = vmatprep.subr.mxu0 0.0
    %5027 = vmatpush2.msra.mxu0 0.0
    %5028 = vmatprep.mubr.f32.mxu0 0.0
    %v5029 = vand.u32 %v4457, 4294901760
    %5030 = vmatmul.mubr.f32.gmra.mxu0 %v5029
    %v5031 = vpop.f32.mrf.mxu0
    %v5032 = vadd.f32 %v4913, %v5031
    %v5033 = vpop.f32.mrf.mxu0
    %5034 = vdwg.mxu0
    %5035 = vmatprep.subr.mxu0 0.0
    %v5036 = vand.u32 %v4473, 4294901760
    %5037 = vmatpush1.msra.mxu0 %v5036
    %5038 = vmatprep.subr.mxu0 0.0
    %v5039 = vand.u32 %v4472, 4294901760
    %5040 = vmatpush1.msra.mxu0 %v5039
    %5041 = vmatprep.subr.mxu0 0.0
    %v5042 = vand.u32 %v4471, 4294901760
    %5043 = vmatpush1.msra.mxu0 %v5042
    %5044 = vmatprep.subr.mxu0 0.0
    %v5045 = vand.u32 %v4470, 4294901760
    %5046 = vmatpush1.msra.mxu0 %v5045
    %5047 = vmatprep.subr.mxu0 0.0
    %v5048 = vand.u32 %v4469, 4294901760
    %5049 = vmatpush1.msra.mxu0 %v5048
    %5050 = vmatprep.subr.mxu0 0.0
    %v5051 = vand.u32 %v4468, 4294901760
    %5052 = vmatpush1.msra.mxu0 %v5051
    %5053 = vmatprep.subr.mxu0 0.0
    %v5054 = vand.u32 %v4467, 4294901760
    %5055 = vmatpush1.msra.mxu0 %v5054
    %5056 = vmatprep.subr.mxu0 0.0
    %v5057 = vand.u32 %v4466, 4294901760
    %5058 = vmatpush1.msra.mxu0 %v5057
    %5059 = vmatprep.subr.mxu0 0.0
    %v5060 = vand.u32 %v4465, 4294901760
    %5061 = vmatpush1.msra.mxu0 %v5060
    %5062 = vmatprep.subr.mxu0 0.0
    %v5063 = vand.u32 %v4464, 4294901760
    %5064 = vmatpush1.msra.mxu0 %v5063
    %5065 = vmatprep.subr.mxu0 0.0
    %v5066 = vand.u32 %v4463, 4294901760
    %5067 = vmatpush1.msra.mxu0 %v5066
    %5068 = vmatprep.subr.mxu0 0.0
    %v5069 = vand.u32 %v4462, 4294901760
    %5070 = vmatpush1.msra.mxu0 %v5069
    %5071 = vmatprep.subr.mxu0 0.0
    %v5072 = vand.u32 %v4461, 4294901760
    %5073 = vmatpush1.msra.mxu0 %v5072
    %5074 = vmatprep.subr.mxu0 0.0
    %v5075 = vand.u32 %v4460, 4294901760
    %5076 = vmatpush1.msra.mxu0 %v5075
    %5077 = vmatprep.subr.mxu0 0.0
    %v5078 = vand.u32 %v4459, 4294901760
    %5079 = vmatpush1.msra.mxu0 %v5078
    %5080 = vmatprep.subr.mxu0 0.0
    %v5081 = vand.u32 %v4458, 4294901760
    %5082 = vmatpush1.msra.mxu0 %v5081
    %5083 = vmatprep.subr.mxu0 0.0
    %5084 = vmatpush2.msra.mxu0 0.0
    %5085 = vmatprep.subr.mxu0 0.0
    %5086 = vmatpush2.msra.mxu0 0.0
    %5087 = vmatprep.subr.mxu0 0.0
    %5088 = vmatpush2.msra.mxu0 0.0
    %5089 = vmatprep.subr.mxu0 0.0
    %5090 = vmatpush2.msra.mxu0 0.0
    %5091 = vmatprep.subr.mxu0 0.0
    %5092 = vmatpush2.msra.mxu0 0.0
    %5093 = vmatprep.subr.mxu0 0.0
    %5094 = vmatpush2.msra.mxu0 0.0
    %5095 = vmatprep.subr.mxu0 0.0
    %5096 = vmatpush2.msra.mxu0 0.0
    %5097 = vmatprep.subr.mxu0 0.0
    %5098 = vmatpush2.msra.mxu0 0.0
    %5099 = vmatprep.subr.mxu0 0.0
    %5100 = vmatpush2.msra.mxu0 0.0
    %5101 = vmatprep.subr.mxu0 0.0
    %5102 = vmatpush2.msra.mxu0 0.0
    %5103 = vmatprep.subr.mxu0 0.0
    %5104 = vmatpush2.msra.mxu0 0.0
    %5105 = vmatprep.subr.mxu0 0.0
    %5106 = vmatpush2.msra.mxu0 0.0
    %5107 = vmatprep.subr.mxu0 0.0
    %5108 = vmatpush2.msra.mxu0 0.0
    %5109 = vmatprep.subr.mxu0 0.0
    %5110 = vmatpush2.msra.mxu0 0.0
    %5111 = vmatprep.subr.mxu0 0.0
    %5112 = vmatpush2.msra.mxu0 0.0
    %5113 = vmatprep.subr.mxu0 0.0
    %5114 = vmatpush2.msra.mxu0 0.0
    %5115 = vmatprep.mubr.f32.mxu0 0.0
    %v5116 = vand.u32 %v4457, 4294901760
    %5117 = vmatmul.mubr.f32.gmra.mxu0 %v5116
    %v5118 = vpop.f32.mrf.mxu0
    %v5119 = vadd.f32 %v5032, %v5118
    %v5120 = vpop.f32.mrf.mxu0
    %5121 = vdwg.mxu0
    %5122 = vst [vmem:[#allocation8] sm:$0x3] %v5119
    // Predicated region
    $region34: #{tpu_custom_call.1} parent=1 // pred_check
      _
    $region35: #{tpu_custom_call.1} parent=1 // pred_check_branch
      %5124 = sbr.rel (0) target = $region37
    $region36: #{tpu_custom_call.1} parent=1 // pred_region
      %s5126 = ssub.s32 32, 32
      %5127 = vsyncadd [#allocation4], %s5126
      %s5129 = sshll.u32 [#allocation8], 4
      %s5130 = int_to_ptr.vmem [resolvable:$true] %s5129
      %5132 = dma.vmem_to_hbm [thread:$0]  %s5130, 32, %s5, [#allocation4]
    $region37: #{tpu_custom_call.1} parent=1 // pred_fallthru
      _
    // Predicated region
    $region38: #{tpu_custom_call.1} parent=1 // pred_check
      _
    $region39: #{tpu_custom_call.1} parent=1 // pred_check_branch
      %5134 = sbr.rel (0) target = $region41
    $region40: #{tpu_custom_call.1} parent=1 // pred_region
      %5135 = dma.done [#allocation4], 32
    $region41: #{tpu_custom_call.1} parent=1 // pred_fallthru
      _
    %5136 = vsyncpa [#allocation3], 1
    %5137 = vsyncpa [#allocation6], 1
    %5138 = vsyncpa [#allocation4], 1

</llo_original>
